<compile_context>
chip_gen: v7x
topology: tpu7x:2x2x1
jax: 0.10.0
libtpu: 0.0.40
codegen_flags: <defaults>
</compile_context>

<pallas_src>
import functools

import jax
import jax.numpy as jnp
from jax.experimental import pallas as pl
from jax.experimental.pallas import tpu as pltpu


_CIN_PAD = 8                      # layer-1 Cin zero-padded 3 -> 8
_VMEM_LIMIT = 48 * 1024 * 1024    # > 16/32 MiB scoped defaults, < v7x 64 MiB
_NEG_SLOPE = 0.2


# ---------------------------------------------------------------------------
# Fused (quad-packed, im2col-free) conv kernels
# ---------------------------------------------------------------------------
def _qconv_accumulate(main_ref, halo_ref, w_ref):
    """4-tap k=2/s=1 conv on the quad-packed band; returns f32 (tho*wo, cout)."""
    main = main_ref[0]                       # (tho, wo+1, 4*cin) bf16
    halo = halo_ref[0]                       # (1,   wo+1, 4*cin) bf16
    tho, wq, c4 = main.shape
    wo = wq - 1
    if tho > 1:
        shifted = jnp.concatenate([main[1:], halo], axis=0)   # rows oh+1
    else:
        shifted = halo
    rows = (main, shifted)
    acc = None
    for qh in (0, 1):
        for qw in (0, 1):
            lhs = rows[qh][:, qw:qw + wo, :].reshape(tho * wo, c4)
            part = jnp.dot(lhs, w_ref[2 * qh + qw],
                           preferred_element_type=jnp.float32)
            acc = part if acc is None else acc + part
    return acc


def _qconv_lrelu_kernel(main_ref, halo_ref, w_ref, b_ref, y_ref, *, neg_slope):
    z = _qconv_accumulate(main_ref, halo_ref, w_ref) + b_ref[...]
    y_ref[...] = jnp.where(z > 0, z, neg_slope * z).astype(y_ref.dtype)


def _qconv_stats_kernel(main_ref, halo_ref, w_ref, b_ref, z_ref, s_ref):
    z = _qconv_accumulate(main_ref, halo_ref, w_ref) + b_ref[...]
    z_ref[...] = z.astype(z_ref.dtype)
    # Every row of this tile is a real output row (grid covers M exactly),
    # so no masking is needed for the BN partial sums.
    tsum = jnp.sum(z, axis=0, keepdims=True)            # (1, cout)
    tsq = jnp.sum(z * z, axis=0, keepdims=True)         # (1, cout)
    s_ref[...] = jnp.concatenate([tsum, tsq], axis=0).reshape(1, 2, z.shape[1])


# ---------------------------------------------------------------------------
# Fallback (im2col) conv kernels — used only for tiny / ragged spatial sizes
# ---------------------------------------------------------------------------
def _conv_lrelu_kernel(p_ref, w_ref, b_ref, y_ref, *, neg_slope):
    z = jnp.dot(p_ref[...], w_ref[...], preferred_element_type=jnp.float32)
    z = z + b_ref[...]
    y_ref[...] = jnp.where(z > 0, z, neg_slope * z).astype(y_ref.dtype)


def _conv_stats_kernel(p_ref, w_ref, b_ref, z_ref, s_ref, *, tm, m_real):
    z = jnp.dot(p_ref[...], w_ref[...], preferred_element_type=jnp.float32)
    z = z + b_ref[...]
    z_ref[...] = z.astype(z_ref.dtype)
    # (tm, 1) row mask (rows beyond m_real are zero padding of the M axis).
    row = (pl.program_id(0) * tm
           + jax.lax.broadcasted_iota(jnp.int32, (tm, 1), 0))
    zm = jnp.where(row < m_real, z, 0.0)
    tsum = jnp.sum(zm, axis=0, keepdims=True)
    tsq = jnp.sum(zm * zm, axis=0, keepdims=True)
    s_ref[...] = jnp.concatenate([tsum, tsq], axis=0).reshape(1, 2, z.shape[1])


# ---------------------------------------------------------------------------
# Head: BN-apply + LeakyReLU + global mean pool + Linear(256->1) + sigmoid,
# whole batch in a single grid step (no serialized accumulation).
# ---------------------------------------------------------------------------
def _head_kernel(z_ref, scale_ref, shift_ref, wfc_ref, bfc_ref, o_ref, *,
                 neg_slope, inv_s):
    scale = scale_ref[...]                   # (1, C) f32
    shift = shift_ref[...]
    wfc = wfc_ref[...]                       # (1, C) f32
    bias = bfc_ref[0, 0]
    n_batch = z_ref.shape[0]
    probs = []
    for i in range(n_batch):                 # static unroll, N is small
        zi = z_ref[i].astype(jnp.float32)    # (S, C)
        yi = zi * scale + shift
        yi = jnp.where(yi > 0, yi, neg_slope * yi)
        pooled = jnp.sum(yi, axis=0, keepdims=True) * inv_s        # (1, C)
        logit = jnp.sum(pooled * wfc, axis=1, keepdims=True) + bias  # (1, 1)
        probs.append(1.0 / (1.0 + jnp.exp(-logit)))
    o_ref[...] = jnp.concatenate(probs, axis=0)                    # (N, 1)


# ---------------------------------------------------------------------------
# pallas_call wrappers
# ---------------------------------------------------------------------------
def _round_up(x, m):
    return (x + m - 1) // m * m


def _pick_tile(m_real, tm_max=1024):
    return min(tm_max, _round_up(m_real, 8))


def _pick_row_tile(ho, wo, target_rows=1024):
    tho = max(1, min(ho, target_rows // max(wo, 1)))
    while ho % tho:
        tho -= 1
    return tho


def conv_fused(xq, w_q, bias, *, ho, wo, with_stats, target_rows=1024):
    """Fused conv on the quad-packed input.

    xq:  (N, Ho+1, Wo+1, 4*Cin) bf16, w_q: (4, 4*Cin, Cout) bf16,
    bias: (1, Cout) f32.  Returns y (activated) or (z, per-tile BN stats).
    """
    n = xq.shape[0]
    c4 = xq.shape[-1]
    cout = w_q.shape[-1]
    wq_dim = wo + 1
    tho = _pick_row_tile(ho, wo, target_rows)
    n_ht = ho // tho
    m = n * ho * wo
    grid = (n, n_ht)

    in_specs = [
        # Main row band (auto double-buffered by the BlockSpec pipeline).
        # TODO(synk): try pipeline_mode=pl.Buffered(3) here and sweep.
        pl.BlockSpec((1, tho, wq_dim, c4), lambda b, i: (b, i, 0, 0)),
        # 1-row halo: same array, element row (i+1)*tho expressed as a block
        # index of a height-1 block.
        pl.BlockSpec((1, 1, wq_dim, c4), lambda b, i: (b, (i + 1) * tho, 0, 0)),
        pl.BlockSpec((4, c4, cout), lambda b, i: (0, 0, 0)),   # resident weights
        pl.BlockSpec((1, cout), lambda b, i: (0, 0)),          # resident bias
    ]
    cparams = pltpu.CompilerParams(
        dimension_semantics=("parallel", "parallel"),
        vmem_limit_bytes=_VMEM_LIMIT)

    if not with_stats:
        return pl.pallas_call(
            functools.partial(_qconv_lrelu_kernel, neg_slope=_NEG_SLOPE),
            out_shape=jax.ShapeDtypeStruct((m, cout), jnp.bfloat16),
            grid=grid,
            in_specs=in_specs,
            out_specs=pl.BlockSpec((tho * wo, cout),
                                   lambda b, i: (b * n_ht + i, 0)),
            compiler_params=cparams,
        )(xq, xq, w_q, bias)

    z, stats = pl.pallas_call(
        _qconv_stats_kernel,
        out_shape=(jax.ShapeDtypeStruct((m, cout), jnp.bfloat16),
                   jax.ShapeDtypeStruct((n * n_ht, 2, cout), jnp.float32)),
        grid=grid,
        in_specs=in_specs,
        out_specs=(pl.BlockSpec((tho * wo, cout),
                                lambda b, i: (b * n_ht + i, 0)),
                   pl.BlockSpec((1, 2, cout),
                                lambda b, i: (b * n_ht + i, 0, 0))),
        compiler_params=cparams,
    )(xq, xq, w_q, bias)
    return z, stats


def conv_im2col(patches, w_mat, bias, *, with_stats, tm_max=1024):
    """Fallback tiled conv matmul on pre-built patches (M, K) bf16."""
    m_real, k = patches.shape
    cout = w_mat.shape[1]
    tm = _pick_tile(m_real, tm_max)
    m_pad = _round_up(m_real, tm)
    if m_pad != m_real:
        patches = jnp.pad(patches, ((0, m_pad - m_real), (0, 0)))
    grid = (m_pad // tm,)

    in_specs = [
        pl.BlockSpec((tm, k), lambda i: (i, 0)),
        pl.BlockSpec((k, cout), lambda i: (0, 0)),
        pl.BlockSpec((1, cout), lambda i: (0, 0)),
    ]
    cparams = pltpu.CompilerParams(dimension_semantics=("parallel",),
                                   vmem_limit_bytes=_VMEM_LIMIT)

    if not with_stats:
        y = pl.pallas_call(
            functools.partial(_conv_lrelu_kernel, neg_slope=_NEG_SLOPE),
            out_shape=jax.ShapeDtypeStruct((m_pad, cout), jnp.bfloat16),
            grid=grid,
            in_specs=in_specs,
            out_specs=pl.BlockSpec((tm, cout), lambda i: (i, 0)),
            compiler_params=cparams,
        )(patches, w_mat, bias)
        return y[:m_real] if m_pad != m_real else y

    z, stats = pl.pallas_call(
        functools.partial(_conv_stats_kernel, tm=tm, m_real=m_real),
        out_shape=(jax.ShapeDtypeStruct((m_pad, cout), jnp.bfloat16),
                   jax.ShapeDtypeStruct((m_pad // tm, 2, cout), jnp.float32)),
        grid=grid,
        in_specs=in_specs,
        out_specs=(pl.BlockSpec((tm, cout), lambda i: (i, 0)),
                   pl.BlockSpec((1, 2, cout), lambda i: (i, 0, 0))),
        compiler_params=cparams,
    )(patches, w_mat, bias)
    if m_pad != m_real:
        z = z[:m_real]
    return z, stats


def head(z3_nsc, scale, shift, w_fc_row, b_fc):
    """BN-apply + LeakyReLU + AdaptiveAvgPool + Linear + sigmoid, one step."""
    n, s, c = z3_nsc.shape
    return pl.pallas_call(
        functools.partial(_head_kernel, neg_slope=_NEG_SLOPE,
                          inv_s=1.0 / float(s)),
        out_shape=jax.ShapeDtypeStruct((n, 1), jnp.float32),
        grid=(1,),
        in_specs=[pl.BlockSpec((n, s, c), lambda i: (0, 0, 0)),
                  pl.BlockSpec((1, c), lambda i: (0, 0)),
                  pl.BlockSpec((1, c), lambda i: (0, 0)),
                  pl.BlockSpec((1, c), lambda i: (0, 0)),
                  pl.BlockSpec(memory_space=pltpu.MemorySpace.SMEM)],
        out_specs=pl.BlockSpec((n, 1), lambda i: (0, 0)),
        compiler_params=pltpu.CompilerParams(
            dimension_semantics=("arbitrary",),
            vmem_limit_bytes=_VMEM_LIMIT),
    )(z3_nsc, scale, shift, w_fc_row, b_fc)


# ---------------------------------------------------------------------------
# XLA glue: quad-pack repack, im2col fallback, BN finalize / fold, params
# ---------------------------------------------------------------------------
def quad_pack(x_nhwc):
    """(N,H,W,C) -> (N, Ho+1, Wo+1, 4C): stride-2 k=4 conv becomes stride-1
    k=2 conv on this representation.  Pure pad+reshape+transpose (~1x bytes)."""
    n, h, w, c = x_nhwc.shape
    ho, wo = h // 2, w // 2
    xp = jnp.pad(x_nhwc, ((0, 0), (1, 1), (1, 1), (0, 0)))
    xq = xp.reshape(n, ho + 1, 2, wo + 1, 2, c)
    xq = xq.transpose(0, 1, 3, 2, 4, 5).reshape(n, ho + 1, wo + 1, 4 * c)
    return xq


def im2col_nhwc(x_nhwc, k=4, s=2, p=1):
    """Fallback NHWC im2col; rows (n, h_out, w_out), cols (kh, kw, c)."""
    n, h, w, c = x_nhwc.shape
    ho = (h + 2 * p - k) // s + 1
    wo = (w + 2 * p - k) // s + 1
    xp = jnp.pad(x_nhwc, ((0, 0), (p, p), (p, p), (0, 0)))
    cols = []
    for i in range(k):
        for j in range(k):
            cols.append(xp[:, i:i + s * (ho - 1) + 1:s,
                              j:j + s * (wo - 1) + 1:s, :])
    patches = jnp.concatenate(cols, axis=-1)
    return patches.reshape(n * ho * wo, k * k * c), (n, ho, wo)


def conv_block(x_nhwc, w_q, w_m, bias, *, with_stats):
    n, h, w, _ = x_nhwc.shape
    ho = (h - 2) // 2 + 1
    wo = (w - 2) // 2 + 1
    fused_ok = (h % 2 == 0) and (w % 2 == 0) and (wo % 8 == 0)
    if fused_ok:
        out = conv_fused(quad_pack(x_nhwc), w_q, bias,
                         ho=ho, wo=wo, with_stats=with_stats)
    else:
        patches, _ = im2col_nhwc(x_nhwc)
        out = conv_im2col(patches, w_m, bias, with_stats=with_stats)
    return out, (ho, wo)


def _bn_scale_shift(stats, gamma, beta, count, eps=1e-5):
    """Two-phase BatchNorm finalize: per-tile (sum, sumsq) -> scale/shift."""
    sums = jnp.sum(stats[:, 0, :], axis=0)
    sqs = jnp.sum(stats[:, 1, :], axis=0)
    mean = sums / count
    var = jnp.maximum(sqs / count - mean * mean, 0.0)   # biased (training mode)
    inv = jax.lax.rsqrt(var + eps)
    scale = gamma * inv
    shift = beta - mean * scale
    return scale.reshape(1, -1), shift.reshape(1, -1)


def _bn_lrelu_apply(z, scale, shift, neg_slope=_NEG_SLOPE):
    """BN+LeakyReLU folded into the consumer's input-prep copy (XLA fuses this
    elementwise math into the quad-pack / im2col repack, so there is no
    standalone bn_lrelu pass over HBM)."""
    u = z.astype(jnp.float32) * scale + shift
    return jnp.where(u > 0, u, neg_slope * u).astype(jnp.bfloat16)


def init_params(key):
    ks = jax.random.split(key, 8)

    def conv_w(k, cout, cin):
        std = 1.0 / jnp.sqrt(cin * 16.0)
        return jax.random.normal(k, (cout, cin, 4, 4), jnp.float32) * std

    return dict(
        w1=conv_w(ks[0], 64, 3),
        b1=jax.random.normal(ks[1], (64,), jnp.float32) * 0.01,
        w2=conv_w(ks[2], 128, 64),
        b2=jax.random.normal(ks[3], (128,), jnp.float32) * 0.01,
        w3=conv_w(ks[4], 256, 128),
        b3=jax.random.normal(ks[5], (256,), jnp.float32) * 0.01,
        g2=jnp.ones((128,), jnp.float32), be2=jnp.zeros((128,), jnp.float32),
        g3=jnp.ones((256,), jnp.float32), be3=jnp.zeros((256,), jnp.float32),
        wfc=jax.random.normal(ks[6], (256, 1), jnp.float32) / 16.0,
        bfc=jax.random.normal(ks[7], (1,), jnp.float32) * 0.01,
    )


def prepare_params(params):
    """One-time repack (outside the jitted forward): bf16 weight matrices for
    both the fused quad path and the im2col fallback; layer-1 Cin padded."""
    def wmat(w):                                   # OIHW -> (kh*kw*cin, cout)
        cout = w.shape[0]
        return w.transpose(2, 3, 1, 0).reshape(-1, cout).astype(jnp.bfloat16)

    def wquad(w):                                  # OIHW -> (4, 4*cin, cout)
        cout, cin = w.shape[0], w.shape[1]
        wt = w.transpose(2, 3, 1, 0)               # (kh, kw, cin, cout)
        wt = wt.reshape(2, 2, 2, 2, cin, cout)     # (qh, rh, qw, rw, cin, cout)
        wt = wt.transpose(0, 2, 1, 3, 4, 5)        # (qh, qw, rh, rw, cin, cout)
        return wt.reshape(4, 4 * cin, cout).astype(jnp.bfloat16)

    w1 = jnp.pad(params["w1"],
                 ((0, 0), (0, _CIN_PAD - params["w1"].shape[1]), (0, 0), (0, 0)))
    return dict(
        w1q=wquad(w1), w1m=wmat(w1), b1=params["b1"].reshape(1, -1),
        w2q=wquad(params["w2"]), w2m=wmat(params["w2"]),
        b2=params["b2"].reshape(1, -1),
        w3q=wquad(params["w3"]), w3m=wmat(params["w3"]),
        b3=params["b3"].reshape(1, -1),
        g2=params["g2"], be2=params["be2"],
        g3=params["g3"], be3=params["be3"],
        wfc=params["wfc"].reshape(1, -1).astype(jnp.float32),
        bfc=params["bfc"].reshape(1, 1).astype(jnp.float32),
    )


def discriminator_forward(x_nchw, prep):
    # Single layout change at entry; NHWC + bf16 everywhere after.  Layer-1
    # input channels are zero-padded so K is lane-dense.
    x = jnp.transpose(x_nchw, (0, 2, 3, 1)).astype(jnp.bfloat16)
    x = jnp.pad(x, ((0, 0), (0, 0), (0, 0), (0, _CIN_PAD - x.shape[-1])))
    n = x.shape[0]

    # Layer 1: conv + bias + LeakyReLU (no BN).
    y1, (h1, w1) = conv_block(x, prep["w1q"], prep["w1m"], prep["b1"],
                              with_stats=False)
    y1 = y1.reshape(n, h1, w1, prep["b1"].shape[1])

    # Layer 2: conv + bias (+ per-tile batch stats).
    (z2, s2), (h2, w2) = conv_block(y1, prep["w2q"], prep["w2m"], prep["b2"],
                                    with_stats=True)
    sc2, sh2 = _bn_scale_shift(s2, prep["g2"], prep["be2"], float(n * h2 * w2))
    # BN + LeakyReLU folded into layer-3's input repack (no standalone pass).
    y2 = _bn_lrelu_apply(z2, sc2, sh2).reshape(n, h2, w2, prep["b2"].shape[1])

    # Layer 3: conv + bias (+ stats); its BN + LeakyReLU + pool + fc + sigmoid
    # are fused into the head kernel.
    (z3, s3), (h3, w3) = conv_block(y2, prep["w3q"], prep["w3m"], prep["b3"],
                                    with_stats=True)
    sc3, sh3 = _bn_scale_shift(s3, prep["g3"], prep["be3"], float(n * h3 * w3))
    z3 = z3.reshape(n, h3 * w3, prep["b3"].shape[1])
    return head(z3, sc3, sh3, prep["wfc"], prep["bfc"])


# ---------------------------------------------------------------------------
# Pure-JAX f32 reference (same math, via lax.conv) for a sanity check
# ---------------------------------------------------------------------------
def reference_forward(x, params):
    def conv(x, w, b):
        y = jax.lax.conv_general_dilated(
            x, w, window_strides=(2, 2), padding=((1, 1), (1, 1)),
            dimension_numbers=("NCHW", "OIHW", "NCHW"))
        return y + b.reshape(1, -1, 1, 1)

    def bn(y, g, be):
        mean = y.mean(axis=(0, 2, 3), keepdims=True)
        var = ((y - mean) ** 2).mean(axis=(0, 2, 3), keepdims=True)
        return ((y - mean) * jax.lax.rsqrt(var + 1e-5)
                * g.reshape(1, -1, 1, 1) + be.reshape(1, -1, 1, 1))

    lrelu = lambda y: jnp.where(y > 0, y, _NEG_SLOPE * y)
    y = lrelu(conv(x, params["w1"], params["b1"]))
    y = lrelu(bn(conv(y, params["w2"], params["b2"]), params["g2"], params["be2"]))
    y = lrelu(bn(conv(y, params["w3"], params["b3"]), params["g3"], params["be3"]))
    pooled = y.mean(axis=(2, 3))
    return 1.0 / (1.0 + jnp.exp(-(pooled @ params["wfc"]
                                  + params["bfc"].reshape(1, 1))))


if __name__ == "__main__":
    key = jax.random.PRNGKey(0)
    pkey, xkey = jax.random.split(key)
    params = init_params(pkey)
    prep = prepare_params(params)                 # one-time weight repack
    # 32x32 input: layers 1-2 take the fused quad-pack path (Wo = 16, 8),
    # layer 3 (Wo = 4) exercises the im2col fallback path.
    x = jax.random.normal(xkey, (2, 3, 32, 32), jnp.float32)

    fwd = jax.jit(discriminator_forward)
    out = jax.block_until_ready(fwd(x, prep))
    assert out.shape == (2, 1)

    ref = reference_forward(x, params)
    err = float(jnp.max(jnp.abs(out - ref)))
    assert err < 3e-2, f"mismatch vs reference: {err}"   # bf16 operand tolerance

    print("KERNEL_OK")
</pallas_src>

<mosaic_0001>
module attributes {stable_mosaic.version = 11 : i64} {
  func.func @_qconv_lrelu_kernel(%arg0: i32, %arg1: i32, %arg2: memref<1x16x17x32xbf16, #tpu.memory_space<vmem>>, %arg3: memref<1x1x17x32xbf16, #tpu.memory_space<vmem>>, %arg4: memref<4x32x64xbf16, #tpu.memory_space<vmem>>, %arg5: memref<1x64xf32, #tpu.memory_space<vmem>>, %arg6: memref<256x64xbf16, #tpu.memory_space<vmem>>) attributes {dimension_semantics = [#tpu.dimension_semantics<parallel>, #tpu.dimension_semantics<parallel>], iteration_bounds = array<i64: 2, 1>, scalar_prefetch = 0 : i64, scratch_operands = 0 : i64, tpu.core_type = #tpu.core_type<tc>, window_params = [{transform_indices = @transform_0, window_bounds = array<i64: 1, 16, 17, 32>}, {transform_indices = @transform_1, window_bounds = array<i64: 1, 1, 17, 32>}, {pipeline_mode = #tpu.pipeline_mode<synchronous>, transform_indices = @transform_2, window_bounds = array<i64: 4, 32, 64>}, {pipeline_mode = #tpu.pipeline_mode<synchronous>, transform_indices = @transform_3, window_bounds = array<i64: 1, 64>}, {transform_indices = @transform_4, window_bounds = array<i64: 256, 64>}]} {
    %c0 = arith.constant 0 : index
    %c0_0 = arith.constant 0 : index
    %c0_1 = arith.constant 0 : index
    %c0_2 = arith.constant 0 : index
    %0 = vector.load %arg2[%c0, %c0_0, %c0_1, %c0_2] : memref<1x16x17x32xbf16, #tpu.memory_space<vmem>>, vector<1x16x17x32xbf16>
    %1 = vector.shape_cast %0 : vector<1x16x17x32xbf16> to vector<16x17x32xbf16>
    %c0_3 = arith.constant 0 : index
    %c0_4 = arith.constant 0 : index
    %c0_5 = arith.constant 0 : index
    %c0_6 = arith.constant 0 : index
    %2 = vector.load %arg3[%c0_3, %c0_4, %c0_5, %c0_6] : memref<1x1x17x32xbf16, #tpu.memory_space<vmem>>, vector<1x1x17x32xbf16>
    %3 = vector.shape_cast %2 : vector<1x1x17x32xbf16> to vector<1x17x32xbf16>
    %4 = vector.extract_strided_slice %1 {offsets = [1, 0, 0], sizes = [15, 17, 32], strides = [1, 1, 1]} : vector<16x17x32xbf16> to vector<15x17x32xbf16>
    %5 = tpu.concatenate %4, %3 in 0 : vector<15x17x32xbf16>, vector<1x17x32xbf16> -> vector<16x17x32xbf16>
    %6 = vector.extract_strided_slice %1 {offsets = [0, 0, 0], sizes = [16, 16, 32], strides = [1, 1, 1]} : vector<16x17x32xbf16> to vector<16x16x32xbf16>
    %7 = vector.shape_cast %6 : vector<16x16x32xbf16> to vector<256x32xbf16>
    %c0_7 = arith.constant 0 : index
    %c0_8 = arith.constant 0 : index
    %c0_9 = arith.constant 0 : index
    %8 = vector.load %arg4[%c0_7, %c0_8, %c0_9] : memref<4x32x64xbf16, #tpu.memory_space<vmem>>, vector<1x32x64xbf16>
    %9 = vector.shape_cast %8 : vector<1x32x64xbf16> to vector<32x64xbf16>
    %cst = arith.constant dense<0.000000e+00> : vector<256x64xf32>
    %10 = tpu.matmul %7, %9, %cst {dimension_numbers = #tpu.dot_dimension_numbers<[1], [0], [0], [1], [0, 0, 1, 1], [], []>} : vector<256x32xbf16>, vector<32x64xbf16>, vector<256x64xf32> -> vector<256x64xf32>
    %11 = vector.extract_strided_slice %1 {offsets = [0, 1, 0], sizes = [16, 16, 32], strides = [1, 1, 1]} : vector<16x17x32xbf16> to vector<16x16x32xbf16>
    %12 = vector.shape_cast %11 : vector<16x16x32xbf16> to vector<256x32xbf16>
    %c1 = arith.constant 1 : index
    %c0_10 = arith.constant 0 : index
    %c0_11 = arith.constant 0 : index
    %13 = vector.load %arg4[%c1, %c0_10, %c0_11] : memref<4x32x64xbf16, #tpu.memory_space<vmem>>, vector<1x32x64xbf16>
    %14 = vector.shape_cast %13 : vector<1x32x64xbf16> to vector<32x64xbf16>
    %cst_12 = arith.constant dense<0.000000e+00> : vector<256x64xf32>
    %15 = tpu.matmul %12, %14, %cst_12 {dimension_numbers = #tpu.dot_dimension_numbers<[1], [0], [0], [1], [0, 0, 1, 1], [], []>} : vector<256x32xbf16>, vector<32x64xbf16>, vector<256x64xf32> -> vector<256x64xf32>
    %16 = arith.addf %10, %15 : vector<256x64xf32>
    %17 = vector.extract_strided_slice %5 {offsets = [0, 0, 0], sizes = [16, 16, 32], strides = [1, 1, 1]} : vector<16x17x32xbf16> to vector<16x16x32xbf16>
    %18 = vector.shape_cast %17 : vector<16x16x32xbf16> to vector<256x32xbf16>
    %c2 = arith.constant 2 : index
    %c0_13 = arith.constant 0 : index
    %c0_14 = arith.constant 0 : index
    %19 = vector.load %arg4[%c2, %c0_13, %c0_14] : memref<4x32x64xbf16, #tpu.memory_space<vmem>>, vector<1x32x64xbf16>
    %20 = vector.shape_cast %19 : vector<1x32x64xbf16> to vector<32x64xbf16>
    %cst_15 = arith.constant dense<0.000000e+00> : vector<256x64xf32>
    %21 = tpu.matmul %18, %20, %cst_15 {dimension_numbers = #tpu.dot_dimension_numbers<[1], [0], [0], [1], [0, 0, 1, 1], [], []>} : vector<256x32xbf16>, vector<32x64xbf16>, vector<256x64xf32> -> vector<256x64xf32>
    %22 = arith.addf %16, %21 : vector<256x64xf32>
    %23 = vector.extract_strided_slice %5 {offsets = [0, 1, 0], sizes = [16, 16, 32], strides = [1, 1, 1]} : vector<16x17x32xbf16> to vector<16x16x32xbf16>
    %24 = vector.shape_cast %23 : vector<16x16x32xbf16> to vector<256x32xbf16>
    %c3 = arith.constant 3 : index
    %c0_16 = arith.constant 0 : index
    %c0_17 = arith.constant 0 : index
    %25 = vector.load %arg4[%c3, %c0_16, %c0_17] : memref<4x32x64xbf16, #tpu.memory_space<vmem>>, vector<1x32x64xbf16>
    %26 = vector.shape_cast %25 : vector<1x32x64xbf16> to vector<32x64xbf16>
    %cst_18 = arith.constant dense<0.000000e+00> : vector<256x64xf32>
    %27 = tpu.matmul %24, %26, %cst_18 {dimension_numbers = #tpu.dot_dimension_numbers<[1], [0], [0], [1], [0, 0, 1, 1], [], []>} : vector<256x32xbf16>, vector<32x64xbf16>, vector<256x64xf32> -> vector<256x64xf32>
    %28 = arith.addf %22, %27 : vector<256x64xf32>
    %c0_19 = arith.constant 0 : index
    %c0_20 = arith.constant 0 : index
    %29 = vector.load %arg5[%c0_19, %c0_20] : memref<1x64xf32, #tpu.memory_space<vmem>>, vector<1x64xf32>
    %30 = vector.broadcast %29 : vector<1x64xf32> to vector<256x64xf32>
    %31 = arith.addf %28, %30 : vector<256x64xf32>
    %cst_21 = arith.constant 0.000000e+00 : f32
    %32 = vector.broadcast %cst_21 : f32 to vector<256x64xf32>
    %33 = arith.cmpf ogt, %31, %32 : vector<256x64xf32>
    %cst_22 = arith.constant 2.000000e-01 : f32
    %34 = vector.broadcast %cst_22 : f32 to vector<256x64xf32>
    %35 = arith.mulf %34, %31 : vector<256x64xf32>
    %36 = arith.select %33, %31, %35 : vector<256x64xi1>, vector<256x64xf32>
    %37 = arith.truncf %36 : vector<256x64xf32> to vector<256x64xbf16>
    %c0_23 = arith.constant 0 : index
    %c0_24 = arith.constant 0 : index
    %38 = vector.load %arg6[%c0_23, %c0_24] : memref<256x64xbf16, #tpu.memory_space<vmem>>, vector<256x64xbf16>
    tpu.vector_store %arg6[%c0_23, %c0_24], %37 {strides = array<i32>} : memref<256x64xbf16, #tpu.memory_space<vmem>>, vector<256x64xbf16>,
    return
  }
  func.func @transform_0(%arg0: i32, %arg1: i32) -> (i32, i32, i32, i32) {
    %c0_i32 = arith.constant 0 : i32
    %c0_i32_0 = arith.constant 0 : i32
    %c0_i32_1 = arith.constant 0 : i32
    return %arg0, %arg1, %c0_i32, %c0_i32_0 : i32, i32, i32, i32
  }
  func.func @transform_1(%arg0: i32, %arg1: i32) -> (i32, i32, i32, i32) {
    %c1_i32 = arith.constant 1 : i32
    %0 = arith.addi %arg1, %c1_i32 : i32
    %c16_i32 = arith.constant 16 : i32
    %1 = arith.muli %0, %c16_i32 : i32
    %c0_i32 = arith.constant 0 : i32
    %c0_i32_0 = arith.constant 0 : i32
    %c0_i32_1 = arith.constant 0 : i32
    return %arg0, %1, %c0_i32, %c0_i32_0 : i32, i32, i32, i32
  }
  func.func @transform_2(%arg0: i32, %arg1: i32) -> (i32, i32, i32) {
    %c0_i32 = arith.constant 0 : i32
    %c0_i32_0 = arith.constant 0 : i32
    %c0_i32_1 = arith.constant 0 : i32
    %c0_i32_2 = arith.constant 0 : i32
    return %c0_i32, %c0_i32_0, %c0_i32_1 : i32, i32, i32
  }
  func.func @transform_3(%arg0: i32, %arg1: i32) -> (i32, i32) {
    %c0_i32 = arith.constant 0 : i32
    %c0_i32_0 = arith.constant 0 : i32
    %c0_i32_1 = arith.constant 0 : i32
    return %c0_i32, %c0_i32_0 : i32, i32
  }
  func.func @transform_4(%arg0: i32, %arg1: i32) -> (i32, i32) {
    %c1_i32 = arith.constant 1 : i32
    %0 = arith.muli %arg0, %c1_i32 : i32
    %1 = arith.addi %0, %arg1 : i32
    %c0_i32 = arith.constant 0 : i32
    %c0_i32_0 = arith.constant 0 : i32
    return %1, %c0_i32 : i32, i32
  }
}

module attributes {stable_mosaic.version = 11 : i64} {
  func.func @_qconv_stats_kernel(%arg0: i32, %arg1: i32, %arg2: memref<1x8x9x256xbf16, #tpu.memory_space<vmem>>, %arg3: memref<1x1x9x256xbf16, #tpu.memory_space<vmem>>, %arg4: memref<4x256x128xbf16, #tpu.memory_space<vmem>>, %arg5: memref<1x128xf32, #tpu.memory_space<vmem>>, %arg6: memref<64x128xbf16, #tpu.memory_space<vmem>>, %arg7: memref<1x2x128xf32, #tpu.memory_space<vmem>>) attributes {dimension_semantics = [#tpu.dimension_semantics<parallel>, #tpu.dimension_semantics<parallel>], iteration_bounds = array<i64: 2, 1>, scalar_prefetch = 0 : i64, scratch_operands = 0 : i64, tpu.core_type = #tpu.core_type<tc>, window_params = [{transform_indices = @transform_0, window_bounds = array<i64: 1, 8, 9, 256>}, {transform_indices = @transform_1, window_bounds = array<i64: 1, 1, 9, 256>}, {pipeline_mode = #tpu.pipeline_mode<synchronous>, transform_indices = @transform_2, window_bounds = array<i64: 4, 256, 128>}, {pipeline_mode = #tpu.pipeline_mode<synchronous>, transform_indices = @transform_3, window_bounds = array<i64: 1, 128>}, {transform_indices = @transform_4, window_bounds = array<i64: 64, 128>}, {transform_indices = @transform_5, window_bounds = array<i64: 1, 2, 128>}]} {
    %c0 = arith.constant 0 : index
    %c0_0 = arith.constant 0 : index
    %c0_1 = arith.constant 0 : index
    %c0_2 = arith.constant 0 : index
    %0 = vector.load %arg2[%c0, %c0_0, %c0_1, %c0_2] : memref<1x8x9x256xbf16, #tpu.memory_space<vmem>>, vector<1x8x9x256xbf16>
    %1 = vector.shape_cast %0 : vector<1x8x9x256xbf16> to vector<8x9x256xbf16>
    %c0_3 = arith.constant 0 : index
    %c0_4 = arith.constant 0 : index
    %c0_5 = arith.constant 0 : index
    %c0_6 = arith.constant 0 : index
    %2 = vector.load %arg3[%c0_3, %c0_4, %c0_5, %c0_6] : memref<1x1x9x256xbf16, #tpu.memory_space<vmem>>, vector<1x1x9x256xbf16>
    %3 = vector.shape_cast %2 : vector<1x1x9x256xbf16> to vector<1x9x256xbf16>
    %4 = vector.extract_strided_slice %1 {offsets = [1, 0, 0], sizes = [7, 9, 256], strides = [1, 1, 1]} : vector<8x9x256xbf16> to vector<7x9x256xbf16>
    %5 = tpu.concatenate %4, %3 in 0 : vector<7x9x256xbf16>, vector<1x9x256xbf16> -> vector<8x9x256xbf16>
    %6 = vector.extract_strided_slice %1 {offsets = [0, 0, 0], sizes = [8, 8, 256], strides = [1, 1, 1]} : vector<8x9x256xbf16> to vector<8x8x256xbf16>
    %7 = vector.shape_cast %6 : vector<8x8x256xbf16> to vector<64x256xbf16>
    %c0_7 = arith.constant 0 : index
    %c0_8 = arith.constant 0 : index
    %c0_9 = arith.constant 0 : index
    %8 = vector.load %arg4[%c0_7, %c0_8, %c0_9] : memref<4x256x128xbf16, #tpu.memory_space<vmem>>, vector<1x256x128xbf16>
    %9 = vector.shape_cast %8 : vector<1x256x128xbf16> to vector<256x128xbf16>
    %cst = arith.constant dense<0.000000e+00> : vector<64x128xf32>
    %10 = tpu.matmul %7, %9, %cst {dimension_numbers = #tpu.dot_dimension_numbers<[1], [0], [0], [1], [0, 0, 1, 1], [], []>} : vector<64x256xbf16>, vector<256x128xbf16>, vector<64x128xf32> -> vector<64x128xf32>
    %11 = vector.extract_strided_slice %1 {offsets = [0, 1, 0], sizes = [8, 8, 256], strides = [1, 1, 1]} : vector<8x9x256xbf16> to vector<8x8x256xbf16>
    %12 = vector.shape_cast %11 : vector<8x8x256xbf16> to vector<64x256xbf16>
    %c1 = arith.constant 1 : index
    %c0_10 = arith.constant 0 : index
    %c0_11 = arith.constant 0 : index
    %13 = vector.load %arg4[%c1, %c0_10, %c0_11] : memref<4x256x128xbf16, #tpu.memory_space<vmem>>, vector<1x256x128xbf16>
    %14 = vector.shape_cast %13 : vector<1x256x128xbf16> to vector<256x128xbf16>
    %cst_12 = arith.constant dense<0.000000e+00> : vector<64x128xf32>
    %15 = tpu.matmul %12, %14, %cst_12 {dimension_numbers = #tpu.dot_dimension_numbers<[1], [0], [0], [1], [0, 0, 1, 1], [], []>} : vector<64x256xbf16>, vector<256x128xbf16>, vector<64x128xf32> -> vector<64x128xf32>
    %16 = arith.addf %10, %15 : vector<64x128xf32>
    %17 = vector.extract_strided_slice %5 {offsets = [0, 0, 0], sizes = [8, 8, 256], strides = [1, 1, 1]} : vector<8x9x256xbf16> to vector<8x8x256xbf16>
    %18 = vector.shape_cast %17 : vector<8x8x256xbf16> to vector<64x256xbf16>
    %c2 = arith.constant 2 : index
    %c0_13 = arith.constant 0 : index
    %c0_14 = arith.constant 0 : index
    %19 = vector.load %arg4[%c2, %c0_13, %c0_14] : memref<4x256x128xbf16, #tpu.memory_space<vmem>>, vector<1x256x128xbf16>
    %20 = vector.shape_cast %19 : vector<1x256x128xbf16> to vector<256x128xbf16>
    %cst_15 = arith.constant dense<0.000000e+00> : vector<64x128xf32>
    %21 = tpu.matmul %18, %20, %cst_15 {dimension_numbers = #tpu.dot_dimension_numbers<[1], [0], [0], [1], [0, 0, 1, 1], [], []>} : vector<64x256xbf16>, vector<256x128xbf16>, vector<64x128xf32> -> vector<64x128xf32>
    %22 = arith.addf %16, %21 : vector<64x128xf32>
    %23 = vector.extract_strided_slice %5 {offsets = [0, 1, 0], sizes = [8, 8, 256], strides = [1, 1, 1]} : vector<8x9x256xbf16> to vector<8x8x256xbf16>
    %24 = vector.shape_cast %23 : vector<8x8x256xbf16> to vector<64x256xbf16>
    %c3 = arith.constant 3 : index
    %c0_16 = arith.constant 0 : index
    %c0_17 = arith.constant 0 : index
    %25 = vector.load %arg4[%c3, %c0_16, %c0_17] : memref<4x256x128xbf16, #tpu.memory_space<vmem>>, vector<1x256x128xbf16>
    %26 = vector.shape_cast %25 : vector<1x256x128xbf16> to vector<256x128xbf16>
    %cst_18 = arith.constant dense<0.000000e+00> : vector<64x128xf32>
    %27 = tpu.matmul %24, %26, %cst_18 {dimension_numbers = #tpu.dot_dimension_numbers<[1], [0], [0], [1], [0, 0, 1, 1], [], []>} : vector<64x256xbf16>, vector<256x128xbf16>, vector<64x128xf32> -> vector<64x128xf32>
    %28 = arith.addf %22, %27 : vector<64x128xf32>
    %c0_19 = arith.constant 0 : index
    %c0_20 = arith.constant 0 : index
    %29 = vector.load %arg5[%c0_19, %c0_20] : memref<1x128xf32, #tpu.memory_space<vmem>>, vector<1x128xf32>
    %30 = vector.broadcast %29 : vector<1x128xf32> to vector<64x128xf32>
    %31 = arith.addf %28, %30 : vector<64x128xf32>
    %32 = arith.truncf %31 : vector<64x128xf32> to vector<64x128xbf16>
    %c0_21 = arith.constant 0 : index
    %c0_22 = arith.constant 0 : index
    %33 = vector.load %arg6[%c0_21, %c0_22] : memref<64x128xbf16, #tpu.memory_space<vmem>>, vector<64x128xbf16>
    tpu.vector_store %arg6[%c0_21, %c0_22], %32 {strides = array<i32>} : memref<64x128xbf16, #tpu.memory_space<vmem>>, vector<64x128xbf16>,
    %cst_23 = arith.constant dense<0.000000e+00> : vector<128xf32>
    %34 = vector.multi_reduction <add>, %31, %cst_23 [0] : vector<64x128xf32> to vector<128xf32>
    %35 = vector.shape_cast %34 : vector<128xf32> to vector<1x128xf32>
    %36 = arith.mulf %31, %31 : vector<64x128xf32>
    %cst_24 = arith.constant dense<0.000000e+00> : vector<128xf32>
    %37 = vector.multi_reduction <add>, %36, %cst_24 [0] : vector<64x128xf32> to vector<128xf32>
    %38 = vector.shape_cast %37 : vector<128xf32> to vector<1x128xf32>
    %39 = tpu.concatenate %35, %38 in 0 : vector<1x128xf32>, vector<1x128xf32> -> vector<2x128xf32>
    %40 = vector.shape_cast %39 : vector<2x128xf32> to vector<1x2x128xf32>
    %c0_25 = arith.constant 0 : index
    %c0_26 = arith.constant 0 : index
    %c0_27 = arith.constant 0 : index
    %41 = vector.load %arg7[%c0_25, %c0_26, %c0_27] : memref<1x2x128xf32, #tpu.memory_space<vmem>>, vector<1x2x128xf32>
    tpu.vector_store %arg7[%c0_25, %c0_26, %c0_27], %40 {strides = array<i32>} : memref<1x2x128xf32, #tpu.memory_space<vmem>>, vector<1x2x128xf32>,
    return
  }
  func.func @transform_0(%arg0: i32, %arg1: i32) -> (i32, i32, i32, i32) {
    %c0_i32 = arith.constant 0 : i32
    %c0_i32_0 = arith.constant 0 : i32
    %c0_i32_1 = arith.constant 0 : i32
    return %arg0, %arg1, %c0_i32, %c0_i32_0 : i32, i32, i32, i32
  }
  func.func @transform_1(%arg0: i32, %arg1: i32) -> (i32, i32, i32, i32) {
    %c1_i32 = arith.constant 1 : i32
    %0 = arith.addi %arg1, %c1_i32 : i32
    %c8_i32 = arith.constant 8 : i32
    %1 = arith.muli %0, %c8_i32 : i32
    %c0_i32 = arith.constant 0 : i32
    %c0_i32_0 = arith.constant 0 : i32
    %c0_i32_1 = arith.constant 0 : i32
    return %arg0, %1, %c0_i32, %c0_i32_0 : i32, i32, i32, i32
  }
  func.func @transform_2(%arg0: i32, %arg1: i32) -> (i32, i32, i32) {
    %c0_i32 = arith.constant 0 : i32
    %c0_i32_0 = arith.constant 0 : i32
    %c0_i32_1 = arith.constant 0 : i32
    %c0_i32_2 = arith.constant 0 : i32
    return %c0_i32, %c0_i32_0, %c0_i32_1 : i32, i32, i32
  }
  func.func @transform_3(%arg0: i32, %arg1: i32) -> (i32, i32) {
    %c0_i32 = arith.constant 0 : i32
    %c0_i32_0 = arith.constant 0 : i32
    %c0_i32_1 = arith.constant 0 : i32
    return %c0_i32, %c0_i32_0 : i32, i32
  }
  func.func @transform_4(%arg0: i32, %arg1: i32) -> (i32, i32) {
    %c1_i32 = arith.constant 1 : i32
    %0 = arith.muli %arg0, %c1_i32 : i32
    %1 = arith.addi %0, %arg1 : i32
    %c0_i32 = arith.constant 0 : i32
    %c0_i32_0 = arith.constant 0 : i32
    return %1, %c0_i32 : i32, i32
  }
  func.func @transform_5(%arg0: i32, %arg1: i32) -> (i32, i32, i32) {
    %c1_i32 = arith.constant 1 : i32
    %0 = arith.muli %arg0, %c1_i32 : i32
    %1 = arith.addi %0, %arg1 : i32
    %c0_i32 = arith.constant 0 : i32
    %c0_i32_0 = arith.constant 0 : i32
    %c0_i32_1 = arith.constant 0 : i32
    return %1, %c0_i32, %c0_i32_0 : i32, i32, i32
  }
}

module attributes {stable_mosaic.version = 11 : i64} {
  func.func @_head_kernel(%arg0: i32, %arg1: memref<2x16x256xbf16, #tpu.memory_space<vmem>>, %arg2: memref<1x256xf32, #tpu.memory_space<vmem>>, %arg3: memref<1x256xf32, #tpu.memory_space<vmem>>, %arg4: memref<1x256xf32, #tpu.memory_space<vmem>>, %arg5: memref<1x1xf32, #tpu.memory_space<smem>>, %arg6: memref<2x1xf32, #tpu.memory_space<vmem>>) attributes {dimension_semantics = [#tpu.dimension_semantics<arbitrary>], iteration_bounds = array<i64: 1>, scalar_prefetch = 0 : i64, scratch_operands = 0 : i64, tpu.core_type = #tpu.core_type<tc>, window_params = [{pipeline_mode = #tpu.pipeline_mode<synchronous>, transform_indices = @transform_0, window_bounds = array<i64: 2, 16, 256>}, {pipeline_mode = #tpu.pipeline_mode<synchronous>, transform_indices = @transform_1, window_bounds = array<i64: 1, 256>}, {pipeline_mode = #tpu.pipeline_mode<synchronous>, transform_indices = @transform_2, window_bounds = array<i64: 1, 256>}, {pipeline_mode = #tpu.pipeline_mode<synchronous>, transform_indices = @transform_3, window_bounds = array<i64: 1, 256>}, {transform_indices = @transform_4, window_bounds = array<i64: 1, 1>}, {pipeline_mode = #tpu.pipeline_mode<synchronous>, transform_indices = @transform_5, window_bounds = array<i64: 2, 1>}]} {
    %c0 = arith.constant 0 : index
    %c0_0 = arith.constant 0 : index
    %0 = vector.load %arg2[%c0, %c0_0] : memref<1x256xf32, #tpu.memory_space<vmem>>, vector<1x256xf32>
    %c0_1 = arith.constant 0 : index
    %c0_2 = arith.constant 0 : index
    %1 = vector.load %arg3[%c0_1, %c0_2] : memref<1x256xf32, #tpu.memory_space<vmem>>, vector<1x256xf32>
    %c0_3 = arith.constant 0 : index
    %c0_4 = arith.constant 0 : index
    %2 = vector.load %arg4[%c0_3, %c0_4] : memref<1x256xf32, #tpu.memory_space<vmem>>, vector<1x256xf32>
    %c0_5 = arith.constant 0 : index
    %c0_6 = arith.constant 0 : index
    %3 = memref.load %arg5[%c0_5, %c0_6] : memref<1x1xf32, #tpu.memory_space<smem>>
    %c0_7 = arith.constant 0 : index
    %c0_8 = arith.constant 0 : index
    %c0_9 = arith.constant 0 : index
    %4 = vector.load %arg1[%c0_7, %c0_8, %c0_9] : memref<2x16x256xbf16, #tpu.memory_space<vmem>>, vector<1x16x256xbf16>
    %5 = vector.shape_cast %4 : vector<1x16x256xbf16> to vector<16x256xbf16>
    %6 = arith.extf %5 : vector<16x256xbf16> to vector<16x256xf32>
    %7 = vector.broadcast %0 : vector<1x256xf32> to vector<16x256xf32>
    %8 = arith.mulf %6, %7 : vector<16x256xf32>
    %9 = vector.broadcast %1 : vector<1x256xf32> to vector<16x256xf32>
    %10 = arith.addf %8, %9 : vector<16x256xf32>
    %cst = arith.constant 0.000000e+00 : f32
    %11 = vector.broadcast %cst : f32 to vector<16x256xf32>
    %12 = arith.cmpf ogt, %10, %11 : vector<16x256xf32>
    %cst_10 = arith.constant 2.000000e-01 : f32
    %13 = vector.broadcast %cst_10 : f32 to vector<16x256xf32>
    %14 = arith.mulf %13, %10 : vector<16x256xf32>
    %15 = arith.select %12, %10, %14 : vector<16x256xi1>, vector<16x256xf32>
    %cst_11 = arith.constant dense<0.000000e+00> : vector<256xf32>
    %16 = vector.multi_reduction <add>, %15, %cst_11 [0] : vector<16x256xf32> to vector<256xf32>
    %17 = vector.shape_cast %16 : vector<256xf32> to vector<1x256xf32>
    %cst_12 = arith.constant 6.250000e-02 : f32
    %18 = vector.broadcast %cst_12 : f32 to vector<1x256xf32>
    %19 = arith.mulf %17, %18 : vector<1x256xf32>
    %20 = arith.mulf %19, %2 : vector<1x256xf32>
    %cst_13 = arith.constant dense<0.000000e+00> : vector<1xf32>
    %21 = vector.multi_reduction <add>, %20, %cst_13 [1] : vector<1x256xf32> to vector<1xf32>
    %22 = vector.shape_cast %21 : vector<1xf32> to vector<1x1xf32>
    %23 = vector.broadcast %3 : f32 to vector<1x1xf32>
    %24 = arith.addf %22, %23 : vector<1x1xf32>
    %cst_14 = arith.constant 0.000000e+00 : f32
    %25 = vector.broadcast %cst_14 : f32 to vector<1x1xf32>
    %26 = arith.subf %25, %24 : vector<1x1xf32>
    %27 = math.exp %26 : vector<1x1xf32>
    %cst_15 = arith.constant 1.000000e+00 : f32
    %28 = vector.broadcast %cst_15 : f32 to vector<1x1xf32>
    %29 = arith.addf %28, %27 : vector<1x1xf32>
    %cst_16 = arith.constant 1.000000e+00 : f32
    %30 = vector.broadcast %cst_16 : f32 to vector<1x1xf32>
    %31 = arith.divf %30, %29 : vector<1x1xf32>
    %c1 = arith.constant 1 : index
    %c0_17 = arith.constant 0 : index
    %c0_18 = arith.constant 0 : index
    %32 = vector.load %arg1[%c1, %c0_17, %c0_18] : memref<2x16x256xbf16, #tpu.memory_space<vmem>>, vector<1x16x256xbf16>
    %33 = vector.shape_cast %32 : vector<1x16x256xbf16> to vector<16x256xbf16>
    %34 = arith.extf %33 : vector<16x256xbf16> to vector<16x256xf32>
    %35 = vector.broadcast %0 : vector<1x256xf32> to vector<16x256xf32>
    %36 = arith.mulf %34, %35 : vector<16x256xf32>
    %37 = vector.broadcast %1 : vector<1x256xf32> to vector<16x256xf32>
    %38 = arith.addf %36, %37 : vector<16x256xf32>
    %cst_19 = arith.constant 0.000000e+00 : f32
    %39 = vector.broadcast %cst_19 : f32 to vector<16x256xf32>
    %40 = arith.cmpf ogt, %38, %39 : vector<16x256xf32>
    %cst_20 = arith.constant 2.000000e-01 : f32
    %41 = vector.broadcast %cst_20 : f32 to vector<16x256xf32>
    %42 = arith.mulf %41, %38 : vector<16x256xf32>
    %43 = arith.select %40, %38, %42 : vector<16x256xi1>, vector<16x256xf32>
    %cst_21 = arith.constant dense<0.000000e+00> : vector<256xf32>
    %44 = vector.multi_reduction <add>, %43, %cst_21 [0] : vector<16x256xf32> to vector<256xf32>
    %45 = vector.shape_cast %44 : vector<256xf32> to vector<1x256xf32>
    %cst_22 = arith.constant 6.250000e-02 : f32
    %46 = vector.broadcast %cst_22 : f32 to vector<1x256xf32>
    %47 = arith.mulf %45, %46 : vector<1x256xf32>
    %48 = arith.mulf %47, %2 : vector<1x256xf32>
    %cst_23 = arith.constant dense<0.000000e+00> : vector<1xf32>
    %49 = vector.multi_reduction <add>, %48, %cst_23 [1] : vector<1x256xf32> to vector<1xf32>
    %50 = vector.shape_cast %49 : vector<1xf32> to vector<1x1xf32>
    %51 = vector.broadcast %3 : f32 to vector<1x1xf32>
    %52 = arith.addf %50, %51 : vector<1x1xf32>
    %cst_24 = arith.constant 0.000000e+00 : f32
    %53 = vector.broadcast %cst_24 : f32 to vector<1x1xf32>
    %54 = arith.subf %53, %52 : vector<1x1xf32>
    %55 = math.exp %54 : vector<1x1xf32>
    %cst_25 = arith.constant 1.000000e+00 : f32
    %56 = vector.broadcast %cst_25 : f32 to vector<1x1xf32>
    %57 = arith.addf %56, %55 : vector<1x1xf32>
    %cst_26 = arith.constant 1.000000e+00 : f32
    %58 = vector.broadcast %cst_26 : f32 to vector<1x1xf32>
    %59 = arith.divf %58, %57 : vector<1x1xf32>
    %60 = tpu.concatenate %31, %59 in 0 : vector<1x1xf32>, vector<1x1xf32> -> vector<2x1xf32>
    %c0_27 = arith.constant 0 : index
    %c0_28 = arith.constant 0 : index
    %61 = vector.load %arg6[%c0_27, %c0_28] : memref<2x1xf32, #tpu.memory_space<vmem>>, vector<2x1xf32>
    tpu.vector_store %arg6[%c0_27, %c0_28], %60 {strides = array<i32>} : memref<2x1xf32, #tpu.memory_space<vmem>>, vector<2x1xf32>,
    return
  }
  func.func @transform_0(%arg0: i32) -> (i32, i32, i32) {
    %c0_i32 = arith.constant 0 : i32
    %c0_i32_0 = arith.constant 0 : i32
    %c0_i32_1 = arith.constant 0 : i32
    %c0_i32_2 = arith.constant 0 : i32
    return %c0_i32, %c0_i32_0, %c0_i32_1 : i32, i32, i32
  }
  func.func @transform_1(%arg0: i32) -> (i32, i32) {
    %c0_i32 = arith.constant 0 : i32
    %c0_i32_0 = arith.constant 0 : i32
    %c0_i32_1 = arith.constant 0 : i32
    return %c0_i32, %c0_i32_0 : i32, i32
  }
  func.func @transform_2(%arg0: i32) -> (i32, i32) {
    %c0_i32 = arith.constant 0 : i32
    %c0_i32_0 = arith.constant 0 : i32
    %c0_i32_1 = arith.constant 0 : i32
    return %c0_i32, %c0_i32_0 : i32, i32
  }
  func.func @transform_3(%arg0: i32) -> (i32, i32) {
    %c0_i32 = arith.constant 0 : i32
    %c0_i32_0 = arith.constant 0 : i32
    %c0_i32_1 = arith.constant 0 : i32
    return %c0_i32, %c0_i32_0 : i32, i32
  }
  func.func @transform_4(%arg0: i32) -> (i32, i32) {
    %c0_i32 = arith.constant 0 : i32
    %c0_i32_0 = arith.constant 0 : i32
    %c0_i32_1 = arith.constant 0 : i32
    return %c0_i32, %c0_i32_0 : i32, i32
  }
  func.func @transform_5(%arg0: i32) -> (i32, i32) {
    %c0_i32 = arith.constant 0 : i32
    %c0_i32_0 = arith.constant 0 : i32
    %c0_i32_1 = arith.constant 0 : i32
    return %c0_i32, %c0_i32_0 : i32, i32
  }
}

module attributes {stable_mosaic.version = 11 : i64} {
  func.func @_conv_stats_kernel(%arg0: i32, %arg1: memref<32x2048xbf16, #tpu.memory_space<vmem>>, %arg2: memref<2048x256xbf16, #tpu.memory_space<vmem>>, %arg3: memref<1x256xf32, #tpu.memory_space<vmem>>, %arg4: memref<32x256xbf16, #tpu.memory_space<vmem>>, %arg5: memref<1x2x256xf32, #tpu.memory_space<vmem>>) attributes {dimension_semantics = [#tpu.dimension_semantics<parallel>], iteration_bounds = array<i64: 1>, scalar_prefetch = 0 : i64, scratch_operands = 0 : i64, tpu.core_type = #tpu.core_type<tc>, window_params = [{transform_indices = @transform_0, window_bounds = array<i64: 32, 2048>}, {pipeline_mode = #tpu.pipeline_mode<synchronous>, transform_indices = @transform_1, window_bounds = array<i64: 2048, 256>}, {pipeline_mode = #tpu.pipeline_mode<synchronous>, transform_indices = @transform_2, window_bounds = array<i64: 1, 256>}, {transform_indices = @transform_3, window_bounds = array<i64: 32, 256>}, {transform_indices = @transform_4, window_bounds = array<i64: 1, 2, 256>}]} {
    %c0 = arith.constant 0 : index
    %c0_0 = arith.constant 0 : index
    %0 = vector.load %arg1[%c0, %c0_0] : memref<32x2048xbf16, #tpu.memory_space<vmem>>, vector<32x2048xbf16>
    %c0_1 = arith.constant 0 : index
    %c0_2 = arith.constant 0 : index
    %1 = vector.load %arg2[%c0_1, %c0_2] : memref<2048x256xbf16, #tpu.memory_space<vmem>>, vector<2048x256xbf16>
    %cst = arith.constant dense<0.000000e+00> : vector<32x256xf32>
    %2 = tpu.matmul %0, %1, %cst {dimension_numbers = #tpu.dot_dimension_numbers<[1], [0], [0], [1], [0, 0, 1, 1], [], []>} : vector<32x2048xbf16>, vector<2048x256xbf16>, vector<32x256xf32> -> vector<32x256xf32>
    %c0_3 = arith.constant 0 : index
    %c0_4 = arith.constant 0 : index
    %3 = vector.load %arg3[%c0_3, %c0_4] : memref<1x256xf32, #tpu.memory_space<vmem>>, vector<1x256xf32>
    %4 = vector.broadcast %3 : vector<1x256xf32> to vector<32x256xf32>
    %5 = arith.addf %2, %4 : vector<32x256xf32>
    %6 = arith.truncf %5 : vector<32x256xf32> to vector<32x256xbf16>
    %c0_5 = arith.constant 0 : index
    %c0_6 = arith.constant 0 : index
    %7 = vector.load %arg4[%c0_5, %c0_6] : memref<32x256xbf16, #tpu.memory_space<vmem>>, vector<32x256xbf16>
    tpu.vector_store %arg4[%c0_5, %c0_6], %6 {strides = array<i32>} : memref<32x256xbf16, #tpu.memory_space<vmem>>, vector<32x256xbf16>,
    %c32_i32 = arith.constant 32 : i32
    %8 = arith.muli %arg0, %c32_i32 : i32
    %9 = tpu.iota {dimensions = array<i32: 0>} : vector<32x1xi32>
    %10 = vector.broadcast %8 : i32 to vector<32x1xi32>
    %11 = arith.addi %10, %9 : vector<32x1xi32>
    %c32_i32_7 = arith.constant 32 : i32
    %12 = vector.broadcast %c32_i32_7 : i32 to vector<32x1xi32>
    %13 = arith.cmpi slt, %11, %12 : vector<32x1xi32>
    %cst_8 = arith.constant 0.000000e+00 : f32
    %14 = vector.shape_cast %13 : vector<32x1xi1> to vector<32x1xi1>
    %15 = vector.broadcast %14 : vector<32x1xi1> to vector<32x256xi1>
    %16 = vector.broadcast %cst_8 : f32 to vector<32x256xf32>
    %17 = arith.select %15, %5, %16 : vector<32x256xi1>, vector<32x256xf32>
    %cst_9 = arith.constant dense<0.000000e+00> : vector<256xf32>
    %18 = vector.multi_reduction <add>, %17, %cst_9 [0] : vector<32x256xf32> to vector<256xf32>
    %19 = vector.shape_cast %18 : vector<256xf32> to vector<1x256xf32>
    %20 = arith.mulf %17, %17 : vector<32x256xf32>
    %cst_10 = arith.constant dense<0.000000e+00> : vector<256xf32>
    %21 = vector.multi_reduction <add>, %20, %cst_10 [0] : vector<32x256xf32> to vector<256xf32>
    %22 = vector.shape_cast %21 : vector<256xf32> to vector<1x256xf32>
    %23 = tpu.concatenate %19, %22 in 0 : vector<1x256xf32>, vector<1x256xf32> -> vector<2x256xf32>
    %24 = vector.shape_cast %23 : vector<2x256xf32> to vector<1x2x256xf32>
    %c0_11 = arith.constant 0 : index
    %c0_12 = arith.constant 0 : index
    %c0_13 = arith.constant 0 : index
    %25 = vector.load %arg5[%c0_11, %c0_12, %c0_13] : memref<1x2x256xf32, #tpu.memory_space<vmem>>, vector<1x2x256xf32>
    tpu.vector_store %arg5[%c0_11, %c0_12, %c0_13], %24 {strides = array<i32>} : memref<1x2x256xf32, #tpu.memory_space<vmem>>, vector<1x2x256xf32>,
    return
  }
  func.func @transform_0(%arg0: i32) -> (i32, i32) {
    %c0_i32 = arith.constant 0 : i32
    %c0_i32_0 = arith.constant 0 : i32
    return %arg0, %c0_i32 : i32, i32
  }
  func.func @transform_1(%arg0: i32) -> (i32, i32) {
    %c0_i32 = arith.constant 0 : i32
    %c0_i32_0 = arith.constant 0 : i32
    %c0_i32_1 = arith.constant 0 : i32
    return %c0_i32, %c0_i32_0 : i32, i32
  }
  func.func @transform_2(%arg0: i32) -> (i32, i32) {
    %c0_i32 = arith.constant 0 : i32
    %c0_i32_0 = arith.constant 0 : i32
    %c0_i32_1 = arith.constant 0 : i32
    return %c0_i32, %c0_i32_0 : i32, i32
  }
  func.func @transform_3(%arg0: i32) -> (i32, i32) {
    %c0_i32 = arith.constant 0 : i32
    %c0_i32_0 = arith.constant 0 : i32
    return %arg0, %c0_i32 : i32, i32
  }
  func.func @transform_4(%arg0: i32) -> (i32, i32, i32) {
    %c0_i32 = arith.constant 0 : i32
    %c0_i32_0 = arith.constant 0 : i32
    %c0_i32_1 = arith.constant 0 : i32
    return %arg0, %c0_i32, %c0_i32_0 : i32, i32, i32
  }
}

</mosaic_0001>

<llo_original>
// kernel: discriminator_forward.4
$region0: #{discriminator_forward.4}
  #allocation0 [shape = 'u32[]', space=smem, size = 0x4, offset = 0x4, fixed_abs, tag = 'smem constant byte address 0x4 - core index']
  #allocation1 [shape = 'u32[144,128]{1,0:T(1,128)}', space=vmem, size = 0x12000, scoped, tag = 'internal scratch']
  %s0 = inlined_call_operand.vmem [shape: bf16[2,17,17,32], index: 0, kind: input, shape index: {}, may-alias: {0,1}]
  %s1 = inlined_call_operand.vmem [shape: bf16[2,17,17,32], index: 1, kind: input, shape index: {}, may-alias: {0,1}]
  %s2 = inlined_call_operand.vmem [shape: bf16[4,32,64], index: 2, kind: input, shape index: {}]
  %s3 = inlined_call_operand.vmem [shape: f32[1,64], index: 3, kind: input, shape index: {}]
  %s4 = inlined_call_operand.vmem [shape: bf16[512,64], index: 4, kind: output, shape index: {}]
  %s5 = sld [smem:[#allocation0]]
  $region49: #{discriminator_forward.4} parent=0
    _
  %s7 = ssub.s32 1, %s5
  %s8 = scalar_select 0, %s7, %s5
  loop: start=0, step=1, limit=4
  $region2: #{discriminator_forward.4} parent=0 // loop_pre_header
    _
  $region3: #{discriminator_forward.4} parent=0 // loop_header
    %s10 = sphi 0, %s14
    %p11 = scmp.ge.s32.totalorder %s10, 4
    %s17 = sphi 0, %s29
    %s18 = sphi 0, %s25
    %s19 = sphi 0, %s17
    %s20 = sphi 0, %s18
    %s21 = sphi 0, %s19
    %s22 = sphi 0, %s20
    %s34 = sphi 0, %s36
    %s37 = sphi 0, %s34
    %s38 = sphi 0, %s37
    %s54 = sphi 0, %s38
    %s66 = sphi 0, %s68
    %s69 = sphi 0, %s66
    %s70 = sphi 0, %s69
    %s86 = sphi 0, %s70
    %s90 = sphi 0, %s90
    %s92 = sphi 0, %s90
    %s93 = sphi 0, %s92
    %s107 = sphi 0, %s93
    %s111 = sphi 0, %s111
    %s113 = sphi 0, %s111
    %s114 = sphi 0, %s113
    %s128 = sphi 0, %s114
    %s136 = sphi 0, %s138
    %s139 = sphi 0, %s136
    %s140 = sphi 0, %s139
    %s156 = sphi 0, %s140
  $region4: #{discriminator_forward.4} parent=0 // loop_header_branch
    %13 = sbr.rel (%p11) target = $region8
  $region5: #{discriminator_forward.4} parent=0 // loop_body
    %s15 = ssub.s32 %s10, 1
    %s16 = ssub.s32 %s10, 2
    %s23 = sadd.s32 1, %s18
    %p24 = scmp.ge.s32.totalorder %s23, 1
    %s25 = scalar_select %p24, 0, %s23
    %s26 = sadd.s32 1, %s17
    %s27 = scalar_select %p24, %s26, %s17
    %p28 = scmp.ge.s32.totalorder %s27, 2
    %s29 = scalar_select %p28, 0, %s27
    %s30 = ssub.s32 %s17, %s29
    %s31 = ssub.s32 %s18, %s25
    %s32 = sor.u32 %s30, %s31
    %p33 = scmp.eq.s32.totalorder %s32, 0
    %s35 = sadd.s32 %s34, 1
    %s36 = scalar_select %p33, %s34, %s35
    %p39 = pneg %p33
    %p40 = scmp.eq.s32.totalorder %s10, 1
    %p41 = por %p39, %p40
    %p42 = scmp.ne.s32.totalorder %s34, %s37
    %p43 = scmp.eq.s32.totalorder %s10, 0
    %p44 = por %p42, %p43
    %p45 = scmp.ne.s32.totalorder %s34, %s37
    %p46 = scmp.eq.s32.totalorder %s15, 1
    %p47 = por %p45, %p46
    %p48 = scmp.ne.s32.totalorder %s37, %s38
    %p49 = scmp.eq.s32.totalorder %s15, 0
    %p50 = por %p48, %p49
    %p51 = scmp.ne.s32.totalorder %s37, %s38
    %p52 = scmp.eq.s32.totalorder %s16, 1
    %p53 = por %p51, %p52
    %p55 = scmp.ne.s32.totalorder %s38, %s54
    %p56 = scmp.eq.s32.totalorder %s16, 0
    %p57 = por %p55, %p56
    %s58 = sadd.s32 %s18, 1
    %s59 = smul.u32 %s58, 16
    %s60 = sadd.s32 %s25, 1
    %s61 = smul.u32 %s60, 16
    %s62 = ssub.s32 %s17, %s29
    %s63 = ssub.s32 %s59, %s61
    %s64 = sor.u32 %s62, %s63
    %p65 = scmp.eq.s32.totalorder %s64, 0
    %s67 = sadd.s32 %s66, 1
    %s68 = scalar_select %p65, %s66, %s67
    %p71 = pneg %p65
    %p72 = scmp.eq.s32.totalorder %s10, 1
    %p73 = por %p71, %p72
    %p74 = scmp.ne.s32.totalorder %s66, %s69
    %p75 = scmp.eq.s32.totalorder %s10, 0
    %p76 = por %p74, %p75
    %p77 = scmp.ne.s32.totalorder %s66, %s69
    %p78 = scmp.eq.s32.totalorder %s15, 1
    %p79 = por %p77, %p78
    %p80 = scmp.ne.s32.totalorder %s69, %s70
    %p81 = scmp.eq.s32.totalorder %s15, 0
    %p82 = por %p80, %p81
    %p83 = scmp.ne.s32.totalorder %s69, %s70
    %p84 = scmp.eq.s32.totalorder %s16, 1
    %p85 = por %p83, %p84
    %p87 = scmp.ne.s32.totalorder %s70, %s86
    %p88 = scmp.eq.s32.totalorder %s16, 0
    %p89 = por %p87, %p88
    %s91 = sadd.s32 %s90, 1
    %p94 = scmp.eq.s32.totalorder %s10, 1
    %p95 = scmp.ne.s32.totalorder %s90, %s92
    %p96 = scmp.eq.s32.totalorder %s10, 0
    %p97 = por %p95, %p96
    %p98 = scmp.ne.s32.totalorder %s90, %s92
    %p99 = scmp.eq.s32.totalorder %s15, 1
    %p100 = por %p98, %p99
    %p101 = scmp.ne.s32.totalorder %s92, %s93
    %p102 = scmp.eq.s32.totalorder %s15, 0
    %p103 = por %p101, %p102
    %p104 = scmp.ne.s32.totalorder %s92, %s93
    %p105 = scmp.eq.s32.totalorder %s16, 1
    %p106 = por %p104, %p105
    %p108 = scmp.ne.s32.totalorder %s93, %s107
    %p109 = scmp.eq.s32.totalorder %s16, 0
    %p110 = por %p108, %p109
    %s112 = sadd.s32 %s111, 1
    %p115 = scmp.eq.s32.totalorder %s10, 1
    %p116 = scmp.ne.s32.totalorder %s111, %s113
    %p117 = scmp.eq.s32.totalorder %s10, 0
    %p118 = por %p116, %p117
    %p119 = scmp.ne.s32.totalorder %s111, %s113
    %p120 = scmp.eq.s32.totalorder %s15, 1
    %p121 = por %p119, %p120
    %p122 = scmp.ne.s32.totalorder %s113, %s114
    %p123 = scmp.eq.s32.totalorder %s15, 0
    %p124 = por %p122, %p123
    %p125 = scmp.ne.s32.totalorder %s113, %s114
    %p126 = scmp.eq.s32.totalorder %s16, 1
    %p127 = por %p125, %p126
    %p129 = scmp.ne.s32.totalorder %s114, %s128
    %p130 = scmp.eq.s32.totalorder %s16, 0
    %p131 = por %p129, %p130
    %s132 = sadd.s32 %s17, %s18
    %s133 = sadd.s32 %s29, %s25
    %s134 = ssub.s32 %s132, %s133
    %p135 = scmp.eq.s32.totalorder %s134, 0
    %s137 = sadd.s32 %s136, 1
    %s138 = scalar_select %p135, %s136, %s137
    %p141 = pneg %p135
    %p142 = scmp.eq.s32.totalorder %s10, 1
    %p143 = por %p141, %p142
    %p144 = scmp.ne.s32.totalorder %s136, %s139
    %p145 = scmp.eq.s32.totalorder %s10, 0
    %p146 = por %p144, %p145
    %p147 = scmp.ne.s32.totalorder %s136, %s139
    %p148 = scmp.eq.s32.totalorder %s15, 1
    %p149 = por %p147, %p148
    %p150 = scmp.ne.s32.totalorder %s139, %s140
    %p151 = scmp.eq.s32.totalorder %s15, 0
    %p152 = por %p150, %p151
    %p153 = scmp.ne.s32.totalorder %s139, %s140
    %p154 = scmp.eq.s32.totalorder %s16, 1
    %p155 = por %p153, %p154
    %p157 = scmp.ne.s32.totalorder %s140, %s156
    %p158 = scmp.eq.s32.totalorder %s16, 0
    %p159 = por %p157, %p158
    %p160 = scmp.le.s32.totalorder 1, %s10
    %p161 = scmp.lt.s32.totalorder %s10, 3
    %p162 = pnand %p160, %p161
    %p163 = pneg %p162
    // Predicated region
    $region9: #{discriminator_forward.4} parent=5 // pred_check
      _
    $region10: #{discriminator_forward.4} parent=5 // pred_check_branch
      %165 = sbr.rel (%p162) target = $region12
    $region11: #{discriminator_forward.4} parent=5 // pred_region
      %s166 = ssub.s32 %s10, 1
      // Predicated region
      $region13: #{discriminator_forward.4} parent=11 // pred_check
        %p167 = pneg %p103
      $region14: #{discriminator_forward.4} parent=11 // pred_check_branch
        %169 = sbr.rel (%p167) target = $region16
      $region15: #{discriminator_forward.4} parent=11 // pred_region
        _
      $region16: #{discriminator_forward.4} parent=11 // pred_fallthru
        _
      // Predicated region
      $region17: #{discriminator_forward.4} parent=11 // pred_check
        %p170 = pneg %p124
      $region18: #{discriminator_forward.4} parent=11 // pred_check_branch
        %172 = sbr.rel (%p170) target = $region20
      $region19: #{discriminator_forward.4} parent=11 // pred_region
        _
      $region20: #{discriminator_forward.4} parent=11 // pred_fallthru
        _
    $region12: #{discriminator_forward.4} parent=5 // pred_fallthru
      _
    %p173 = scmp.lt.s32.totalorder %s10, 2
    // Predicated region
    $region21: #{discriminator_forward.4} parent=5 // pred_check
      %p174 = pneg %p173
    $region22: #{discriminator_forward.4} parent=5 // pred_check_branch
      %176 = sbr.rel (%p174) target = $region24
    $region23: #{discriminator_forward.4} parent=5 // pred_region
      // Predicated region
      $region25: #{discriminator_forward.4} parent=23 // pred_check
        %p177 = pneg %p44
      $region26: #{discriminator_forward.4} parent=23 // pred_check_branch
        %179 = sbr.rel (%p177) target = $region28
      $region27: #{discriminator_forward.4} parent=23 // pred_region
        %s180 = smul.u32 16, %s18
        %s181 = ssub.s32 17, %s180
        %p182 = scmp.lt.s32.totalorder %s181, 16
        %s183 = scalar_select %p182, %s181, 16
        %s184 = smul.u32 64, %s183
        %s185 = smul.u32 %s184, 3
        %p186 = scmp.lt.s32.totalorder %s17, 1
        %s187 = scalar_select %p186, %s17, 1
        %p188 = scmp.lt.s32.totalorder %s180, 16
        %s189 = scalar_select %p188, %s180, 16
        %s190 = smul.addr %s189, 3
        %s191 = smul.addr %s187, 51
        %s192 = sadd.s32 %s190, %s191
        %s193 = smul.addr %s192, 4
        %s194 = scalar_lea.vmem %s0, %s193
        %s195 = smul.u32 16, %s18
        %s196 = ssub.s32 17, %s195
        %p197 = scmp.lt.s32.totalorder %s196, 16
        %s198 = scalar_select %p197, %s196, 16
        %s199 = smul.u32 64, %s198
        %s200 = smul.u32 %s199, 3
      $region28: #{discriminator_forward.4} parent=23 // pred_fallthru
        _
      // Predicated region
      $region29: #{discriminator_forward.4} parent=23 // pred_check
        %p201 = pneg %p76
      $region30: #{discriminator_forward.4} parent=23 // pred_check_branch
        %203 = sbr.rel (%p201) target = $region32
      $region31: #{discriminator_forward.4} parent=23 // pred_region
        %s204 = sadd.s32 %s18, 1
        %s205 = smul.u32 %s204, 16
        %p206 = scmp.lt.s32.totalorder %s17, 1
        %s207 = scalar_select %p206, %s17, 1
        %p208 = scmp.lt.s32.totalorder %s205, 16
        %s209 = scalar_select %p208, %s205, 16
        %s210 = smul.addr %s209, 3
        %s211 = smul.addr %s207, 51
        %s212 = sadd.s32 %s210, %s211
        %s213 = smul.addr %s212, 4
        %s214 = scalar_lea.vmem %s1, %s213
        %s215 = sadd.s32 %s18, 1
        %s216 = smul.u32 %s215, 16
      $region32: #{discriminator_forward.4} parent=23 // pred_fallthru
        _
    $region24: #{discriminator_forward.4} parent=5 // pred_fallthru
      _
    %p217 = scmp.le.s32.totalorder 1, %s10
    %p218 = scmp.lt.s32.totalorder %s10, 3
    %p219 = pnand %p217, %p218
    %p220 = pneg %p219
    // Predicated region
    $region33: #{discriminator_forward.4} parent=5 // pred_check
      _
    $region34: #{discriminator_forward.4} parent=5 // pred_check_branch
      %222 = sbr.rel (%p219) target = $region36
    $region35: #{discriminator_forward.4} parent=5 // pred_region
      %s223 = ssub.s32 %s10, 1
      %s224 = smul.u32 16, %s20
      %s225 = ssub.s32 17, %s224
      %p226 = scmp.lt.s32.totalorder %s225, 16
      %s227 = scalar_select %p226, %s225, 16
      %s228 = smul.u32 64, %s227
      %s229 = smul.u32 %s228, 3
      %p230 = scmp.lt.s32.totalorder %s19, 1
      %s231 = scalar_select %p230, %s19, 1
      %p232 = scmp.lt.s32.totalorder %s224, 16
      %s233 = scalar_select %p232, %s224, 16
      %s234 = smul.addr %s233, 3
      %s235 = smul.addr %s231, 51
      %s236 = sadd.s32 %s234, %s235
      %s237 = smul.addr %s236, 4
      %s238 = scalar_lea.vmem %s0, %s237
      %p239 = pneg %p50
      %p240 = pneg %p47
      %s241 = sadd.s32 %s20, 1
      %s242 = smul.u32 %s241, 16
      %p243 = scmp.lt.s32.totalorder %s19, 1
      %s244 = scalar_select %p243, %s19, 1
      %p245 = scmp.lt.s32.totalorder %s242, 16
      %s246 = scalar_select %p245, %s242, 16
      %s247 = smul.addr %s246, 3
      %s248 = smul.addr %s244, 51
      %s249 = sadd.s32 %s247, %s248
      %s250 = smul.addr %s249, 4
      %s251 = scalar_lea.vmem %s1, %s250
      %p252 = pneg %p82
      %p253 = pneg %p79
      %p254 = pneg %p103
      %p255 = pneg %p100
      %p256 = pneg %p124
      %p257 = pneg %p121
      %p258 = pneg %p152
      %p259 = pneg %p149
      %s260 = sadd.s32 %s19, %s20
      %s261 = smul.u32 32, %s260
      %p262 = scmp.lt.s32.totalorder %s261, 63
      %s263 = scalar_select %p262, %s261, 63
      %s264 = smul.addr %s263, 4
      %s265 = scalar_lea.vmem %s4, %s264
      %s266 = smul.u32 16, %s20
      %s267 = ssub.s32 17, %s266
      %p268 = scmp.lt.s32.totalorder %s267, 16
      %s269 = scalar_select %p268, %s267, 16
      %s270 = smul.u32 64, %s269
      %s271 = smul.u32 %s270, 3
      %p272 = scmp.lt.s32.totalorder %s19, 1
      %s273 = scalar_select %p272, %s19, 1
      %p274 = scmp.lt.s32.totalorder %s266, 16
      %s275 = scalar_select %p274, %s266, 16
      %s276 = smul.addr %s275, 3
      %s277 = smul.addr %s273, 51
      %s278 = sadd.s32 %s276, %s277
      %s279 = smul.addr %s278, 4
      %s280 = scalar_lea.vmem %s0, %s279
      %s281 = smul.u32 16, %s20
      %s282 = ssub.s32 17, %s281
      %p283 = scmp.lt.s32.totalorder %s282, 16
      %s284 = scalar_select %p283, %s282, 16
      %s285 = smul.u32 64, %s284
      %s286 = smul.u32 %s285, 3
      %s287 = sadd.s32 %s20, 1
      %s288 = smul.u32 %s287, 16
      %p289 = scmp.lt.s32.totalorder %s19, 1
      %s290 = scalar_select %p289, %s19, 1
      %p291 = scmp.lt.s32.totalorder %s288, 16
      %s292 = scalar_select %p291, %s288, 16
      %s293 = smul.addr %s292, 3
      %s294 = smul.addr %s290, 51
      %s295 = sadd.s32 %s293, %s294
      %s296 = smul.addr %s295, 4
      %s297 = scalar_lea.vmem %s1, %s296
      %s298 = sadd.s32 %s20, 1
      %s299 = smul.u32 %s298, 16
      %s300 = sadd.s32 %s19, %s20
      %s301 = smul.u32 32, %s300
      %p302 = scmp.lt.s32.totalorder %s301, 63
      %s303 = scalar_select %p302, %s301, 63
      %s304 = smul.addr %s303, 4
      %s305 = scalar_lea.vmem %s4, %s304
      %s306 = sadd.s32 %s19, %s20
      %s307 = smul.u32 32, %s306
      %v309 = vld [vmem:[%s280] sm:$0xf]
      %v310 = vld [vmem:[%s280 + $0x4] sm:$0xf]
      %v311 = vld [vmem:[%s280 + $0x8] sm:$0x1]
      %v312 = vld [vmem:[%s280 + $0xc] sm:$0xf]
      %v313 = vld [vmem:[%s280 + $0x10] sm:$0xf]
      %v314 = vld [vmem:[%s280 + $0x14] sm:$0x1]
      %v315 = vld [vmem:[%s280 + $0x18] sm:$0xf]
      %v316 = vld [vmem:[%s280 + $0x1c] sm:$0xf]
      %v317 = vld [vmem:[%s280 + $0x20] sm:$0x1]
      %v318 = vld [vmem:[%s280 + $0x24] sm:$0xf]
      %v319 = vld [vmem:[%s280 + $0x28] sm:$0xf]
      %v320 = vld [vmem:[%s280 + $0x2c] sm:$0x1]
      %v321 = vld [vmem:[%s280 + $0x30] sm:$0xf]
      %v322 = vld [vmem:[%s280 + $0x34] sm:$0xf]
      %v323 = vld [vmem:[%s280 + $0x38] sm:$0x1]
      %v324 = vld [vmem:[%s280 + $0x3c] sm:$0xf]
      %v325 = vld [vmem:[%s280 + $0x40] sm:$0xf]
      %v326 = vld [vmem:[%s280 + $0x44] sm:$0x1]
      %v327 = vld [vmem:[%s280 + $0x48] sm:$0xf]
      %v328 = vld [vmem:[%s280 + $0x4c] sm:$0xf]
      %v329 = vld [vmem:[%s280 + $0x50] sm:$0x1]
      %v330 = vld [vmem:[%s280 + $0x54] sm:$0xf]
      %v331 = vld [vmem:[%s280 + $0x58] sm:$0xf]
      %v332 = vld [vmem:[%s280 + $0x5c] sm:$0x1]
      %v333 = vld [vmem:[%s280 + $0x60] sm:$0xf]
      %v334 = vld [vmem:[%s280 + $0x64] sm:$0xf]
      %v335 = vld [vmem:[%s280 + $0x68] sm:$0x1]
      %v336 = vld [vmem:[%s280 + $0x6c] sm:$0xf]
      %v337 = vld [vmem:[%s280 + $0x70] sm:$0xf]
      %v338 = vld [vmem:[%s280 + $0x74] sm:$0x1]
      %v339 = vld [vmem:[%s280 + $0x78] sm:$0xf]
      %v340 = vld [vmem:[%s280 + $0x7c] sm:$0xf]
      %v341 = vld [vmem:[%s280 + $0x80] sm:$0x1]
      %v342 = vld [vmem:[%s280 + $0x84] sm:$0xf]
      %v343 = vld [vmem:[%s280 + $0x88] sm:$0xf]
      %v344 = vld [vmem:[%s280 + $0x8c] sm:$0x1]
      %v345 = vld [vmem:[%s280 + $0x90] sm:$0xf]
      %v346 = vld [vmem:[%s280 + $0x94] sm:$0xf]
      %v347 = vld [vmem:[%s280 + $0x98] sm:$0x1]
      %v348 = vld [vmem:[%s280 + $0x9c] sm:$0xf]
      %v349 = vld [vmem:[%s280 + $0xa0] sm:$0xf]
      %v350 = vld [vmem:[%s280 + $0xa4] sm:$0x1]
      %v351 = vld [vmem:[%s280 + $0xa8] sm:$0xf]
      %v352 = vld [vmem:[%s280 + $0xac] sm:$0xf]
      %v353 = vld [vmem:[%s280 + $0xb0] sm:$0x1]
      %v354 = vld [vmem:[%s280 + $0xb4] sm:$0xf]
      %v355 = vld [vmem:[%s280 + $0xb8] sm:$0xf]
      %v356 = vld [vmem:[%s280 + $0xbc] sm:$0x1]
      %v357 = vld [vmem:[%s297] sm:$0xf]
      %v358 = vld [vmem:[%s297 + $0x4] sm:$0xf]
      %v359 = vld [vmem:[%s297 + $0x8] sm:$0x1]
      %v360 = vld [vmem:[%s2] sm:$0xf]
      %v361 = vld [vmem:[%s2 + $0x4] sm:$0xf]
      %v362 = vld [vmem:[%s2 + $0x8] sm:$0xf]
      %v363 = vld [vmem:[%s2 + $0xc] sm:$0xf]
      %vm364 = vsmask.f32 3328
      %vm365 = vsmask.f32 7440
      %vm366 = vmor %vm364, %vm365
      %v368 = vshrl.u32 %v309, 16
      %v370 = vrot.slane %v368, 4
      %v371 = vshll.u32 %v309, 16
      %v373 = vrot.slane %v371, 5
      %v374 = vor.u32 %v370, %v373
      %v375 = vrot.slane %v374, 4
      %v377 = vshll.u32 %v310, 16
      %v379 = vrot.slane %v377, 5
      %v380 = vsel %vm366, %v375, %v379
      %v381 = vshrl.u32 %v310, 16
      %v383 = vrot.slane %v381, 4
      %v384 = vor.u32 %v383, %v379
      %v385 = vrot.slane %v384, 4
      %v387 = vshll.u32 %v311, 16
      %v389 = vrot.slane %v387, 5
      %v390 = vsel %vm366, %v385, %v389
      %v392 = vshrl.u32 %v312, 16
      %v394 = vrot.slane %v392, 4
      %v395 = vshll.u32 %v312, 16
      %v397 = vrot.slane %v395, 5
      %v398 = vor.u32 %v394, %v397
      %v399 = vrot.slane %v398, 4
      %v401 = vshll.u32 %v313, 16
      %v403 = vrot.slane %v401, 5
      %v404 = vsel %vm366, %v399, %v403
      %v405 = vshrl.u32 %v313, 16
      %v407 = vrot.slane %v405, 4
      %v408 = vor.u32 %v407, %v403
      %v409 = vrot.slane %v408, 4
      %v411 = vshll.u32 %v314, 16
      %v413 = vrot.slane %v411, 5
      %v414 = vsel %vm366, %v409, %v413
      %v416 = vshrl.u32 %v315, 16
      %v418 = vrot.slane %v416, 4
      %v419 = vshll.u32 %v315, 16
      %v421 = vrot.slane %v419, 5
      %v422 = vor.u32 %v418, %v421
      %v423 = vrot.slane %v422, 4
      %v425 = vshll.u32 %v316, 16
      %v427 = vrot.slane %v425, 5
      %v428 = vsel %vm366, %v423, %v427
      %v429 = vshrl.u32 %v316, 16
      %v431 = vrot.slane %v429, 4
      %v432 = vor.u32 %v431, %v427
      %v433 = vrot.slane %v432, 4
      %v435 = vshll.u32 %v317, 16
      %v437 = vrot.slane %v435, 5
      %v438 = vsel %vm366, %v433, %v437
      %v440 = vshrl.u32 %v318, 16
      %v442 = vrot.slane %v440, 4
      %v443 = vshll.u32 %v318, 16
      %v445 = vrot.slane %v443, 5
      %v446 = vor.u32 %v442, %v445
      %v447 = vrot.slane %v446, 4
      %v449 = vshll.u32 %v319, 16
      %v451 = vrot.slane %v449, 5
      %v452 = vsel %vm366, %v447, %v451
      %v453 = vshrl.u32 %v319, 16
      %v455 = vrot.slane %v453, 4
      %v456 = vor.u32 %v455, %v451
      %v457 = vrot.slane %v456, 4
      %v459 = vshll.u32 %v320, 16
      %v461 = vrot.slane %v459, 5
      %v462 = vsel %vm366, %v457, %v461
      %v464 = vshrl.u32 %v321, 16
      %v466 = vrot.slane %v464, 4
      %v467 = vshll.u32 %v321, 16
      %v469 = vrot.slane %v467, 5
      %v470 = vor.u32 %v466, %v469
      %v471 = vrot.slane %v470, 4
      %v473 = vshll.u32 %v322, 16
      %v475 = vrot.slane %v473, 5
      %v476 = vsel %vm366, %v471, %v475
      %v477 = vshrl.u32 %v322, 16
      %v479 = vrot.slane %v477, 4
      %v480 = vor.u32 %v479, %v475
      %v481 = vrot.slane %v480, 4
      %v483 = vshll.u32 %v323, 16
      %v485 = vrot.slane %v483, 5
      %v486 = vsel %vm366, %v481, %v485
      %v488 = vshrl.u32 %v324, 16
      %v490 = vrot.slane %v488, 4
      %v491 = vshll.u32 %v324, 16
      %v493 = vrot.slane %v491, 5
      %v494 = vor.u32 %v490, %v493
      %v495 = vrot.slane %v494, 4
      %v497 = vshll.u32 %v325, 16
      %v499 = vrot.slane %v497, 5
      %v500 = vsel %vm366, %v495, %v499
      %v501 = vshrl.u32 %v325, 16
      %v503 = vrot.slane %v501, 4
      %v504 = vor.u32 %v503, %v499
      %v505 = vrot.slane %v504, 4
      %v507 = vshll.u32 %v326, 16
      %v509 = vrot.slane %v507, 5
      %v510 = vsel %vm366, %v505, %v509
      %v512 = vshrl.u32 %v327, 16
      %v514 = vrot.slane %v512, 4
      %v515 = vshll.u32 %v327, 16
      %v517 = vrot.slane %v515, 5
      %v518 = vor.u32 %v514, %v517
      %v519 = vrot.slane %v518, 4
      %v521 = vshll.u32 %v328, 16
      %v523 = vrot.slane %v521, 5
      %v524 = vsel %vm366, %v519, %v523
      %v525 = vshrl.u32 %v328, 16
      %v527 = vrot.slane %v525, 4
      %v528 = vor.u32 %v527, %v523
      %v529 = vrot.slane %v528, 4
      %v531 = vshll.u32 %v329, 16
      %v533 = vrot.slane %v531, 5
      %v534 = vsel %vm366, %v529, %v533
      %v536 = vshrl.u32 %v330, 16
      %v538 = vrot.slane %v536, 4
      %v539 = vshll.u32 %v330, 16
      %v541 = vrot.slane %v539, 5
      %v542 = vor.u32 %v538, %v541
      %v543 = vrot.slane %v542, 4
      %v545 = vshll.u32 %v331, 16
      %v547 = vrot.slane %v545, 5
      %v548 = vsel %vm366, %v543, %v547
      %v549 = vshrl.u32 %v331, 16
      %v551 = vrot.slane %v549, 4
      %v552 = vor.u32 %v551, %v547
      %v553 = vrot.slane %v552, 4
      %v555 = vshll.u32 %v332, 16
      %v557 = vrot.slane %v555, 5
      %v558 = vsel %vm366, %v553, %v557
      %v560 = vshrl.u32 %v333, 16
      %v562 = vrot.slane %v560, 4
      %v563 = vshll.u32 %v333, 16
      %v565 = vrot.slane %v563, 5
      %v566 = vor.u32 %v562, %v565
      %v567 = vrot.slane %v566, 4
      %v569 = vshll.u32 %v334, 16
      %v571 = vrot.slane %v569, 5
      %v572 = vsel %vm366, %v567, %v571
      %v573 = vshrl.u32 %v334, 16
      %v575 = vrot.slane %v573, 4
      %v576 = vor.u32 %v575, %v571
      %v577 = vrot.slane %v576, 4
      %v579 = vshll.u32 %v335, 16
      %v581 = vrot.slane %v579, 5
      %v582 = vsel %vm366, %v577, %v581
      %v584 = vshrl.u32 %v336, 16
      %v586 = vrot.slane %v584, 4
      %v587 = vshll.u32 %v336, 16
      %v589 = vrot.slane %v587, 5
      %v590 = vor.u32 %v586, %v589
      %v591 = vrot.slane %v590, 4
      %v593 = vshll.u32 %v337, 16
      %v595 = vrot.slane %v593, 5
      %v596 = vsel %vm366, %v591, %v595
      %v597 = vshrl.u32 %v337, 16
      %v599 = vrot.slane %v597, 4
      %v600 = vor.u32 %v599, %v595
      %v601 = vrot.slane %v600, 4
      %v603 = vshll.u32 %v338, 16
      %v605 = vrot.slane %v603, 5
      %v606 = vsel %vm366, %v601, %v605
      %v608 = vshrl.u32 %v339, 16
      %v610 = vrot.slane %v608, 4
      %v611 = vshll.u32 %v339, 16
      %v613 = vrot.slane %v611, 5
      %v614 = vor.u32 %v610, %v613
      %v615 = vrot.slane %v614, 4
      %v617 = vshll.u32 %v340, 16
      %v619 = vrot.slane %v617, 5
      %v620 = vsel %vm366, %v615, %v619
      %v621 = vshrl.u32 %v340, 16
      %v623 = vrot.slane %v621, 4
      %v624 = vor.u32 %v623, %v619
      %v625 = vrot.slane %v624, 4
      %v627 = vshll.u32 %v341, 16
      %v629 = vrot.slane %v627, 5
      %v630 = vsel %vm366, %v625, %v629
      %v632 = vshrl.u32 %v342, 16
      %v634 = vrot.slane %v632, 4
      %v635 = vshll.u32 %v342, 16
      %v637 = vrot.slane %v635, 5
      %v638 = vor.u32 %v634, %v637
      %v639 = vrot.slane %v638, 4
      %v641 = vshll.u32 %v343, 16
      %v643 = vrot.slane %v641, 5
      %v644 = vsel %vm366, %v639, %v643
      %v645 = vshrl.u32 %v343, 16
      %v647 = vrot.slane %v645, 4
      %v648 = vor.u32 %v647, %v643
      %v649 = vrot.slane %v648, 4
      %v651 = vshll.u32 %v344, 16
      %v653 = vrot.slane %v651, 5
      %v654 = vsel %vm366, %v649, %v653
      %v656 = vshrl.u32 %v345, 16
      %v658 = vrot.slane %v656, 4
      %v659 = vshll.u32 %v345, 16
      %v661 = vrot.slane %v659, 5
      %v662 = vor.u32 %v658, %v661
      %v663 = vrot.slane %v662, 4
      %v665 = vshll.u32 %v346, 16
      %v667 = vrot.slane %v665, 5
      %v668 = vsel %vm366, %v663, %v667
      %v669 = vshrl.u32 %v346, 16
      %v671 = vrot.slane %v669, 4
      %v672 = vor.u32 %v671, %v667
      %v673 = vrot.slane %v672, 4
      %v675 = vshll.u32 %v347, 16
      %v677 = vrot.slane %v675, 5
      %v678 = vsel %vm366, %v673, %v677
      %v680 = vshrl.u32 %v348, 16
      %v682 = vrot.slane %v680, 4
      %v683 = vshll.u32 %v348, 16
      %v685 = vrot.slane %v683, 5
      %v686 = vor.u32 %v682, %v685
      %v687 = vrot.slane %v686, 4
      %v689 = vshll.u32 %v349, 16
      %v691 = vrot.slane %v689, 5
      %v692 = vsel %vm366, %v687, %v691
      %v693 = vshrl.u32 %v349, 16
      %v695 = vrot.slane %v693, 4
      %v696 = vor.u32 %v695, %v691
      %v697 = vrot.slane %v696, 4
      %v699 = vshll.u32 %v350, 16
      %v701 = vrot.slane %v699, 5
      %v702 = vsel %vm366, %v697, %v701
      %v704 = vshrl.u32 %v351, 16
      %v706 = vrot.slane %v704, 4
      %v707 = vshll.u32 %v351, 16
      %v709 = vrot.slane %v707, 5
      %v710 = vor.u32 %v706, %v709
      %v711 = vrot.slane %v710, 4
      %v713 = vshll.u32 %v352, 16
      %v715 = vrot.slane %v713, 5
      %v716 = vsel %vm366, %v711, %v715
      %v717 = vshrl.u32 %v352, 16
      %v719 = vrot.slane %v717, 4
      %v720 = vor.u32 %v719, %v715
      %v721 = vrot.slane %v720, 4
      %v723 = vshll.u32 %v353, 16
      %v725 = vrot.slane %v723, 5
      %v726 = vsel %vm366, %v721, %v725
      %v728 = vshrl.u32 %v354, 16
      %v730 = vrot.slane %v728, 4
      %v731 = vshll.u32 %v354, 16
      %v733 = vrot.slane %v731, 5
      %v734 = vor.u32 %v730, %v733
      %v735 = vrot.slane %v734, 4
      %v737 = vshll.u32 %v355, 16
      %v739 = vrot.slane %v737, 5
      %v740 = vsel %vm366, %v735, %v739
      %v741 = vshrl.u32 %v355, 16
      %v743 = vrot.slane %v741, 4
      %v744 = vor.u32 %v743, %v739
      %v745 = vrot.slane %v744, 4
      %v747 = vshll.u32 %v356, 16
      %v749 = vrot.slane %v747, 5
      %v750 = vsel %vm366, %v745, %v749
      %s751 = scalar_lea.vmem %s2, 16
      %v752 = vld [vmem:[%s751] sm:$0xf]
      %v753 = vld [vmem:[%s751 + $0x4] sm:$0xf]
      %v754 = vld [vmem:[%s751 + $0x8] sm:$0xf]
      %v755 = vld [vmem:[%s751 + $0xc] sm:$0xf]
      %v756 = vunpack.c.l.b16 %v380
      %v757 = vunpack.c.l.b16 %v390
      %v758 = vunpack.c.l.b16 %v404
      %v759 = vunpack.c.l.b16 %v414
      %v760 = vunpack.c.l.b16 %v428
      %v761 = vunpack.c.l.b16 %v438
      %v762 = vunpack.c.l.b16 %v452
      %v763 = vunpack.c.l.b16 %v462
      %v764 = vunpack.c.l.b16 %v476
      %v765 = vunpack.c.l.b16 %v486
      %v766 = vunpack.c.l.b16 %v500
      %v767 = vunpack.c.l.b16 %v510
      %v768 = vunpack.c.l.b16 %v524
      %v769 = vunpack.c.l.b16 %v534
      %v770 = vunpack.c.l.b16 %v548
      %v771 = vunpack.c.l.b16 %v558
      %v772 = vunpack.c.l.b16 %v572
      %v773 = vunpack.c.l.b16 %v582
      %v774 = vunpack.c.l.b16 %v596
      %v775 = vunpack.c.l.b16 %v606
      %v776 = vunpack.c.l.b16 %v620
      %v777 = vunpack.c.l.b16 %v630
      %v778 = vunpack.c.l.b16 %v644
      %v779 = vunpack.c.l.b16 %v654
      %v780 = vunpack.c.l.b16 %v668
      %v781 = vunpack.c.l.b16 %v678
      %v782 = vunpack.c.l.b16 %v692
      %v783 = vunpack.c.l.b16 %v702
      %v784 = vunpack.c.l.b16 %v716
      %v785 = vunpack.c.l.b16 %v726
      %v786 = vunpack.c.l.b16 %v740
      %v787 = vunpack.c.l.b16 %v750
      %v788 = vpack.c.b16 %v757, %v756
      %v789 = vpack.c.b16 %v759, %v758
      %v790 = vpack.c.b16 %v761, %v760
      %v791 = vpack.c.b16 %v763, %v762
      %v792 = vpack.c.b16 %v765, %v764
      %v793 = vpack.c.b16 %v767, %v766
      %v794 = vpack.c.b16 %v769, %v768
      %v795 = vpack.c.b16 %v771, %v770
      %v796 = vpack.c.b16 %v773, %v772
      %v797 = vpack.c.b16 %v775, %v774
      %v798 = vpack.c.b16 %v777, %v776
      %v799 = vpack.c.b16 %v779, %v778
      %v800 = vpack.c.b16 %v781, %v780
      %v801 = vpack.c.b16 %v783, %v782
      %v802 = vpack.c.b16 %v785, %v784
      %v803 = vpack.c.b16 %v787, %v786
      %v808 = vunpack.c.l.b16 %v752
      %v809 = vunpack.c.l.b16 %v753
      %v810 = vunpack.c.l.b16 %v754
      %v811 = vunpack.c.l.b16 %v755
      %v812 = vpack.c.b16 %v809, %v808
      %v813 = vpack.c.b16 %v811, %v810
      %vm816 = vcmask 261120
      %v818 = vsel %vm816, %v788, 0
      %v821 = vsel %vm816, %v789, 0
      %v824 = vsel %vm816, %v790, 0
      %v827 = vsel %vm816, %v791, 0
      %v830 = vsel %vm816, %v792, 0
      %v833 = vsel %vm816, %v793, 0
      %v836 = vsel %vm816, %v794, 0
      %v839 = vsel %vm816, %v795, 0
      %v842 = vsel %vm816, %v796, 0
      %v845 = vsel %vm816, %v797, 0
      %v848 = vsel %vm816, %v798, 0
      %v851 = vsel %vm816, %v799, 0
      %v854 = vsel %vm816, %v800, 0
      %v857 = vsel %vm816, %v801, 0
      %v860 = vsel %vm816, %v802, 0
      %v863 = vsel %vm816, %v803, 0
      %865 = vmatprep.subr.bf16.mxu0 0
      %866 = vmatpush1.bf16.msra.mxu0 %v812
      %867 = vmatprep.subr.bf16.mxu0 0
      %868 = vmatpush1.bf16.msra.mxu0 %v813
      %869 = vmatprep.subr.bf16.mxu0 0
      %870 = vmatpush1.bf16.msra.mxu0 0
      %871 = vmatprep.subr.bf16.mxu0 0
      %872 = vmatpush1.bf16.msra.mxu0 0
      %873 = vmatprep.subr.bf16.mxu0 0
      %874 = vmatpush1.bf16.msra.mxu0 0
      %875 = vmatprep.subr.bf16.mxu0 0
      %876 = vmatpush1.bf16.msra.mxu0 0
      %877 = vmatprep.subr.bf16.mxu0 0
      %878 = vmatpush1.bf16.msra.mxu0 0
      %879 = vmatprep.subr.bf16.mxu0 0
      %880 = vmatpush1.bf16.msra.mxu0 0
      %881 = vmatprep.subr.bf16.mxu0 0
      %882 = vmatpush1.bf16.msra.mxu0 0
      %883 = vmatprep.subr.bf16.mxu0 0
      %884 = vmatpush1.bf16.msra.mxu0 0
      %885 = vmatprep.subr.bf16.mxu0 0
      %886 = vmatpush1.bf16.msra.mxu0 0
      %887 = vmatprep.subr.bf16.mxu0 0
      %888 = vmatpush1.bf16.msra.mxu0 0
      %889 = vmatprep.subr.bf16.mxu0 0
      %890 = vmatpush1.bf16.msra.mxu0 0
      %891 = vmatprep.subr.bf16.mxu0 0
      %892 = vmatpush1.bf16.msra.mxu0 0
      %893 = vmatprep.subr.bf16.mxu0 0
      %894 = vmatpush1.bf16.msra.mxu0 0
      %895 = vmatprep.subr.bf16.mxu0 0
      %896 = vmatpush1.bf16.msra.mxu0 0
      %897 = vmatprep.mubr.bf16.mxu0 0
      %898 = vmatmul.mubr.bf16.gmra.mrb[0].mxu0 %v818
      %v899 = vpop.f32.mrb[0].mxu0
      %v900 = vadd.f32 0.0, %v899
      %v901 = vpop.f32.mrb[0].mxu0
      %v902 = vpop.f32.mrb[0].mxu0
      %v903 = vadd.f32 0.0, %v902
      %v904 = vpop.f32.mrb[0].mxu0
      %905 = vmatprep.mubr.bf16.mxu0 0
      %906 = vmatmul.mubr.bf16.gmra.mrb[0].mxu0 %v821
      %v907 = vpop.f32.mrb[0].mxu0
      %v908 = vadd.f32 0.0, %v907
      %v909 = vpop.f32.mrb[0].mxu0
      %v910 = vpop.f32.mrb[0].mxu0
      %v911 = vadd.f32 0.0, %v910
      %v912 = vpop.f32.mrb[0].mxu0
      %913 = vmatprep.mubr.bf16.mxu0 0
      %914 = vmatmul.mubr.bf16.gmra.mrb[0].mxu0 %v824
      %v915 = vpop.f32.mrb[0].mxu0
      %v916 = vadd.f32 0.0, %v915
      %v917 = vpop.f32.mrb[0].mxu0
      %v918 = vpop.f32.mrb[0].mxu0
      %v919 = vadd.f32 0.0, %v918
      %v920 = vpop.f32.mrb[0].mxu0
      %921 = vmatprep.mubr.bf16.mxu0 0
      %922 = vmatmul.mubr.bf16.gmra.mrb[0].mxu0 %v827
      %v923 = vpop.f32.mrb[0].mxu0
      %v924 = vadd.f32 0.0, %v923
      %v925 = vpop.f32.mrb[0].mxu0
      %v926 = vpop.f32.mrb[0].mxu0
      %v927 = vadd.f32 0.0, %v926
      %v928 = vpop.f32.mrb[0].mxu0
      %929 = vmatprep.mubr.bf16.mxu0 0
      %930 = vmatmul.mubr.bf16.gmra.mrb[0].mxu0 %v830
      %v931 = vpop.f32.mrb[0].mxu0
      %v932 = vadd.f32 0.0, %v931
      %v933 = vpop.f32.mrb[0].mxu0
      %v934 = vpop.f32.mrb[0].mxu0
      %v935 = vadd.f32 0.0, %v934
      %v936 = vpop.f32.mrb[0].mxu0
      %937 = vmatprep.mubr.bf16.mxu0 0
      %938 = vmatmul.mubr.bf16.gmra.mrb[0].mxu0 %v833
      %v939 = vpop.f32.mrb[0].mxu0
      %v940 = vadd.f32 0.0, %v939
      %v941 = vpop.f32.mrb[0].mxu0
      %v942 = vpop.f32.mrb[0].mxu0
      %v943 = vadd.f32 0.0, %v942
      %v944 = vpop.f32.mrb[0].mxu0
      %945 = vmatprep.mubr.bf16.mxu0 0
      %946 = vmatmul.mubr.bf16.gmra.mrb[0].mxu0 %v836
      %v947 = vpop.f32.mrb[0].mxu0
      %v948 = vadd.f32 0.0, %v947
      %v949 = vpop.f32.mrb[0].mxu0
      %v950 = vpop.f32.mrb[0].mxu0
      %v951 = vadd.f32 0.0, %v950
      %v952 = vpop.f32.mrb[0].mxu0
      %953 = vmatprep.mubr.bf16.mxu0 0
      %954 = vmatmul.mubr.bf16.gmra.mrb[0].mxu0 %v839
      %v955 = vpop.f32.mrb[0].mxu0
      %v956 = vadd.f32 0.0, %v955
      %v957 = vpop.f32.mrb[0].mxu0
      %v958 = vpop.f32.mrb[0].mxu0
      %v959 = vadd.f32 0.0, %v958
      %v960 = vpop.f32.mrb[0].mxu0
      %961 = vmatprep.mubr.bf16.mxu0 0
      %962 = vmatmul.mubr.bf16.gmra.mrb[0].mxu0 %v842
      %v963 = vpop.f32.mrb[0].mxu0
      %v964 = vadd.f32 0.0, %v963
      %v965 = vpop.f32.mrb[0].mxu0
      %v966 = vpop.f32.mrb[0].mxu0
      %v967 = vadd.f32 0.0, %v966
      %v968 = vpop.f32.mrb[0].mxu0
      %969 = vmatprep.mubr.bf16.mxu0 0
      %970 = vmatmul.mubr.bf16.gmra.mrb[0].mxu0 %v845
      %v971 = vpop.f32.mrb[0].mxu0
      %v972 = vadd.f32 0.0, %v971
      %v973 = vpop.f32.mrb[0].mxu0
      %v974 = vpop.f32.mrb[0].mxu0
      %v975 = vadd.f32 0.0, %v974
      %v976 = vpop.f32.mrb[0].mxu0
      %977 = vmatprep.mubr.bf16.mxu0 0
      %978 = vmatmul.mubr.bf16.gmra.mrb[0].mxu0 %v848
      %v979 = vpop.f32.mrb[0].mxu0
      %v980 = vadd.f32 0.0, %v979
      %v981 = vpop.f32.mrb[0].mxu0
      %v982 = vpop.f32.mrb[0].mxu0
      %v983 = vadd.f32 0.0, %v982
      %v984 = vpop.f32.mrb[0].mxu0
      %985 = vmatprep.mubr.bf16.mxu0 0
      %986 = vmatmul.mubr.bf16.gmra.mrb[0].mxu0 %v851
      %v987 = vpop.f32.mrb[0].mxu0
      %v988 = vadd.f32 0.0, %v987
      %v989 = vpop.f32.mrb[0].mxu0
      %v990 = vpop.f32.mrb[0].mxu0
      %v991 = vadd.f32 0.0, %v990
      %v992 = vpop.f32.mrb[0].mxu0
      %993 = vmatprep.mubr.bf16.mxu0 0
      %994 = vmatmul.mubr.bf16.gmra.mrb[0].mxu0 %v854
      %v995 = vpop.f32.mrb[0].mxu0
      %v996 = vadd.f32 0.0, %v995
      %v997 = vpop.f32.mrb[0].mxu0
      %v998 = vpop.f32.mrb[0].mxu0
      %v999 = vadd.f32 0.0, %v998
      %v1000 = vpop.f32.mrb[0].mxu0
      %1001 = vmatprep.mubr.bf16.mxu0 0
      %1002 = vmatmul.mubr.bf16.gmra.mrb[0].mxu0 %v857
      %v1003 = vpop.f32.mrb[0].mxu0
      %v1004 = vadd.f32 0.0, %v1003
      %v1005 = vpop.f32.mrb[0].mxu0
      %v1006 = vpop.f32.mrb[0].mxu0
      %v1007 = vadd.f32 0.0, %v1006
      %v1008 = vpop.f32.mrb[0].mxu0
      %1009 = vmatprep.mubr.bf16.mxu0 0
      %1010 = vmatmul.mubr.bf16.gmra.mrb[0].mxu0 %v860
      %v1011 = vpop.f32.mrb[0].mxu0
      %v1012 = vadd.f32 0.0, %v1011
      %v1013 = vpop.f32.mrb[0].mxu0
      %v1014 = vpop.f32.mrb[0].mxu0
      %v1015 = vadd.f32 0.0, %v1014
      %v1016 = vpop.f32.mrb[0].mxu0
      %1017 = vmatprep.mubr.bf16.mxu0 0
      %1018 = vmatmul.mubr.bf16.gmra.mrb[0].mxu0 %v863
      %v1019 = vpop.f32.mrb[0].mxu0
      %v1020 = vadd.f32 0.0, %v1019
      %v1021 = vpop.f32.mrb[0].mxu0
      %v1022 = vpop.f32.mrb[0].mxu0
      %v1023 = vadd.f32 0.0, %v1022
      %v1024 = vpop.f32.mrb[0].mxu0
      %1025 = vdwg.mxu0
      %v1058 = vunpack.c.l.b16 %v309
      %v1059 = vunpack.c.l.b16 %v310
      %v1060 = vunpack.c.l.b16 %v312
      %v1061 = vunpack.c.l.b16 %v313
      %v1062 = vunpack.c.l.b16 %v315
      %v1063 = vunpack.c.l.b16 %v316
      %v1064 = vunpack.c.l.b16 %v318
      %v1065 = vunpack.c.l.b16 %v319
      %v1066 = vunpack.c.l.b16 %v321
      %v1067 = vunpack.c.l.b16 %v322
      %v1068 = vunpack.c.l.b16 %v324
      %v1069 = vunpack.c.l.b16 %v325
      %v1070 = vunpack.c.l.b16 %v327
      %v1071 = vunpack.c.l.b16 %v328
      %v1072 = vunpack.c.l.b16 %v330
      %v1073 = vunpack.c.l.b16 %v331
      %v1074 = vunpack.c.l.b16 %v333
      %v1075 = vunpack.c.l.b16 %v334
      %v1076 = vunpack.c.l.b16 %v336
      %v1077 = vunpack.c.l.b16 %v337
      %v1078 = vunpack.c.l.b16 %v339
      %v1079 = vunpack.c.l.b16 %v340
      %v1080 = vunpack.c.l.b16 %v342
      %v1081 = vunpack.c.l.b16 %v343
      %v1082 = vunpack.c.l.b16 %v345
      %v1083 = vunpack.c.l.b16 %v346
      %v1084 = vunpack.c.l.b16 %v348
      %v1085 = vunpack.c.l.b16 %v349
      %v1086 = vunpack.c.l.b16 %v351
      %v1087 = vunpack.c.l.b16 %v352
      %v1088 = vunpack.c.l.b16 %v354
      %v1089 = vunpack.c.l.b16 %v355
      %v1090 = vpack.c.b16 %v1059, %v1058
      %v1091 = vpack.c.b16 %v1061, %v1060
      %v1092 = vpack.c.b16 %v1063, %v1062
      %v1093 = vpack.c.b16 %v1065, %v1064
      %v1094 = vpack.c.b16 %v1067, %v1066
      %v1095 = vpack.c.b16 %v1069, %v1068
      %v1096 = vpack.c.b16 %v1071, %v1070
      %v1097 = vpack.c.b16 %v1073, %v1072
      %v1098 = vpack.c.b16 %v1075, %v1074
      %v1099 = vpack.c.b16 %v1077, %v1076
      %v1100 = vpack.c.b16 %v1079, %v1078
      %v1101 = vpack.c.b16 %v1081, %v1080
      %v1102 = vpack.c.b16 %v1083, %v1082
      %v1103 = vpack.c.b16 %v1085, %v1084
      %v1104 = vpack.c.b16 %v1087, %v1086
      %v1105 = vpack.c.b16 %v1089, %v1088
      %v1110 = vunpack.c.l.b16 %v360
      %v1111 = vunpack.c.l.b16 %v361
      %v1112 = vunpack.c.l.b16 %v362
      %v1113 = vunpack.c.l.b16 %v363
      %v1114 = vpack.c.b16 %v1111, %v1110
      %v1115 = vpack.c.b16 %v1113, %v1112
      %v1119 = vsel %vm816, %v1090, 0
      %v1122 = vsel %vm816, %v1091, 0
      %v1125 = vsel %vm816, %v1092, 0
      %v1128 = vsel %vm816, %v1093, 0
      %v1131 = vsel %vm816, %v1094, 0
      %v1134 = vsel %vm816, %v1095, 0
      %v1137 = vsel %vm816, %v1096, 0
      %v1140 = vsel %vm816, %v1097, 0
      %v1143 = vsel %vm816, %v1098, 0
      %v1146 = vsel %vm816, %v1099, 0
      %v1149 = vsel %vm816, %v1100, 0
      %v1152 = vsel %vm816, %v1101, 0
      %v1155 = vsel %vm816, %v1102, 0
      %v1158 = vsel %vm816, %v1103, 0
      %v1161 = vsel %vm816, %v1104, 0
      %v1164 = vsel %vm816, %v1105, 0
      %1166 = vmatprep.subr.bf16.mxu0 0
      %1167 = vmatpush1.bf16.msra.mxu0 %v1114
      %1168 = vmatprep.subr.bf16.mxu0 0
      %1169 = vmatpush1.bf16.msra.mxu0 %v1115
      %1170 = vmatprep.subr.bf16.mxu0 0
      %1171 = vmatpush1.bf16.msra.mxu0 0
      %1172 = vmatprep.subr.bf16.mxu0 0
      %1173 = vmatpush1.bf16.msra.mxu0 0
      %1174 = vmatprep.subr.bf16.mxu0 0
      %1175 = vmatpush1.bf16.msra.mxu0 0
      %1176 = vmatprep.subr.bf16.mxu0 0
      %1177 = vmatpush1.bf16.msra.mxu0 0
      %1178 = vmatprep.subr.bf16.mxu0 0
      %1179 = vmatpush1.bf16.msra.mxu0 0
      %1180 = vmatprep.subr.bf16.mxu0 0
      %1181 = vmatpush1.bf16.msra.mxu0 0
      %1182 = vmatprep.subr.bf16.mxu0 0
      %1183 = vmatpush1.bf16.msra.mxu0 0
      %1184 = vmatprep.subr.bf16.mxu0 0
      %1185 = vmatpush1.bf16.msra.mxu0 0
      %1186 = vmatprep.subr.bf16.mxu0 0
      %1187 = vmatpush1.bf16.msra.mxu0 0
      %1188 = vmatprep.subr.bf16.mxu0 0
      %1189 = vmatpush1.bf16.msra.mxu0 0
      %1190 = vmatprep.subr.bf16.mxu0 0
      %1191 = vmatpush1.bf16.msra.mxu0 0
      %1192 = vmatprep.subr.bf16.mxu0 0
      %1193 = vmatpush1.bf16.msra.mxu0 0
      %1194 = vmatprep.subr.bf16.mxu0 0
      %1195 = vmatpush1.bf16.msra.mxu0 0
      %1196 = vmatprep.subr.bf16.mxu0 0
      %1197 = vmatpush1.bf16.msra.mxu0 0
      %1198 = vmatprep.mubr.bf16.mxu0 0
      %1199 = vmatmul.mubr.bf16.gmra.mrb[0].mxu0 %v1119
      %v1200 = vpop.f32.mrb[0].mxu0
      %v1201 = vadd.f32 %v900, %v1200
      %v1202 = vpop.f32.mrb[0].mxu0
      %v1203 = vpop.f32.mrb[0].mxu0
      %v1204 = vadd.f32 %v903, %v1203
      %v1205 = vpop.f32.mrb[0].mxu0
      %1206 = vmatprep.mubr.bf16.mxu0 0
      %1207 = vmatmul.mubr.bf16.gmra.mrb[0].mxu0 %v1122
      %v1208 = vpop.f32.mrb[0].mxu0
      %v1209 = vadd.f32 %v908, %v1208
      %v1210 = vpop.f32.mrb[0].mxu0
      %v1211 = vpop.f32.mrb[0].mxu0
      %v1212 = vadd.f32 %v911, %v1211
      %v1213 = vpop.f32.mrb[0].mxu0
      %1214 = vmatprep.mubr.bf16.mxu0 0
      %1215 = vmatmul.mubr.bf16.gmra.mrb[0].mxu0 %v1125
      %v1216 = vpop.f32.mrb[0].mxu0
      %v1217 = vadd.f32 %v916, %v1216
      %v1218 = vpop.f32.mrb[0].mxu0
      %v1219 = vpop.f32.mrb[0].mxu0
      %v1220 = vadd.f32 %v919, %v1219
      %v1221 = vpop.f32.mrb[0].mxu0
      %1222 = vmatprep.mubr.bf16.mxu0 0
      %1223 = vmatmul.mubr.bf16.gmra.mrb[0].mxu0 %v1128
      %v1224 = vpop.f32.mrb[0].mxu0
      %v1225 = vadd.f32 %v924, %v1224
      %v1226 = vpop.f32.mrb[0].mxu0
      %v1227 = vpop.f32.mrb[0].mxu0
      %v1228 = vadd.f32 %v927, %v1227
      %v1229 = vpop.f32.mrb[0].mxu0
      %1230 = vmatprep.mubr.bf16.mxu0 0
      %1231 = vmatmul.mubr.bf16.gmra.mrb[0].mxu0 %v1131
      %v1232 = vpop.f32.mrb[0].mxu0
      %v1233 = vadd.f32 %v932, %v1232
      %v1234 = vpop.f32.mrb[0].mxu0
      %v1235 = vpop.f32.mrb[0].mxu0
      %v1236 = vadd.f32 %v935, %v1235
      %v1237 = vpop.f32.mrb[0].mxu0
      %1238 = vmatprep.mubr.bf16.mxu0 0
      %1239 = vmatmul.mubr.bf16.gmra.mrb[0].mxu0 %v1134
      %v1240 = vpop.f32.mrb[0].mxu0
      %v1241 = vadd.f32 %v940, %v1240
      %v1242 = vpop.f32.mrb[0].mxu0
      %v1243 = vpop.f32.mrb[0].mxu0
      %v1244 = vadd.f32 %v943, %v1243
      %v1245 = vpop.f32.mrb[0].mxu0
      %1246 = vmatprep.mubr.bf16.mxu0 0
      %1247 = vmatmul.mubr.bf16.gmra.mrb[0].mxu0 %v1137
      %v1248 = vpop.f32.mrb[0].mxu0
      %v1249 = vadd.f32 %v948, %v1248
      %v1250 = vpop.f32.mrb[0].mxu0
      %v1251 = vpop.f32.mrb[0].mxu0
      %v1252 = vadd.f32 %v951, %v1251
      %v1253 = vpop.f32.mrb[0].mxu0
      %1254 = vmatprep.mubr.bf16.mxu0 0
      %1255 = vmatmul.mubr.bf16.gmra.mrb[0].mxu0 %v1140
      %v1256 = vpop.f32.mrb[0].mxu0
      %v1257 = vadd.f32 %v956, %v1256
      %v1258 = vpop.f32.mrb[0].mxu0
      %v1259 = vpop.f32.mrb[0].mxu0
      %v1260 = vadd.f32 %v959, %v1259
      %v1261 = vpop.f32.mrb[0].mxu0
      %1262 = vmatprep.mubr.bf16.mxu0 0
      %1263 = vmatmul.mubr.bf16.gmra.mrb[0].mxu0 %v1143
      %v1264 = vpop.f32.mrb[0].mxu0
      %v1265 = vadd.f32 %v964, %v1264
      %v1266 = vpop.f32.mrb[0].mxu0
      %v1267 = vpop.f32.mrb[0].mxu0
      %v1268 = vadd.f32 %v967, %v1267
      %v1269 = vpop.f32.mrb[0].mxu0
      %1270 = vmatprep.mubr.bf16.mxu0 0
      %1271 = vmatmul.mubr.bf16.gmra.mrb[0].mxu0 %v1146
      %v1272 = vpop.f32.mrb[0].mxu0
      %v1273 = vadd.f32 %v972, %v1272
      %v1274 = vpop.f32.mrb[0].mxu0
      %v1275 = vpop.f32.mrb[0].mxu0
      %v1276 = vadd.f32 %v975, %v1275
      %v1277 = vpop.f32.mrb[0].mxu0
      %1278 = vmatprep.mubr.bf16.mxu0 0
      %1279 = vmatmul.mubr.bf16.gmra.mrb[0].mxu0 %v1149
      %v1280 = vpop.f32.mrb[0].mxu0
      %v1281 = vadd.f32 %v980, %v1280
      %v1282 = vpop.f32.mrb[0].mxu0
      %v1283 = vpop.f32.mrb[0].mxu0
      %v1284 = vadd.f32 %v983, %v1283
      %v1285 = vpop.f32.mrb[0].mxu0
      %1286 = vmatprep.mubr.bf16.mxu0 0
      %1287 = vmatmul.mubr.bf16.gmra.mrb[0].mxu0 %v1152
      %v1288 = vpop.f32.mrb[0].mxu0
      %v1289 = vadd.f32 %v988, %v1288
      %v1290 = vpop.f32.mrb[0].mxu0
      %v1291 = vpop.f32.mrb[0].mxu0
      %v1292 = vadd.f32 %v991, %v1291
      %v1293 = vpop.f32.mrb[0].mxu0
      %1294 = vmatprep.mubr.bf16.mxu0 0
      %1295 = vmatmul.mubr.bf16.gmra.mrb[0].mxu0 %v1155
      %v1296 = vpop.f32.mrb[0].mxu0
      %v1297 = vadd.f32 %v996, %v1296
      %v1298 = vpop.f32.mrb[0].mxu0
      %v1299 = vpop.f32.mrb[0].mxu0
      %v1300 = vadd.f32 %v999, %v1299
      %v1301 = vpop.f32.mrb[0].mxu0
      %1302 = vmatprep.mubr.bf16.mxu0 0
      %1303 = vmatmul.mubr.bf16.gmra.mrb[0].mxu0 %v1158
      %v1304 = vpop.f32.mrb[0].mxu0
      %v1305 = vadd.f32 %v1004, %v1304
      %v1306 = vpop.f32.mrb[0].mxu0
      %v1307 = vpop.f32.mrb[0].mxu0
      %v1308 = vadd.f32 %v1007, %v1307
      %v1309 = vpop.f32.mrb[0].mxu0
      %1310 = vmatprep.mubr.bf16.mxu0 0
      %1311 = vmatmul.mubr.bf16.gmra.mrb[0].mxu0 %v1161
      %v1312 = vpop.f32.mrb[0].mxu0
      %v1313 = vadd.f32 %v1012, %v1312
      %v1314 = vpop.f32.mrb[0].mxu0
      %v1315 = vpop.f32.mrb[0].mxu0
      %v1316 = vadd.f32 %v1015, %v1315
      %v1317 = vpop.f32.mrb[0].mxu0
      %1318 = vmatprep.mubr.bf16.mxu0 0
      %1319 = vmatmul.mubr.bf16.gmra.mrb[0].mxu0 %v1164
      %v1320 = vpop.f32.mrb[0].mxu0
      %v1321 = vadd.f32 %v1020, %v1320
      %v1322 = vpop.f32.mrb[0].mxu0
      %v1323 = vpop.f32.mrb[0].mxu0
      %v1324 = vadd.f32 %v1023, %v1323
      %v1325 = vpop.f32.mrb[0].mxu0
      %1326 = vdwg.mxu0
      %s1327 = scalar_lea.vmem %s2, 32
      %v1328 = vld [vmem:[%s1327] sm:$0xf]
      %v1329 = vld [vmem:[%s1327 + $0x4] sm:$0xf]
      %v1330 = vld [vmem:[%s1327 + $0x8] sm:$0xf]
      %v1331 = vld [vmem:[%s1327 + $0xc] sm:$0xf]
      %v1334 = vunpack.c.l.b16 %v357
      %v1335 = vunpack.c.l.b16 %v358
      %v1336 = vpack.c.b16 %v1335, %v1334
      %v1341 = vunpack.c.l.b16 %v1328
      %v1342 = vunpack.c.l.b16 %v1329
      %v1343 = vunpack.c.l.b16 %v1330
      %v1344 = vunpack.c.l.b16 %v1331
      %v1345 = vpack.c.b16 %v1342, %v1341
      %v1346 = vpack.c.b16 %v1344, %v1343
      %v1350 = vsel %vm816, %v1336, 0
      %1352 = vmatprep.subr.bf16.mxu0 0
      %1353 = vmatpush1.bf16.msra.mxu0 %v1345
      %1354 = vmatprep.subr.bf16.mxu0 0
      %1355 = vmatpush1.bf16.msra.mxu0 %v1346
      %1356 = vmatprep.subr.bf16.mxu0 0
      %1357 = vmatpush1.bf16.msra.mxu0 0
      %1358 = vmatprep.subr.bf16.mxu0 0
      %1359 = vmatpush1.bf16.msra.mxu0 0
      %1360 = vmatprep.subr.bf16.mxu0 0
      %1361 = vmatpush1.bf16.msra.mxu0 0
      %1362 = vmatprep.subr.bf16.mxu0 0
      %1363 = vmatpush1.bf16.msra.mxu0 0
      %1364 = vmatprep.subr.bf16.mxu0 0
      %1365 = vmatpush1.bf16.msra.mxu0 0
      %1366 = vmatprep.subr.bf16.mxu0 0
      %1367 = vmatpush1.bf16.msra.mxu0 0
      %1368 = vmatprep.subr.bf16.mxu0 0
      %1369 = vmatpush1.bf16.msra.mxu0 0
      %1370 = vmatprep.subr.bf16.mxu0 0
      %1371 = vmatpush1.bf16.msra.mxu0 0
      %1372 = vmatprep.subr.bf16.mxu0 0
      %1373 = vmatpush1.bf16.msra.mxu0 0
      %1374 = vmatprep.subr.bf16.mxu0 0
      %1375 = vmatpush1.bf16.msra.mxu0 0
      %1376 = vmatprep.subr.bf16.mxu0 0
      %1377 = vmatpush1.bf16.msra.mxu0 0
      %1378 = vmatprep.subr.bf16.mxu0 0
      %1379 = vmatpush1.bf16.msra.mxu0 0
      %1380 = vmatprep.subr.bf16.mxu0 0
      %1381 = vmatpush1.bf16.msra.mxu0 0
      %1382 = vmatprep.subr.bf16.mxu0 0
      %1383 = vmatpush1.bf16.msra.mxu0 0
      %1384 = vmatprep.mubr.bf16.mxu0 0
      %1385 = vmatmul.mubr.bf16.gmra.mrb[0].mxu0 %v1122
      %v1386 = vpop.f32.mrb[0].mxu0
      %v1387 = vadd.f32 0.0, %v1386
      %v1388 = vpop.f32.mrb[0].mxu0
      %v1389 = vpop.f32.mrb[0].mxu0
      %v1390 = vadd.f32 0.0, %v1389
      %v1391 = vpop.f32.mrb[0].mxu0
      %1392 = vmatprep.mubr.bf16.mxu0 0
      %1393 = vmatmul.mubr.bf16.gmra.mrb[0].mxu0 %v1125
      %v1394 = vpop.f32.mrb[0].mxu0
      %v1395 = vadd.f32 0.0, %v1394
      %v1396 = vpop.f32.mrb[0].mxu0
      %v1397 = vpop.f32.mrb[0].mxu0
      %v1398 = vadd.f32 0.0, %v1397
      %v1399 = vpop.f32.mrb[0].mxu0
      %1400 = vmatprep.mubr.bf16.mxu0 0
      %1401 = vmatmul.mubr.bf16.gmra.mrb[0].mxu0 %v1128
      %v1402 = vpop.f32.mrb[0].mxu0
      %v1403 = vadd.f32 0.0, %v1402
      %v1404 = vpop.f32.mrb[0].mxu0
      %v1405 = vpop.f32.mrb[0].mxu0
      %v1406 = vadd.f32 0.0, %v1405
      %v1407 = vpop.f32.mrb[0].mxu0
      %1408 = vmatprep.mubr.bf16.mxu0 0
      %1409 = vmatmul.mubr.bf16.gmra.mrb[0].mxu0 %v1131
      %v1410 = vpop.f32.mrb[0].mxu0
      %v1411 = vadd.f32 0.0, %v1410
      %v1412 = vpop.f32.mrb[0].mxu0
      %v1413 = vpop.f32.mrb[0].mxu0
      %v1414 = vadd.f32 0.0, %v1413
      %v1415 = vpop.f32.mrb[0].mxu0
      %1416 = vmatprep.mubr.bf16.mxu0 0
      %1417 = vmatmul.mubr.bf16.gmra.mrb[0].mxu0 %v1134
      %v1418 = vpop.f32.mrb[0].mxu0
      %v1419 = vadd.f32 0.0, %v1418
      %v1420 = vpop.f32.mrb[0].mxu0
      %v1421 = vpop.f32.mrb[0].mxu0
      %v1422 = vadd.f32 0.0, %v1421
      %v1423 = vpop.f32.mrb[0].mxu0
      %1424 = vmatprep.mubr.bf16.mxu0 0
      %1425 = vmatmul.mubr.bf16.gmra.mrb[0].mxu0 %v1137
      %v1426 = vpop.f32.mrb[0].mxu0
      %v1427 = vadd.f32 0.0, %v1426
      %v1428 = vpop.f32.mrb[0].mxu0
      %v1429 = vpop.f32.mrb[0].mxu0
      %v1430 = vadd.f32 0.0, %v1429
      %v1431 = vpop.f32.mrb[0].mxu0
      %1432 = vmatprep.mubr.bf16.mxu0 0
      %1433 = vmatmul.mubr.bf16.gmra.mrb[0].mxu0 %v1140
      %v1434 = vpop.f32.mrb[0].mxu0
      %v1435 = vadd.f32 0.0, %v1434
      %v1436 = vpop.f32.mrb[0].mxu0
      %v1437 = vpop.f32.mrb[0].mxu0
      %v1438 = vadd.f32 0.0, %v1437
      %v1439 = vpop.f32.mrb[0].mxu0
      %1440 = vmatprep.mubr.bf16.mxu0 0
      %1441 = vmatmul.mubr.bf16.gmra.mrb[0].mxu0 %v1143
      %v1442 = vpop.f32.mrb[0].mxu0
      %v1443 = vadd.f32 0.0, %v1442
      %v1444 = vpop.f32.mrb[0].mxu0
      %v1445 = vpop.f32.mrb[0].mxu0
      %v1446 = vadd.f32 0.0, %v1445
      %v1447 = vpop.f32.mrb[0].mxu0
      %1448 = vmatprep.mubr.bf16.mxu0 0
      %1449 = vmatmul.mubr.bf16.gmra.mrb[0].mxu0 %v1146
      %v1450 = vpop.f32.mrb[0].mxu0
      %v1451 = vadd.f32 0.0, %v1450
      %v1452 = vpop.f32.mrb[0].mxu0
      %v1453 = vpop.f32.mrb[0].mxu0
      %v1454 = vadd.f32 0.0, %v1453
      %v1455 = vpop.f32.mrb[0].mxu0
      %1456 = vmatprep.mubr.bf16.mxu0 0
      %1457 = vmatmul.mubr.bf16.gmra.mrb[0].mxu0 %v1149
      %v1458 = vpop.f32.mrb[0].mxu0
      %v1459 = vadd.f32 0.0, %v1458
      %v1460 = vpop.f32.mrb[0].mxu0
      %v1461 = vpop.f32.mrb[0].mxu0
      %v1462 = vadd.f32 0.0, %v1461
      %v1463 = vpop.f32.mrb[0].mxu0
      %1464 = vmatprep.mubr.bf16.mxu0 0
      %1465 = vmatmul.mubr.bf16.gmra.mrb[0].mxu0 %v1152
      %v1466 = vpop.f32.mrb[0].mxu0
      %v1467 = vadd.f32 0.0, %v1466
      %v1468 = vpop.f32.mrb[0].mxu0
      %v1469 = vpop.f32.mrb[0].mxu0
      %v1470 = vadd.f32 0.0, %v1469
      %v1471 = vpop.f32.mrb[0].mxu0
      %1472 = vmatprep.mubr.bf16.mxu0 0
      %1473 = vmatmul.mubr.bf16.gmra.mrb[0].mxu0 %v1155
      %v1474 = vpop.f32.mrb[0].mxu0
      %v1475 = vadd.f32 0.0, %v1474
      %v1476 = vpop.f32.mrb[0].mxu0
      %v1477 = vpop.f32.mrb[0].mxu0
      %v1478 = vadd.f32 0.0, %v1477
      %v1479 = vpop.f32.mrb[0].mxu0
      %1480 = vmatprep.mubr.bf16.mxu0 0
      %1481 = vmatmul.mubr.bf16.gmra.mrb[0].mxu0 %v1158
      %v1482 = vpop.f32.mrb[0].mxu0
      %v1483 = vadd.f32 0.0, %v1482
      %v1484 = vpop.f32.mrb[0].mxu0
      %v1485 = vpop.f32.mrb[0].mxu0
      %v1486 = vadd.f32 0.0, %v1485
      %v1487 = vpop.f32.mrb[0].mxu0
      %1488 = vmatprep.mubr.bf16.mxu0 0
      %1489 = vmatmul.mubr.bf16.gmra.mrb[0].mxu0 %v1161
      %v1490 = vpop.f32.mrb[0].mxu0
      %v1491 = vadd.f32 0.0, %v1490
      %v1492 = vpop.f32.mrb[0].mxu0
      %v1493 = vpop.f32.mrb[0].mxu0
      %v1494 = vadd.f32 0.0, %v1493
      %v1495 = vpop.f32.mrb[0].mxu0
      %1496 = vmatprep.mubr.bf16.mxu0 0
      %1497 = vmatmul.mubr.bf16.gmra.mrb[0].mxu0 %v1164
      %v1498 = vpop.f32.mrb[0].mxu0
      %v1499 = vadd.f32 0.0, %v1498
      %v1500 = vpop.f32.mrb[0].mxu0
      %v1501 = vpop.f32.mrb[0].mxu0
      %v1502 = vadd.f32 0.0, %v1501
      %v1503 = vpop.f32.mrb[0].mxu0
      %1504 = vmatprep.mubr.bf16.mxu0 0
      %1505 = vmatmul.mubr.bf16.gmra.mrb[0].mxu0 %v1350
      %v1506 = vpop.f32.mrb[0].mxu0
      %v1507 = vadd.f32 0.0, %v1506
      %v1508 = vpop.f32.mrb[0].mxu0
      %v1509 = vpop.f32.mrb[0].mxu0
      %v1510 = vadd.f32 0.0, %v1509
      %v1511 = vpop.f32.mrb[0].mxu0
      %1512 = vdwg.mxu0
      %v1513 = vadd.f32 %v1201, %v1387
      %v1514 = vadd.f32 %v1204, %v1390
      %v1515 = vadd.f32 %v1209, %v1395
      %v1516 = vadd.f32 %v1212, %v1398
      %v1517 = vadd.f32 %v1217, %v1403
      %v1518 = vadd.f32 %v1220, %v1406
      %v1519 = vadd.f32 %v1225, %v1411
      %v1520 = vadd.f32 %v1228, %v1414
      %v1521 = vadd.f32 %v1233, %v1419
      %v1522 = vadd.f32 %v1236, %v1422
      %v1523 = vadd.f32 %v1241, %v1427
      %v1524 = vadd.f32 %v1244, %v1430
      %v1525 = vadd.f32 %v1249, %v1435
      %v1526 = vadd.f32 %v1252, %v1438
      %v1527 = vadd.f32 %v1257, %v1443
      %v1528 = vadd.f32 %v1260, %v1446
      %v1529 = vadd.f32 %v1265, %v1451
      %v1530 = vadd.f32 %v1268, %v1454
      %v1531 = vadd.f32 %v1273, %v1459
      %v1532 = vadd.f32 %v1276, %v1462
      %v1533 = vadd.f32 %v1281, %v1467
      %v1534 = vadd.f32 %v1284, %v1470
      %v1535 = vadd.f32 %v1289, %v1475
      %v1536 = vadd.f32 %v1292, %v1478
      %v1537 = vadd.f32 %v1297, %v1483
      %v1538 = vadd.f32 %v1300, %v1486
      %v1539 = vadd.f32 %v1305, %v1491
      %v1540 = vadd.f32 %v1308, %v1494
      %v1541 = vadd.f32 %v1313, %v1499
      %v1542 = vadd.f32 %v1316, %v1502
      %v1543 = vadd.f32 %v1321, %v1507
      %v1544 = vadd.f32 %v1324, %v1510
      %v1546 = vshrl.u32 %v357, 16
      %v1548 = vrot.slane %v1546, 4
      %v1549 = vshll.u32 %v357, 16
      %v1551 = vrot.slane %v1549, 5
      %v1552 = vor.u32 %v1548, %v1551
      %v1553 = vrot.slane %v1552, 4
      %v1555 = vshll.u32 %v358, 16
      %v1557 = vrot.slane %v1555, 5
      %v1558 = vsel %vm366, %v1553, %v1557
      %v1559 = vshrl.u32 %v358, 16
      %v1561 = vrot.slane %v1559, 4
      %v1562 = vor.u32 %v1561, %v1557
      %v1563 = vrot.slane %v1562, 4
      %v1565 = vshll.u32 %v359, 16
      %v1567 = vrot.slane %v1565, 5
      %v1568 = vsel %vm366, %v1563, %v1567
      %s1569 = scalar_lea.vmem %s2, 48
      %v1570 = vld [vmem:[%s1569] sm:$0xf]
      %v1571 = vld [vmem:[%s1569 + $0x4] sm:$0xf]
      %v1572 = vld [vmem:[%s1569 + $0x8] sm:$0xf]
      %v1573 = vld [vmem:[%s1569 + $0xc] sm:$0xf]
      %v1574 = vunpack.c.l.b16 %v1558
      %v1575 = vunpack.c.l.b16 %v1568
      %v1576 = vpack.c.b16 %v1575, %v1574
      %v1581 = vunpack.c.l.b16 %v1570
      %v1582 = vunpack.c.l.b16 %v1571
      %v1583 = vunpack.c.l.b16 %v1572
      %v1584 = vunpack.c.l.b16 %v1573
      %v1585 = vpack.c.b16 %v1582, %v1581
      %v1586 = vpack.c.b16 %v1584, %v1583
      %v1590 = vsel %vm816, %v1576, 0
      %1592 = vmatprep.subr.bf16.mxu0 0
      %1593 = vmatpush1.bf16.msra.mxu0 %v1585
      %1594 = vmatprep.subr.bf16.mxu0 0
      %1595 = vmatpush1.bf16.msra.mxu0 %v1586
      %1596 = vmatprep.subr.bf16.mxu0 0
      %1597 = vmatpush1.bf16.msra.mxu0 0
      %1598 = vmatprep.subr.bf16.mxu0 0
      %1599 = vmatpush1.bf16.msra.mxu0 0
      %1600 = vmatprep.subr.bf16.mxu0 0
      %1601 = vmatpush1.bf16.msra.mxu0 0
      %1602 = vmatprep.subr.bf16.mxu0 0
      %1603 = vmatpush1.bf16.msra.mxu0 0
      %1604 = vmatprep.subr.bf16.mxu0 0
      %1605 = vmatpush1.bf16.msra.mxu0 0
      %1606 = vmatprep.subr.bf16.mxu0 0
      %1607 = vmatpush1.bf16.msra.mxu0 0
      %1608 = vmatprep.subr.bf16.mxu0 0
      %1609 = vmatpush1.bf16.msra.mxu0 0
      %1610 = vmatprep.subr.bf16.mxu0 0
      %1611 = vmatpush1.bf16.msra.mxu0 0
      %1612 = vmatprep.subr.bf16.mxu0 0
      %1613 = vmatpush1.bf16.msra.mxu0 0
      %1614 = vmatprep.subr.bf16.mxu0 0
      %1615 = vmatpush1.bf16.msra.mxu0 0
      %1616 = vmatprep.subr.bf16.mxu0 0
      %1617 = vmatpush1.bf16.msra.mxu0 0
      %1618 = vmatprep.subr.bf16.mxu0 0
      %1619 = vmatpush1.bf16.msra.mxu0 0
      %1620 = vmatprep.subr.bf16.mxu0 0
      %1621 = vmatpush1.bf16.msra.mxu0 0
      %1622 = vmatprep.subr.bf16.mxu0 0
      %1623 = vmatpush1.bf16.msra.mxu0 0
      %1624 = vmatprep.mubr.bf16.mxu0 0
      %1625 = vmatmul.mubr.bf16.gmra.mrb[0].mxu0 %v821
      %v1626 = vpop.f32.mrb[0].mxu0
      %v1627 = vadd.f32 0.0, %v1626
      %v1628 = vpop.f32.mrb[0].mxu0
      %v1629 = vpop.f32.mrb[0].mxu0
      %v1630 = vadd.f32 0.0, %v1629
      %v1631 = vpop.f32.mrb[0].mxu0
      %1632 = vmatprep.mubr.bf16.mxu0 0
      %1633 = vmatmul.mubr.bf16.gmra.mrb[0].mxu0 %v824
      %v1634 = vpop.f32.mrb[0].mxu0
      %v1635 = vadd.f32 0.0, %v1634
      %v1636 = vpop.f32.mrb[0].mxu0
      %v1637 = vpop.f32.mrb[0].mxu0
      %v1638 = vadd.f32 0.0, %v1637
      %v1639 = vpop.f32.mrb[0].mxu0
      %1640 = vmatprep.mubr.bf16.mxu0 0
      %1641 = vmatmul.mubr.bf16.gmra.mrb[0].mxu0 %v827
      %v1642 = vpop.f32.mrb[0].mxu0
      %v1643 = vadd.f32 0.0, %v1642
      %v1644 = vpop.f32.mrb[0].mxu0
      %v1645 = vpop.f32.mrb[0].mxu0
      %v1646 = vadd.f32 0.0, %v1645
      %v1647 = vpop.f32.mrb[0].mxu0
      %1648 = vmatprep.mubr.bf16.mxu0 0
      %1649 = vmatmul.mubr.bf16.gmra.mrb[0].mxu0 %v830
      %v1650 = vpop.f32.mrb[0].mxu0
      %v1651 = vadd.f32 0.0, %v1650
      %v1652 = vpop.f32.mrb[0].mxu0
      %v1653 = vpop.f32.mrb[0].mxu0
      %v1654 = vadd.f32 0.0, %v1653
      %v1655 = vpop.f32.mrb[0].mxu0
      %1656 = vmatprep.mubr.bf16.mxu0 0
      %1657 = vmatmul.mubr.bf16.gmra.mrb[0].mxu0 %v833
      %v1658 = vpop.f32.mrb[0].mxu0
      %v1659 = vadd.f32 0.0, %v1658
      %v1660 = vpop.f32.mrb[0].mxu0
      %v1661 = vpop.f32.mrb[0].mxu0
      %v1662 = vadd.f32 0.0, %v1661
      %v1663 = vpop.f32.mrb[0].mxu0
      %1664 = vmatprep.mubr.bf16.mxu0 0
      %1665 = vmatmul.mubr.bf16.gmra.mrb[0].mxu0 %v836
      %v1666 = vpop.f32.mrb[0].mxu0
      %v1667 = vadd.f32 0.0, %v1666
      %v1668 = vpop.f32.mrb[0].mxu0
      %v1669 = vpop.f32.mrb[0].mxu0
      %v1670 = vadd.f32 0.0, %v1669
      %v1671 = vpop.f32.mrb[0].mxu0
      %1672 = vmatprep.mubr.bf16.mxu0 0
      %1673 = vmatmul.mubr.bf16.gmra.mrb[0].mxu0 %v839
      %v1674 = vpop.f32.mrb[0].mxu0
      %v1675 = vadd.f32 0.0, %v1674
      %v1676 = vpop.f32.mrb[0].mxu0
      %v1677 = vpop.f32.mrb[0].mxu0
      %v1678 = vadd.f32 0.0, %v1677
      %v1679 = vpop.f32.mrb[0].mxu0
      %1680 = vmatprep.mubr.bf16.mxu0 0
      %1681 = vmatmul.mubr.bf16.gmra.mrb[0].mxu0 %v842
      %v1682 = vpop.f32.mrb[0].mxu0
      %v1683 = vadd.f32 0.0, %v1682
      %v1684 = vpop.f32.mrb[0].mxu0
      %v1685 = vpop.f32.mrb[0].mxu0
      %v1686 = vadd.f32 0.0, %v1685
      %v1687 = vpop.f32.mrb[0].mxu0
      %1688 = vmatprep.mubr.bf16.mxu0 0
      %1689 = vmatmul.mubr.bf16.gmra.mrb[0].mxu0 %v845
      %v1690 = vpop.f32.mrb[0].mxu0
      %v1691 = vadd.f32 0.0, %v1690
      %v1692 = vpop.f32.mrb[0].mxu0
      %v1693 = vpop.f32.mrb[0].mxu0
      %v1694 = vadd.f32 0.0, %v1693
      %v1695 = vpop.f32.mrb[0].mxu0
      %1696 = vmatprep.mubr.bf16.mxu0 0
      %1697 = vmatmul.mubr.bf16.gmra.mrb[0].mxu0 %v848
      %v1698 = vpop.f32.mrb[0].mxu0
      %v1699 = vadd.f32 0.0, %v1698
      %v1700 = vpop.f32.mrb[0].mxu0
      %v1701 = vpop.f32.mrb[0].mxu0
      %v1702 = vadd.f32 0.0, %v1701
      %v1703 = vpop.f32.mrb[0].mxu0
      %1704 = vmatprep.mubr.bf16.mxu0 0
      %1705 = vmatmul.mubr.bf16.gmra.mrb[0].mxu0 %v851
      %v1706 = vpop.f32.mrb[0].mxu0
      %v1707 = vadd.f32 0.0, %v1706
      %v1708 = vpop.f32.mrb[0].mxu0
      %v1709 = vpop.f32.mrb[0].mxu0
      %v1710 = vadd.f32 0.0, %v1709
      %v1711 = vpop.f32.mrb[0].mxu0
      %1712 = vmatprep.mubr.bf16.mxu0 0
      %1713 = vmatmul.mubr.bf16.gmra.mrb[0].mxu0 %v854
      %v1714 = vpop.f32.mrb[0].mxu0
      %v1715 = vadd.f32 0.0, %v1714
      %v1716 = vpop.f32.mrb[0].mxu0
      %v1717 = vpop.f32.mrb[0].mxu0
      %v1718 = vadd.f32 0.0, %v1717
      %v1719 = vpop.f32.mrb[0].mxu0
      %1720 = vmatprep.mubr.bf16.mxu0 0
      %1721 = vmatmul.mubr.bf16.gmra.mrb[0].mxu0 %v857
      %v1722 = vpop.f32.mrb[0].mxu0
      %v1723 = vadd.f32 0.0, %v1722
      %v1724 = vpop.f32.mrb[0].mxu0
      %v1725 = vpop.f32.mrb[0].mxu0
      %v1726 = vadd.f32 0.0, %v1725
      %v1727 = vpop.f32.mrb[0].mxu0
      %1728 = vmatprep.mubr.bf16.mxu0 0
      %1729 = vmatmul.mubr.bf16.gmra.mrb[0].mxu0 %v860
      %v1730 = vpop.f32.mrb[0].mxu0
      %v1731 = vadd.f32 0.0, %v1730
      %v1732 = vpop.f32.mrb[0].mxu0
      %v1733 = vpop.f32.mrb[0].mxu0
      %v1734 = vadd.f32 0.0, %v1733
      %v1735 = vpop.f32.mrb[0].mxu0
      %1736 = vmatprep.mubr.bf16.mxu0 0
      %1737 = vmatmul.mubr.bf16.gmra.mrb[0].mxu0 %v863
      %v1738 = vpop.f32.mrb[0].mxu0
      %v1739 = vadd.f32 0.0, %v1738
      %v1740 = vpop.f32.mrb[0].mxu0
      %v1741 = vpop.f32.mrb[0].mxu0
      %v1742 = vadd.f32 0.0, %v1741
      %v1743 = vpop.f32.mrb[0].mxu0
      %1744 = vmatprep.mubr.bf16.mxu0 0
      %1745 = vmatmul.mubr.bf16.gmra.mrb[0].mxu0 %v1590
      %v1746 = vpop.f32.mrb[0].mxu0
      %v1747 = vadd.f32 0.0, %v1746
      %v1748 = vpop.f32.mrb[0].mxu0
      %v1749 = vpop.f32.mrb[0].mxu0
      %v1750 = vadd.f32 0.0, %v1749
      %v1751 = vpop.f32.mrb[0].mxu0
      %1752 = vdwg.mxu0
      %v1753 = vadd.f32 %v1513, %v1627
      %v1754 = vadd.f32 %v1514, %v1630
      %v1755 = vadd.f32 %v1515, %v1635
      %v1756 = vadd.f32 %v1516, %v1638
      %v1757 = vadd.f32 %v1517, %v1643
      %v1758 = vadd.f32 %v1518, %v1646
      %v1759 = vadd.f32 %v1519, %v1651
      %v1760 = vadd.f32 %v1520, %v1654
      %v1761 = vadd.f32 %v1521, %v1659
      %v1762 = vadd.f32 %v1522, %v1662
      %v1763 = vadd.f32 %v1523, %v1667
      %v1764 = vadd.f32 %v1524, %v1670
      %v1765 = vadd.f32 %v1525, %v1675
      %v1766 = vadd.f32 %v1526, %v1678
      %v1767 = vadd.f32 %v1527, %v1683
      %v1768 = vadd.f32 %v1528, %v1686
      %v1769 = vadd.f32 %v1529, %v1691
      %v1770 = vadd.f32 %v1530, %v1694
      %v1771 = vadd.f32 %v1531, %v1699
      %v1772 = vadd.f32 %v1532, %v1702
      %v1773 = vadd.f32 %v1533, %v1707
      %v1774 = vadd.f32 %v1534, %v1710
      %v1775 = vadd.f32 %v1535, %v1715
      %v1776 = vadd.f32 %v1536, %v1718
      %v1777 = vadd.f32 %v1537, %v1723
      %v1778 = vadd.f32 %v1538, %v1726
      %v1779 = vadd.f32 %v1539, %v1731
      %v1780 = vadd.f32 %v1540, %v1734
      %v1781 = vadd.f32 %v1541, %v1739
      %v1782 = vadd.f32 %v1542, %v1742
      %v1783 = vadd.f32 %v1543, %v1747
      %v1784 = vadd.f32 %v1544, %v1750
      %v1785 = vld [vmem:[%s3] sm:$0x1]
      %v1787 = vlaneseq
      %v1788 = vshrl.u32 %v1787, 7
      %v1789 = vsub.s32 0, %v1788
      %v1790 = vrot.slane %v1785, %v1789
      %v1792 = vadd.f32 %v1753, %v1790
      %v1793 = vadd.f32 %v1754, %v1790
      %v1794 = vadd.f32 %v1755, %v1790
      %v1795 = vadd.f32 %v1756, %v1790
      %v1796 = vadd.f32 %v1757, %v1790
      %v1797 = vadd.f32 %v1758, %v1790
      %v1798 = vadd.f32 %v1759, %v1790
      %v1799 = vadd.f32 %v1760, %v1790
      %v1800 = vadd.f32 %v1761, %v1790
      %v1801 = vadd.f32 %v1762, %v1790
      %v1802 = vadd.f32 %v1763, %v1790
      %v1803 = vadd.f32 %v1764, %v1790
      %v1804 = vadd.f32 %v1765, %v1790
      %v1805 = vadd.f32 %v1766, %v1790
      %v1806 = vadd.f32 %v1767, %v1790
      %v1807 = vadd.f32 %v1768, %v1790
      %v1808 = vadd.f32 %v1769, %v1790
      %v1809 = vadd.f32 %v1770, %v1790
      %v1810 = vadd.f32 %v1771, %v1790
      %v1811 = vadd.f32 %v1772, %v1790
      %v1812 = vadd.f32 %v1773, %v1790
      %v1813 = vadd.f32 %v1774, %v1790
      %v1814 = vadd.f32 %v1775, %v1790
      %v1815 = vadd.f32 %v1776, %v1790
      %v1816 = vadd.f32 %v1777, %v1790
      %v1817 = vadd.f32 %v1778, %v1790
      %v1818 = vadd.f32 %v1779, %v1790
      %v1819 = vadd.f32 %v1780, %v1790
      %v1820 = vadd.f32 %v1781, %v1790
      %v1821 = vadd.f32 %v1782, %v1790
      %v1822 = vadd.f32 %v1783, %v1790
      %v1823 = vadd.f32 %v1784, %v1790
      %vm1824 = vcmp.gt.f32.partialorder %v1792, 0.0
      %vm1825 = vcmp.gt.f32.partialorder %v1793, 0.0
      %vm1826 = vcmp.gt.f32.partialorder %v1794, 0.0
      %vm1827 = vcmp.gt.f32.partialorder %v1795, 0.0
      %vm1828 = vcmp.gt.f32.partialorder %v1796, 0.0
      %vm1829 = vcmp.gt.f32.partialorder %v1797, 0.0
      %vm1830 = vcmp.gt.f32.partialorder %v1798, 0.0
      %vm1831 = vcmp.gt.f32.partialorder %v1799, 0.0
      %vm1832 = vcmp.gt.f32.partialorder %v1800, 0.0
      %vm1833 = vcmp.gt.f32.partialorder %v1801, 0.0
      %vm1834 = vcmp.gt.f32.partialorder %v1802, 0.0
      %vm1835 = vcmp.gt.f32.partialorder %v1803, 0.0
      %vm1836 = vcmp.gt.f32.partialorder %v1804, 0.0
      %vm1837 = vcmp.gt.f32.partialorder %v1805, 0.0
      %vm1838 = vcmp.gt.f32.partialorder %v1806, 0.0
      %vm1839 = vcmp.gt.f32.partialorder %v1807, 0.0
      %vm1840 = vcmp.gt.f32.partialorder %v1808, 0.0
      %vm1841 = vcmp.gt.f32.partialorder %v1809, 0.0
      %vm1842 = vcmp.gt.f32.partialorder %v1810, 0.0
      %vm1843 = vcmp.gt.f32.partialorder %v1811, 0.0
      %vm1844 = vcmp.gt.f32.partialorder %v1812, 0.0
      %vm1845 = vcmp.gt.f32.partialorder %v1813, 0.0
      %vm1846 = vcmp.gt.f32.partialorder %v1814, 0.0
      %vm1847 = vcmp.gt.f32.partialorder %v1815, 0.0
      %vm1848 = vcmp.gt.f32.partialorder %v1816, 0.0
      %vm1849 = vcmp.gt.f32.partialorder %v1817, 0.0
      %vm1850 = vcmp.gt.f32.partialorder %v1818, 0.0
      %vm1851 = vcmp.gt.f32.partialorder %v1819, 0.0
      %vm1852 = vcmp.gt.f32.partialorder %v1820, 0.0
      %vm1853 = vcmp.gt.f32.partialorder %v1821, 0.0
      %vm1854 = vcmp.gt.f32.partialorder %v1822, 0.0
      %vm1855 = vcmp.gt.f32.partialorder %v1823, 0.0
      %v1856 = vmul.f32 %v1792, 0.2
      %v1857 = vmul.f32 %v1793, 0.2
      %v1858 = vmul.f32 %v1794, 0.2
      %v1859 = vmul.f32 %v1795, 0.2
      %v1860 = vmul.f32 %v1796, 0.2
      %v1861 = vmul.f32 %v1797, 0.2
      %v1862 = vmul.f32 %v1798, 0.2
      %v1863 = vmul.f32 %v1799, 0.2
      %v1864 = vmul.f32 %v1800, 0.2
      %v1865 = vmul.f32 %v1801, 0.2
      %v1866 = vmul.f32 %v1802, 0.2
      %v1867 = vmul.f32 %v1803, 0.2
      %v1868 = vmul.f32 %v1804, 0.2
      %v1869 = vmul.f32 %v1805, 0.2
      %v1870 = vmul.f32 %v1806, 0.2
      %v1871 = vmul.f32 %v1807, 0.2
      %v1872 = vmul.f32 %v1808, 0.2
      %v1873 = vmul.f32 %v1809, 0.2
      %v1874 = vmul.f32 %v1810, 0.2
      %v1875 = vmul.f32 %v1811, 0.2
      %v1876 = vmul.f32 %v1812, 0.2
      %v1877 = vmul.f32 %v1813, 0.2
      %v1878 = vmul.f32 %v1814, 0.2
      %v1879 = vmul.f32 %v1815, 0.2
      %v1880 = vmul.f32 %v1816, 0.2
      %v1881 = vmul.f32 %v1817, 0.2
      %v1882 = vmul.f32 %v1818, 0.2
      %v1883 = vmul.f32 %v1819, 0.2
      %v1884 = vmul.f32 %v1820, 0.2
      %v1885 = vmul.f32 %v1821, 0.2
      %v1886 = vmul.f32 %v1822, 0.2
      %v1887 = vmul.f32 %v1823, 0.2
      %v1888 = vsel %vm1824, %v1792, %v1856
      %v1889 = vsel %vm1825, %v1793, %v1857
      %v1890 = vsel %vm1826, %v1794, %v1858
      %v1891 = vsel %vm1827, %v1795, %v1859
      %v1892 = vsel %vm1828, %v1796, %v1860
      %v1893 = vsel %vm1829, %v1797, %v1861
      %v1894 = vsel %vm1830, %v1798, %v1862
      %v1895 = vsel %vm1831, %v1799, %v1863
      %v1896 = vsel %vm1832, %v1800, %v1864
      %v1897 = vsel %vm1833, %v1801, %v1865
      %v1898 = vsel %vm1834, %v1802, %v1866
      %v1899 = vsel %vm1835, %v1803, %v1867
      %v1900 = vsel %vm1836, %v1804, %v1868
      %v1901 = vsel %vm1837, %v1805, %v1869
      %v1902 = vsel %vm1838, %v1806, %v1870
      %v1903 = vsel %vm1839, %v1807, %v1871
      %v1904 = vsel %vm1840, %v1808, %v1872
      %v1905 = vsel %vm1841, %v1809, %v1873
      %v1906 = vsel %vm1842, %v1810, %v1874
      %v1907 = vsel %vm1843, %v1811, %v1875
      %v1908 = vsel %vm1844, %v1812, %v1876
      %v1909 = vsel %vm1845, %v1813, %v1877
      %v1910 = vsel %vm1846, %v1814, %v1878
      %v1911 = vsel %vm1847, %v1815, %v1879
      %v1912 = vsel %vm1848, %v1816, %v1880
      %v1913 = vsel %vm1849, %v1817, %v1881
      %v1914 = vsel %vm1850, %v1818, %v1882
      %v1915 = vsel %vm1851, %v1819, %v1883
      %v1916 = vsel %vm1852, %v1820, %v1884
      %v1917 = vsel %vm1853, %v1821, %v1885
      %v1918 = vsel %vm1854, %v1822, %v1886
      %v1919 = vsel %vm1855, %v1823, %v1887
      %v1920 = vpack.c.bf16 %v1889, %v1888
      %v1921 = vpack.c.bf16 %v1891, %v1890
      %v1922 = vpack.c.bf16 %v1893, %v1892
      %v1923 = vpack.c.bf16 %v1895, %v1894
      %v1924 = vpack.c.bf16 %v1897, %v1896
      %v1925 = vpack.c.bf16 %v1899, %v1898
      %v1926 = vpack.c.bf16 %v1901, %v1900
      %v1927 = vpack.c.bf16 %v1903, %v1902
      %v1928 = vpack.c.bf16 %v1905, %v1904
      %v1929 = vpack.c.bf16 %v1907, %v1906
      %v1930 = vpack.c.bf16 %v1909, %v1908
      %v1931 = vpack.c.bf16 %v1911, %v1910
      %v1932 = vpack.c.bf16 %v1913, %v1912
      %v1933 = vpack.c.bf16 %v1915, %v1914
      %v1934 = vpack.c.bf16 %v1917, %v1916
      %v1935 = vpack.c.bf16 %v1919, %v1918
      %v1952 = vunpack.c.l.b16 %v1920
      %v1953 = vunpack.c.h.b16 %v1920
      %v1954 = vunpack.c.l.b16 %v1921
      %v1955 = vunpack.c.h.b16 %v1921
      %v1956 = vunpack.c.l.b16 %v1922
      %v1957 = vunpack.c.h.b16 %v1922
      %v1958 = vunpack.c.l.b16 %v1923
      %v1959 = vunpack.c.h.b16 %v1923
      %v1960 = vunpack.c.l.b16 %v1924
      %v1961 = vunpack.c.h.b16 %v1924
      %v1962 = vunpack.c.l.b16 %v1925
      %v1963 = vunpack.c.h.b16 %v1925
      %v1964 = vunpack.c.l.b16 %v1926
      %v1965 = vunpack.c.h.b16 %v1926
      %v1966 = vunpack.c.l.b16 %v1927
      %v1967 = vunpack.c.h.b16 %v1927
      %v1968 = vunpack.c.l.b16 %v1928
      %v1969 = vunpack.c.h.b16 %v1928
      %v1970 = vunpack.c.l.b16 %v1929
      %v1971 = vunpack.c.h.b16 %v1929
      %v1972 = vunpack.c.l.b16 %v1930
      %v1973 = vunpack.c.h.b16 %v1930
      %v1974 = vunpack.c.l.b16 %v1931
      %v1975 = vunpack.c.h.b16 %v1931
      %v1976 = vunpack.c.l.b16 %v1932
      %v1977 = vunpack.c.h.b16 %v1932
      %v1978 = vunpack.c.l.b16 %v1933
      %v1979 = vunpack.c.h.b16 %v1933
      %v1980 = vunpack.c.l.b16 %v1934
      %v1981 = vunpack.c.h.b16 %v1934
      %v1982 = vunpack.c.l.b16 %v1935
      %v1983 = vunpack.c.h.b16 %v1935
      %v1984 = vpack.c.b16 %v1952, %v1952
      %v1985 = vpack.c.b16 %v1953, %v1953
      %v1986 = vpack.c.b16 %v1954, %v1954
      %v1987 = vpack.c.b16 %v1955, %v1955
      %v1988 = vpack.c.b16 %v1956, %v1956
      %v1989 = vpack.c.b16 %v1957, %v1957
      %v1990 = vpack.c.b16 %v1958, %v1958
      %v1991 = vpack.c.b16 %v1959, %v1959
      %v1992 = vpack.c.b16 %v1960, %v1960
      %v1993 = vpack.c.b16 %v1961, %v1961
      %v1994 = vpack.c.b16 %v1962, %v1962
      %v1995 = vpack.c.b16 %v1963, %v1963
      %v1996 = vpack.c.b16 %v1964, %v1964
      %v1997 = vpack.c.b16 %v1965, %v1965
      %v1998 = vpack.c.b16 %v1966, %v1966
      %v1999 = vpack.c.b16 %v1967, %v1967
      %v2000 = vpack.c.b16 %v1968, %v1968
      %v2001 = vpack.c.b16 %v1969, %v1969
      %v2002 = vpack.c.b16 %v1970, %v1970
      %v2003 = vpack.c.b16 %v1971, %v1971
      %v2004 = vpack.c.b16 %v1972, %v1972
      %v2005 = vpack.c.b16 %v1973, %v1973
      %v2006 = vpack.c.b16 %v1974, %v1974
      %v2007 = vpack.c.b16 %v1975, %v1975
      %v2008 = vpack.c.b16 %v1976, %v1976
      %v2009 = vpack.c.b16 %v1977, %v1977
      %v2010 = vpack.c.b16 %v1978, %v1978
      %v2011 = vpack.c.b16 %v1979, %v1979
      %v2012 = vpack.c.b16 %v1980, %v1980
      %v2013 = vpack.c.b16 %v1981, %v1981
      %v2014 = vpack.c.b16 %v1982, %v1982
      %v2015 = vpack.c.b16 %v1983, %v1983
      %vm2048 = vcmask 519168
      %2049 = vst.msk [vmem:[%s305] sm:$0xf] %vm2048, %v1984
      %2050 = vst.msk [vmem:[%s305 + $0x4] sm:$0xf] %vm2048, %v1985
      %2051 = vst.msk [vmem:[%s305 + $0x8] sm:$0xf] %vm2048, %v1986
      %2052 = vst.msk [vmem:[%s305 + $0xc] sm:$0xf] %vm2048, %v1987
      %2053 = vst.msk [vmem:[%s305 + $0x10] sm:$0xf] %vm2048, %v1988
      %2054 = vst.msk [vmem:[%s305 + $0x14] sm:$0xf] %vm2048, %v1989
      %2055 = vst.msk [vmem:[%s305 + $0x18] sm:$0xf] %vm2048, %v1990
      %2056 = vst.msk [vmem:[%s305 + $0x1c] sm:$0xf] %vm2048, %v1991
      %2057 = vst.msk [vmem:[%s305 + $0x20] sm:$0xf] %vm2048, %v1992
      %2058 = vst.msk [vmem:[%s305 + $0x24] sm:$0xf] %vm2048, %v1993
      %2059 = vst.msk [vmem:[%s305 + $0x28] sm:$0xf] %vm2048, %v1994
      %2060 = vst.msk [vmem:[%s305 + $0x2c] sm:$0xf] %vm2048, %v1995
      %2061 = vst.msk [vmem:[%s305 + $0x30] sm:$0xf] %vm2048, %v1996
      %2062 = vst.msk [vmem:[%s305 + $0x34] sm:$0xf] %vm2048, %v1997
      %2063 = vst.msk [vmem:[%s305 + $0x38] sm:$0xf] %vm2048, %v1998
      %2064 = vst.msk [vmem:[%s305 + $0x3c] sm:$0xf] %vm2048, %v1999
      %2065 = vst.msk [vmem:[%s305 + $0x40] sm:$0xf] %vm2048, %v2000
      %2066 = vst.msk [vmem:[%s305 + $0x44] sm:$0xf] %vm2048, %v2001
      %2067 = vst.msk [vmem:[%s305 + $0x48] sm:$0xf] %vm2048, %v2002
      %2068 = vst.msk [vmem:[%s305 + $0x4c] sm:$0xf] %vm2048, %v2003
      %2069 = vst.msk [vmem:[%s305 + $0x50] sm:$0xf] %vm2048, %v2004
      %2070 = vst.msk [vmem:[%s305 + $0x54] sm:$0xf] %vm2048, %v2005
      %2071 = vst.msk [vmem:[%s305 + $0x58] sm:$0xf] %vm2048, %v2006
      %2072 = vst.msk [vmem:[%s305 + $0x5c] sm:$0xf] %vm2048, %v2007
      %2073 = vst.msk [vmem:[%s305 + $0x60] sm:$0xf] %vm2048, %v2008
      %2074 = vst.msk [vmem:[%s305 + $0x64] sm:$0xf] %vm2048, %v2009
      %2075 = vst.msk [vmem:[%s305 + $0x68] sm:$0xf] %vm2048, %v2010
      %2076 = vst.msk [vmem:[%s305 + $0x6c] sm:$0xf] %vm2048, %v2011
      %2077 = vst.msk [vmem:[%s305 + $0x70] sm:$0xf] %vm2048, %v2012
      %2078 = vst.msk [vmem:[%s305 + $0x74] sm:$0xf] %vm2048, %v2013
      %2079 = vst.msk [vmem:[%s305 + $0x78] sm:$0xf] %vm2048, %v2014
      %2080 = vst.msk [vmem:[%s305 + $0x7c] sm:$0xf] %vm2048, %v2015
      %s2081 = sadd.s32 %s19, %s20
      %s2082 = smul.u32 32, %s2081
      %p2083 = scmp.lt.s32.totalorder %s2082, 63
      %s2084 = scalar_select %p2083, %s2082, 63
      %s2085 = smul.addr %s2084, 4
      %s2086 = scalar_lea.vmem %s4, %s2085
      // Predicated region
      $region37: #{discriminator_forward.4} parent=35 // pred_check
        %p2087 = pneg %p149
      $region38: #{discriminator_forward.4} parent=35 // pred_check_branch
        %2089 = sbr.rel (%p2087) target = $region40
      $region39: #{discriminator_forward.4} parent=35 // pred_region
        %s2090 = sadd.s32 %s19, %s20
        %s2091 = smul.u32 32, %s2090
      $region40: #{discriminator_forward.4} parent=35 // pred_fallthru
        _
    $region36: #{discriminator_forward.4} parent=5 // pred_fallthru
      _
    %p2092 = scmp.le.s32.totalorder 2, %s10
    // Predicated region
    $region41: #{discriminator_forward.4} parent=5 // pred_check
      %p2093 = pneg %p2092
    $region42: #{discriminator_forward.4} parent=5 // pred_check_branch
      %2095 = sbr.rel (%p2093) target = $region44
    $region43: #{discriminator_forward.4} parent=5 // pred_region
      %s2096 = ssub.s32 %s10, 2
      // Predicated region
      $region45: #{discriminator_forward.4} parent=43 // pred_check
        %p2097 = pneg %p155
      $region46: #{discriminator_forward.4} parent=43 // pred_check_branch
        %2099 = sbr.rel (%p2097) target = $region48
      $region47: #{discriminator_forward.4} parent=43 // pred_region
        %s2100 = sadd.s32 %s21, %s22
        %s2101 = smul.u32 32, %s2100
        %p2102 = scmp.lt.s32.totalorder %s2101, 63
        %s2103 = scalar_select %p2102, %s2101, 63
        %s2104 = smul.addr %s2103, 4
        %s2105 = scalar_lea.vmem %s4, %s2104
      $region48: #{discriminator_forward.4} parent=43 // pred_fallthru
        _
    $region44: #{discriminator_forward.4} parent=5 // pred_fallthru
      _
  $region6: #{discriminator_forward.4} parent=0 // loop_footer
    %s14 = sadd.s32 1, %s10
  $region7: #{discriminator_forward.4} parent=0 // loop_footer_branch
    %9 = sbr.rel target = $region3
  $region8: #{discriminator_forward.4} parent=0 // loop_exit
    _

// kernel: discriminator_forward.5
$region0: #{discriminator_forward.5}
  #allocation0 [shape = 'u32[]', space=smem, size = 0x4, offset = 0x4, fixed_abs, tag = 'smem constant byte address 0x4 - core index']
  #allocation1 [shape = 'u32[144,128]{1,0:T(1,128)}', space=vmem, size = 0x12000, scoped, tag = 'internal scratch']
  %s0 = inlined_call_operand.vmem [shape: bf16[2,9,9,256], index: 0, kind: input, shape index: {}, may-alias: {0,1}]
  %s1 = inlined_call_operand.vmem [shape: bf16[2,9,9,256], index: 1, kind: input, shape index: {}, may-alias: {0,1}]
  %s2 = inlined_call_operand.vmem [shape: bf16[4,256,128], index: 2, kind: input, shape index: {}]
  %s3 = inlined_call_operand.vmem [shape: f32[1,128], index: 3, kind: input, shape index: {}]
  %s4 = inlined_call_operand.vmem [shape: bf16[128,128], index: 4, kind: output, shape index: {0}]
  %s5 = inlined_call_operand.vmem [shape: f32[2,2,128], index: 5, kind: output, shape index: {1}]
  %6 = xla_tuple %s4, %s5
  %s7 = sld [smem:[#allocation0]]
  $region57: #{discriminator_forward.5} parent=0
    _
  %s9 = ssub.s32 1, %s7
  %s10 = scalar_select 0, %s9, %s7
  loop: start=0, step=1, limit=4
  $region2: #{discriminator_forward.5} parent=0 // loop_pre_header
    _
  $region3: #{discriminator_forward.5} parent=0 // loop_header
    %s12 = sphi 0, %s16
    %p13 = scmp.ge.s32.totalorder %s12, 4
    %s19 = sphi 0, %s31
    %s20 = sphi 0, %s27
    %s21 = sphi 0, %s19
    %s22 = sphi 0, %s20
    %s23 = sphi 0, %s21
    %s24 = sphi 0, %s22
    %s36 = sphi 0, %s38
    %s39 = sphi 0, %s36
    %s40 = sphi 0, %s39
    %s56 = sphi 0, %s40
    %s68 = sphi 0, %s70
    %s71 = sphi 0, %s68
    %s72 = sphi 0, %s71
    %s88 = sphi 0, %s72
    %s92 = sphi 0, %s92
    %s94 = sphi 0, %s92
    %s95 = sphi 0, %s94
    %s109 = sphi 0, %s95
    %s113 = sphi 0, %s113
    %s115 = sphi 0, %s113
    %s116 = sphi 0, %s115
    %s130 = sphi 0, %s116
    %s138 = sphi 0, %s140
    %s141 = sphi 0, %s138
    %s142 = sphi 0, %s141
    %s158 = sphi 0, %s142
    %s166 = sphi 0, %s168
    %s169 = sphi 0, %s166
    %s170 = sphi 0, %s169
    %s186 = sphi 0, %s170
  $region4: #{discriminator_forward.5} parent=0 // loop_header_branch
    %15 = sbr.rel (%p13) target = $region8
  $region5: #{discriminator_forward.5} parent=0 // loop_body
    %s17 = ssub.s32 %s12, 1
    %s18 = ssub.s32 %s12, 2
    %s25 = sadd.s32 1, %s20
    %p26 = scmp.ge.s32.totalorder %s25, 1
    %s27 = scalar_select %p26, 0, %s25
    %s28 = sadd.s32 1, %s19
    %s29 = scalar_select %p26, %s28, %s19
    %p30 = scmp.ge.s32.totalorder %s29, 2
    %s31 = scalar_select %p30, 0, %s29
    %s32 = ssub.s32 %s19, %s31
    %s33 = ssub.s32 %s20, %s27
    %s34 = sor.u32 %s32, %s33
    %p35 = scmp.eq.s32.totalorder %s34, 0
    %s37 = sadd.s32 %s36, 1
    %s38 = scalar_select %p35, %s36, %s37
    %p41 = pneg %p35
    %p42 = scmp.eq.s32.totalorder %s12, 1
    %p43 = por %p41, %p42
    %p44 = scmp.ne.s32.totalorder %s36, %s39
    %p45 = scmp.eq.s32.totalorder %s12, 0
    %p46 = por %p44, %p45
    %p47 = scmp.ne.s32.totalorder %s36, %s39
    %p48 = scmp.eq.s32.totalorder %s17, 1
    %p49 = por %p47, %p48
    %p50 = scmp.ne.s32.totalorder %s39, %s40
    %p51 = scmp.eq.s32.totalorder %s17, 0
    %p52 = por %p50, %p51
    %p53 = scmp.ne.s32.totalorder %s39, %s40
    %p54 = scmp.eq.s32.totalorder %s18, 1
    %p55 = por %p53, %p54
    %p57 = scmp.ne.s32.totalorder %s40, %s56
    %p58 = scmp.eq.s32.totalorder %s18, 0
    %p59 = por %p57, %p58
    %s60 = sadd.s32 %s20, 1
    %s61 = smul.u32 %s60, 8
    %s62 = sadd.s32 %s27, 1
    %s63 = smul.u32 %s62, 8
    %s64 = ssub.s32 %s19, %s31
    %s65 = ssub.s32 %s61, %s63
    %s66 = sor.u32 %s64, %s65
    %p67 = scmp.eq.s32.totalorder %s66, 0
    %s69 = sadd.s32 %s68, 1
    %s70 = scalar_select %p67, %s68, %s69
    %p73 = pneg %p67
    %p74 = scmp.eq.s32.totalorder %s12, 1
    %p75 = por %p73, %p74
    %p76 = scmp.ne.s32.totalorder %s68, %s71
    %p77 = scmp.eq.s32.totalorder %s12, 0
    %p78 = por %p76, %p77
    %p79 = scmp.ne.s32.totalorder %s68, %s71
    %p80 = scmp.eq.s32.totalorder %s17, 1
    %p81 = por %p79, %p80
    %p82 = scmp.ne.s32.totalorder %s71, %s72
    %p83 = scmp.eq.s32.totalorder %s17, 0
    %p84 = por %p82, %p83
    %p85 = scmp.ne.s32.totalorder %s71, %s72
    %p86 = scmp.eq.s32.totalorder %s18, 1
    %p87 = por %p85, %p86
    %p89 = scmp.ne.s32.totalorder %s72, %s88
    %p90 = scmp.eq.s32.totalorder %s18, 0
    %p91 = por %p89, %p90
    %s93 = sadd.s32 %s92, 1
    %p96 = scmp.eq.s32.totalorder %s12, 1
    %p97 = scmp.ne.s32.totalorder %s92, %s94
    %p98 = scmp.eq.s32.totalorder %s12, 0
    %p99 = por %p97, %p98
    %p100 = scmp.ne.s32.totalorder %s92, %s94
    %p101 = scmp.eq.s32.totalorder %s17, 1
    %p102 = por %p100, %p101
    %p103 = scmp.ne.s32.totalorder %s94, %s95
    %p104 = scmp.eq.s32.totalorder %s17, 0
    %p105 = por %p103, %p104
    %p106 = scmp.ne.s32.totalorder %s94, %s95
    %p107 = scmp.eq.s32.totalorder %s18, 1
    %p108 = por %p106, %p107
    %p110 = scmp.ne.s32.totalorder %s95, %s109
    %p111 = scmp.eq.s32.totalorder %s18, 0
    %p112 = por %p110, %p111
    %s114 = sadd.s32 %s113, 1
    %p117 = scmp.eq.s32.totalorder %s12, 1
    %p118 = scmp.ne.s32.totalorder %s113, %s115
    %p119 = scmp.eq.s32.totalorder %s12, 0
    %p120 = por %p118, %p119
    %p121 = scmp.ne.s32.totalorder %s113, %s115
    %p122 = scmp.eq.s32.totalorder %s17, 1
    %p123 = por %p121, %p122
    %p124 = scmp.ne.s32.totalorder %s115, %s116
    %p125 = scmp.eq.s32.totalorder %s17, 0
    %p126 = por %p124, %p125
    %p127 = scmp.ne.s32.totalorder %s115, %s116
    %p128 = scmp.eq.s32.totalorder %s18, 1
    %p129 = por %p127, %p128
    %p131 = scmp.ne.s32.totalorder %s116, %s130
    %p132 = scmp.eq.s32.totalorder %s18, 0
    %p133 = por %p131, %p132
    %s134 = sadd.s32 %s19, %s20
    %s135 = sadd.s32 %s31, %s27
    %s136 = ssub.s32 %s134, %s135
    %p137 = scmp.eq.s32.totalorder %s136, 0
    %s139 = sadd.s32 %s138, 1
    %s140 = scalar_select %p137, %s138, %s139
    %p143 = pneg %p137
    %p144 = scmp.eq.s32.totalorder %s12, 1
    %p145 = por %p143, %p144
    %p146 = scmp.ne.s32.totalorder %s138, %s141
    %p147 = scmp.eq.s32.totalorder %s12, 0
    %p148 = por %p146, %p147
    %p149 = scmp.ne.s32.totalorder %s138, %s141
    %p150 = scmp.eq.s32.totalorder %s17, 1
    %p151 = por %p149, %p150
    %p152 = scmp.ne.s32.totalorder %s141, %s142
    %p153 = scmp.eq.s32.totalorder %s17, 0
    %p154 = por %p152, %p153
    %p155 = scmp.ne.s32.totalorder %s141, %s142
    %p156 = scmp.eq.s32.totalorder %s18, 1
    %p157 = por %p155, %p156
    %p159 = scmp.ne.s32.totalorder %s142, %s158
    %p160 = scmp.eq.s32.totalorder %s18, 0
    %p161 = por %p159, %p160
    %s162 = sadd.s32 %s19, %s20
    %s163 = sadd.s32 %s31, %s27
    %s164 = ssub.s32 %s162, %s163
    %p165 = scmp.eq.s32.totalorder %s164, 0
    %s167 = sadd.s32 %s166, 1
    %s168 = scalar_select %p165, %s166, %s167
    %p171 = pneg %p165
    %p172 = scmp.eq.s32.totalorder %s12, 1
    %p173 = por %p171, %p172
    %p174 = scmp.ne.s32.totalorder %s166, %s169
    %p175 = scmp.eq.s32.totalorder %s12, 0
    %p176 = por %p174, %p175
    %p177 = scmp.ne.s32.totalorder %s166, %s169
    %p178 = scmp.eq.s32.totalorder %s17, 1
    %p179 = por %p177, %p178
    %p180 = scmp.ne.s32.totalorder %s169, %s170
    %p181 = scmp.eq.s32.totalorder %s17, 0
    %p182 = por %p180, %p181
    %p183 = scmp.ne.s32.totalorder %s169, %s170
    %p184 = scmp.eq.s32.totalorder %s18, 1
    %p185 = por %p183, %p184
    %p187 = scmp.ne.s32.totalorder %s170, %s186
    %p188 = scmp.eq.s32.totalorder %s18, 0
    %p189 = por %p187, %p188
    %p190 = scmp.le.s32.totalorder 1, %s12
    %p191 = scmp.lt.s32.totalorder %s12, 3
    %p192 = pnand %p190, %p191
    %p193 = pneg %p192
    // Predicated region
    $region9: #{discriminator_forward.5} parent=5 // pred_check
      _
    $region10: #{discriminator_forward.5} parent=5 // pred_check_branch
      %195 = sbr.rel (%p192) target = $region12
    $region11: #{discriminator_forward.5} parent=5 // pred_region
      %s196 = ssub.s32 %s12, 1
      // Predicated region
      $region13: #{discriminator_forward.5} parent=11 // pred_check
        %p197 = pneg %p105
      $region14: #{discriminator_forward.5} parent=11 // pred_check_branch
        %199 = sbr.rel (%p197) target = $region16
      $region15: #{discriminator_forward.5} parent=11 // pred_region
        _
      $region16: #{discriminator_forward.5} parent=11 // pred_fallthru
        _
      // Predicated region
      $region17: #{discriminator_forward.5} parent=11 // pred_check
        %p200 = pneg %p126
      $region18: #{discriminator_forward.5} parent=11 // pred_check_branch
        %202 = sbr.rel (%p200) target = $region20
      $region19: #{discriminator_forward.5} parent=11 // pred_region
        _
      $region20: #{discriminator_forward.5} parent=11 // pred_fallthru
        _
    $region12: #{discriminator_forward.5} parent=5 // pred_fallthru
      _
    %p203 = scmp.lt.s32.totalorder %s12, 2
    // Predicated region
    $region21: #{discriminator_forward.5} parent=5 // pred_check
      %p204 = pneg %p203
    $region22: #{discriminator_forward.5} parent=5 // pred_check_branch
      %206 = sbr.rel (%p204) target = $region24
    $region23: #{discriminator_forward.5} parent=5 // pred_region
      // Predicated region
      $region25: #{discriminator_forward.5} parent=23 // pred_check
        %p207 = pneg %p46
      $region26: #{discriminator_forward.5} parent=23 // pred_check_branch
        %209 = sbr.rel (%p207) target = $region28
      $region27: #{discriminator_forward.5} parent=23 // pred_region
        %s210 = smul.u32 8, %s20
        %s211 = ssub.s32 9, %s210
        %p212 = scmp.lt.s32.totalorder %s211, 8
        %s213 = scalar_select %p212, %s211, 8
        %s214 = smul.u32 64, %s213
        %s215 = smul.u32 %s214, 2
        %s216 = smul.u32 %s215, 2
        %p217 = scmp.lt.s32.totalorder %s19, 1
        %s218 = scalar_select %p217, %s19, 1
        %p219 = scmp.lt.s32.totalorder %s210, 8
        %s220 = scalar_select %p219, %s210, 8
        %s221 = smul.addr %s220, 4
        %s222 = smul.addr %s218, 36
        %s223 = sadd.s32 %s221, %s222
        %s224 = smul.addr %s223, 4
        %s225 = scalar_lea.vmem %s0, %s224
        %s226 = smul.u32 8, %s20
        %s227 = ssub.s32 9, %s226
        %p228 = scmp.lt.s32.totalorder %s227, 8
        %s229 = scalar_select %p228, %s227, 8
        %s230 = smul.u32 64, %s229
        %s231 = smul.u32 %s230, 2
        %s232 = smul.u32 %s231, 2
      $region28: #{discriminator_forward.5} parent=23 // pred_fallthru
        _
      // Predicated region
      $region29: #{discriminator_forward.5} parent=23 // pred_check
        %p233 = pneg %p78
      $region30: #{discriminator_forward.5} parent=23 // pred_check_branch
        %235 = sbr.rel (%p233) target = $region32
      $region31: #{discriminator_forward.5} parent=23 // pred_region
        %s236 = sadd.s32 %s20, 1
        %s237 = smul.u32 %s236, 8
        %p238 = scmp.lt.s32.totalorder %s19, 1
        %s239 = scalar_select %p238, %s19, 1
        %p240 = scmp.lt.s32.totalorder %s237, 8
        %s241 = scalar_select %p240, %s237, 8
        %s242 = smul.addr %s241, 4
        %s243 = smul.addr %s239, 36
        %s244 = sadd.s32 %s242, %s243
        %s245 = smul.addr %s244, 4
        %s246 = scalar_lea.vmem %s1, %s245
        %s247 = sadd.s32 %s20, 1
        %s248 = smul.u32 %s247, 8
      $region32: #{discriminator_forward.5} parent=23 // pred_fallthru
        _
    $region24: #{discriminator_forward.5} parent=5 // pred_fallthru
      _
    %p249 = scmp.le.s32.totalorder 1, %s12
    %p250 = scmp.lt.s32.totalorder %s12, 3
    %p251 = pnand %p249, %p250
    %p252 = pneg %p251
    // Predicated region
    $region33: #{discriminator_forward.5} parent=5 // pred_check
      _
    $region34: #{discriminator_forward.5} parent=5 // pred_check_branch
      %254 = sbr.rel (%p251) target = $region36
    $region35: #{discriminator_forward.5} parent=5 // pred_region
      %s255 = ssub.s32 %s12, 1
      %s256 = smul.u32 8, %s22
      %s257 = ssub.s32 9, %s256
      %p258 = scmp.lt.s32.totalorder %s257, 8
      %s259 = scalar_select %p258, %s257, 8
      %s260 = smul.u32 64, %s259
      %s261 = smul.u32 %s260, 2
      %s262 = smul.u32 %s261, 2
      %p263 = scmp.lt.s32.totalorder %s21, 1
      %s264 = scalar_select %p263, %s21, 1
      %p265 = scmp.lt.s32.totalorder %s256, 8
      %s266 = scalar_select %p265, %s256, 8
      %s267 = smul.addr %s266, 4
      %s268 = smul.addr %s264, 36
      %s269 = sadd.s32 %s267, %s268
      %s270 = smul.addr %s269, 4
      %s271 = scalar_lea.vmem %s0, %s270
      %p272 = pneg %p52
      %p273 = pneg %p49
      %s274 = sadd.s32 %s22, 1
      %s275 = smul.u32 %s274, 8
      %p276 = scmp.lt.s32.totalorder %s21, 1
      %s277 = scalar_select %p276, %s21, 1
      %p278 = scmp.lt.s32.totalorder %s275, 8
      %s279 = scalar_select %p278, %s275, 8
      %s280 = smul.addr %s279, 4
      %s281 = smul.addr %s277, 36
      %s282 = sadd.s32 %s280, %s281
      %s283 = smul.addr %s282, 4
      %s284 = scalar_lea.vmem %s1, %s283
      %p285 = pneg %p84
      %p286 = pneg %p81
      %p287 = pneg %p105
      %p288 = pneg %p102
      %p289 = pneg %p126
      %p290 = pneg %p123
      %p291 = pneg %p154
      %p292 = pneg %p151
      %s293 = sadd.s32 %s21, %s22
      %s294 = smul.u32 8, %s293
      %p295 = scmp.lt.s32.totalorder %s294, 15
      %s296 = scalar_select %p295, %s294, 15
      %s297 = smul.addr %s296, 4
      %s298 = scalar_lea.vmem %s4, %s297
      %p299 = pneg %p182
      %p300 = pneg %p179
      %s301 = sadd.s32 %s21, %s22
      %p302 = scmp.lt.s32.totalorder %s301, 1
      %s303 = scalar_select %p302, %s301, 1
      %s304 = smul.addr %s303, 2
      %s305 = scalar_lea.vmem %s5, %s304
      %s306 = smul.u32 8, %s22
      %s307 = ssub.s32 9, %s306
      %p308 = scmp.lt.s32.totalorder %s307, 8
      %s309 = scalar_select %p308, %s307, 8
      %s310 = smul.u32 64, %s309
      %s311 = smul.u32 %s310, 2
      %s312 = smul.u32 %s311, 2
      %p313 = scmp.lt.s32.totalorder %s21, 1
      %s314 = scalar_select %p313, %s21, 1
      %p315 = scmp.lt.s32.totalorder %s306, 8
      %s316 = scalar_select %p315, %s306, 8
      %s317 = smul.addr %s316, 4
      %s318 = smul.addr %s314, 36
      %s319 = sadd.s32 %s317, %s318
      %s320 = smul.addr %s319, 4
      %s321 = scalar_lea.vmem %s0, %s320
      %s322 = smul.u32 8, %s22
      %s323 = ssub.s32 9, %s322
      %p324 = scmp.lt.s32.totalorder %s323, 8
      %s325 = scalar_select %p324, %s323, 8
      %s326 = smul.u32 64, %s325
      %s327 = smul.u32 %s326, 2
      %s328 = smul.u32 %s327, 2
      %s329 = sadd.s32 %s22, 1
      %s330 = smul.u32 %s329, 8
      %p331 = scmp.lt.s32.totalorder %s21, 1
      %s332 = scalar_select %p331, %s21, 1
      %p333 = scmp.lt.s32.totalorder %s330, 8
      %s334 = scalar_select %p333, %s330, 8
      %s335 = smul.addr %s334, 4
      %s336 = smul.addr %s332, 36
      %s337 = sadd.s32 %s335, %s336
      %s338 = smul.addr %s337, 4
      %s339 = scalar_lea.vmem %s1, %s338
      %s340 = sadd.s32 %s22, 1
      %s341 = smul.u32 %s340, 8
      %s342 = sadd.s32 %s21, %s22
      %s343 = smul.u32 8, %s342
      %p344 = scmp.lt.s32.totalorder %s343, 15
      %s345 = scalar_select %p344, %s343, 15
      %s346 = smul.addr %s345, 4
      %s347 = scalar_lea.vmem %s4, %s346
      %s348 = sadd.s32 %s21, %s22
      %s349 = smul.u32 8, %s348
      %s350 = sadd.s32 %s21, %s22
      %p351 = scmp.lt.s32.totalorder %s350, 1
      %s352 = scalar_select %p351, %s350, 1
      %s353 = smul.addr %s352, 2
      %s354 = scalar_lea.vmem %s5, %s353
      %s355 = sadd.s32 %s21, %s22
      %v357 = vld [vmem:[%s321] sm:$0xff]
      %v358 = vld [vmem:[%s321 + $0x8] sm:$0x11]
      %v359 = vld [vmem:[%s321 + $0x10] sm:$0xff]
      %v360 = vld [vmem:[%s321 + $0x18] sm:$0x11]
      %v361 = vld [vmem:[%s321 + $0x20] sm:$0xff]
      %v362 = vld [vmem:[%s321 + $0x28] sm:$0x11]
      %v363 = vld [vmem:[%s321 + $0x30] sm:$0xff]
      %v364 = vld [vmem:[%s321 + $0x38] sm:$0x11]
      %v365 = vld [vmem:[%s321 + $0x40] sm:$0xff]
      %v366 = vld [vmem:[%s321 + $0x48] sm:$0x11]
      %v367 = vld [vmem:[%s321 + $0x50] sm:$0xff]
      %v368 = vld [vmem:[%s321 + $0x58] sm:$0x11]
      %v369 = vld [vmem:[%s321 + $0x60] sm:$0xff]
      %v370 = vld [vmem:[%s321 + $0x68] sm:$0x11]
      %v371 = vld [vmem:[%s321 + $0x70] sm:$0xff]
      %v372 = vld [vmem:[%s321 + $0x78] sm:$0x11]
      %v373 = vld [vmem:[%s339] sm:$0xff]
      %v374 = vld [vmem:[%s339 + $0x8] sm:$0x11]
      %v375 = vld [vmem:[%s2] sm:$0xf]
      %v376 = vld [vmem:[%s2 + $0x4] sm:$0xf]
      %v377 = vld [vmem:[%s2 + $0x8] sm:$0xf]
      %v378 = vld [vmem:[%s2 + $0xc] sm:$0xf]
      %v379 = vld [vmem:[%s2 + $0x10] sm:$0xf]
      %v380 = vld [vmem:[%s2 + $0x14] sm:$0xf]
      %v381 = vld [vmem:[%s2 + $0x18] sm:$0xf]
      %v382 = vld [vmem:[%s2 + $0x1c] sm:$0xf]
      %v383 = vld [vmem:[%s2 + $0x20] sm:$0xf]
      %v384 = vld [vmem:[%s2 + $0x24] sm:$0xf]
      %v385 = vld [vmem:[%s2 + $0x28] sm:$0xf]
      %v386 = vld [vmem:[%s2 + $0x2c] sm:$0xf]
      %v387 = vld [vmem:[%s2 + $0x30] sm:$0xf]
      %v388 = vld [vmem:[%s2 + $0x34] sm:$0xf]
      %v389 = vld [vmem:[%s2 + $0x38] sm:$0xf]
      %v390 = vld [vmem:[%s2 + $0x3c] sm:$0xf]
      %v391 = vld [vmem:[%s2 + $0x40] sm:$0xf]
      %v392 = vld [vmem:[%s2 + $0x44] sm:$0xf]
      %v393 = vld [vmem:[%s2 + $0x48] sm:$0xf]
      %v394 = vld [vmem:[%s2 + $0x4c] sm:$0xf]
      %v395 = vld [vmem:[%s2 + $0x50] sm:$0xf]
      %v396 = vld [vmem:[%s2 + $0x54] sm:$0xf]
      %v397 = vld [vmem:[%s2 + $0x58] sm:$0xf]
      %v398 = vld [vmem:[%s2 + $0x5c] sm:$0xf]
      %v399 = vld [vmem:[%s2 + $0x60] sm:$0xf]
      %v400 = vld [vmem:[%s2 + $0x64] sm:$0xf]
      %v401 = vld [vmem:[%s2 + $0x68] sm:$0xf]
      %v402 = vld [vmem:[%s2 + $0x6c] sm:$0xf]
      %v403 = vld [vmem:[%s2 + $0x70] sm:$0xf]
      %v404 = vld [vmem:[%s2 + $0x74] sm:$0xf]
      %v405 = vld [vmem:[%s2 + $0x78] sm:$0xf]
      %v406 = vld [vmem:[%s2 + $0x7c] sm:$0xf]
      %vm407 = vsmask.f32 3328
      %vm408 = vsmask.f32 7440
      %vm409 = vmor %vm407, %vm408
      %v411 = vshrl.u32 %v357, 16
      %v413 = vrot.slane %v411, 4
      %v414 = vshll.u32 %v357, 16
      %v416 = vrot.slane %v414, 5
      %v417 = vor.u32 %v413, %v416
      %v418 = vrot.slane %v417, 4
      %v420 = vshll.u32 %v358, 16
      %v422 = vrot.slane %v420, 5
      %v423 = vsel %vm409, %v418, %v422
      %v425 = vshrl.u32 %v359, 16
      %v427 = vrot.slane %v425, 4
      %v428 = vshll.u32 %v359, 16
      %v430 = vrot.slane %v428, 5
      %v431 = vor.u32 %v427, %v430
      %v432 = vrot.slane %v431, 4
      %v434 = vshll.u32 %v360, 16
      %v436 = vrot.slane %v434, 5
      %v437 = vsel %vm409, %v432, %v436
      %v439 = vshrl.u32 %v361, 16
      %v441 = vrot.slane %v439, 4
      %v442 = vshll.u32 %v361, 16
      %v444 = vrot.slane %v442, 5
      %v445 = vor.u32 %v441, %v444
      %v446 = vrot.slane %v445, 4
      %v448 = vshll.u32 %v362, 16
      %v450 = vrot.slane %v448, 5
      %v451 = vsel %vm409, %v446, %v450
      %v453 = vshrl.u32 %v363, 16
      %v455 = vrot.slane %v453, 4
      %v456 = vshll.u32 %v363, 16
      %v458 = vrot.slane %v456, 5
      %v459 = vor.u32 %v455, %v458
      %v460 = vrot.slane %v459, 4
      %v462 = vshll.u32 %v364, 16
      %v464 = vrot.slane %v462, 5
      %v465 = vsel %vm409, %v460, %v464
      %v467 = vshrl.u32 %v365, 16
      %v469 = vrot.slane %v467, 4
      %v470 = vshll.u32 %v365, 16
      %v472 = vrot.slane %v470, 5
      %v473 = vor.u32 %v469, %v472
      %v474 = vrot.slane %v473, 4
      %v476 = vshll.u32 %v366, 16
      %v478 = vrot.slane %v476, 5
      %v479 = vsel %vm409, %v474, %v478
      %v481 = vshrl.u32 %v367, 16
      %v483 = vrot.slane %v481, 4
      %v484 = vshll.u32 %v367, 16
      %v486 = vrot.slane %v484, 5
      %v487 = vor.u32 %v483, %v486
      %v488 = vrot.slane %v487, 4
      %v490 = vshll.u32 %v368, 16
      %v492 = vrot.slane %v490, 5
      %v493 = vsel %vm409, %v488, %v492
      %v495 = vshrl.u32 %v369, 16
      %v497 = vrot.slane %v495, 4
      %v498 = vshll.u32 %v369, 16
      %v500 = vrot.slane %v498, 5
      %v501 = vor.u32 %v497, %v500
      %v502 = vrot.slane %v501, 4
      %v504 = vshll.u32 %v370, 16
      %v506 = vrot.slane %v504, 5
      %v507 = vsel %vm409, %v502, %v506
      %v509 = vshrl.u32 %v371, 16
      %v511 = vrot.slane %v509, 4
      %v512 = vshll.u32 %v371, 16
      %v514 = vrot.slane %v512, 5
      %v515 = vor.u32 %v511, %v514
      %v516 = vrot.slane %v515, 4
      %v518 = vshll.u32 %v372, 16
      %v520 = vrot.slane %v518, 5
      %v521 = vsel %vm409, %v516, %v520
      %s522 = scalar_lea.vmem %s2, 128
      %v523 = vld [vmem:[%s522] sm:$0xf]
      %v524 = vld [vmem:[%s522 + $0x4] sm:$0xf]
      %v525 = vld [vmem:[%s522 + $0x8] sm:$0xf]
      %v526 = vld [vmem:[%s522 + $0xc] sm:$0xf]
      %v527 = vld [vmem:[%s522 + $0x10] sm:$0xf]
      %v528 = vld [vmem:[%s522 + $0x14] sm:$0xf]
      %v529 = vld [vmem:[%s522 + $0x18] sm:$0xf]
      %v530 = vld [vmem:[%s522 + $0x1c] sm:$0xf]
      %v531 = vld [vmem:[%s522 + $0x20] sm:$0xf]
      %v532 = vld [vmem:[%s522 + $0x24] sm:$0xf]
      %v533 = vld [vmem:[%s522 + $0x28] sm:$0xf]
      %v534 = vld [vmem:[%s522 + $0x2c] sm:$0xf]
      %v535 = vld [vmem:[%s522 + $0x30] sm:$0xf]
      %v536 = vld [vmem:[%s522 + $0x34] sm:$0xf]
      %v537 = vld [vmem:[%s522 + $0x38] sm:$0xf]
      %v538 = vld [vmem:[%s522 + $0x3c] sm:$0xf]
      %v539 = vld [vmem:[%s522 + $0x40] sm:$0xf]
      %v540 = vld [vmem:[%s522 + $0x44] sm:$0xf]
      %v541 = vld [vmem:[%s522 + $0x48] sm:$0xf]
      %v542 = vld [vmem:[%s522 + $0x4c] sm:$0xf]
      %v543 = vld [vmem:[%s522 + $0x50] sm:$0xf]
      %v544 = vld [vmem:[%s522 + $0x54] sm:$0xf]
      %v545 = vld [vmem:[%s522 + $0x58] sm:$0xf]
      %v546 = vld [vmem:[%s522 + $0x5c] sm:$0xf]
      %v547 = vld [vmem:[%s522 + $0x60] sm:$0xf]
      %v548 = vld [vmem:[%s522 + $0x64] sm:$0xf]
      %v549 = vld [vmem:[%s522 + $0x68] sm:$0xf]
      %v550 = vld [vmem:[%s522 + $0x6c] sm:$0xf]
      %v551 = vld [vmem:[%s522 + $0x70] sm:$0xf]
      %v552 = vld [vmem:[%s522 + $0x74] sm:$0xf]
      %v553 = vld [vmem:[%s522 + $0x78] sm:$0xf]
      %v554 = vld [vmem:[%s522 + $0x7c] sm:$0xf]
      %v555 = vunpack.c.l.b16 %v423
      %v556 = vunpack.c.h.b16 %v423
      %v557 = vunpack.c.l.b16 %v437
      %v558 = vunpack.c.h.b16 %v437
      %v559 = vunpack.c.l.b16 %v451
      %v560 = vunpack.c.h.b16 %v451
      %v561 = vunpack.c.l.b16 %v465
      %v562 = vunpack.c.h.b16 %v465
      %v563 = vunpack.c.l.b16 %v479
      %v564 = vunpack.c.h.b16 %v479
      %v565 = vunpack.c.l.b16 %v493
      %v566 = vunpack.c.h.b16 %v493
      %v567 = vunpack.c.l.b16 %v507
      %v568 = vunpack.c.h.b16 %v507
      %v569 = vunpack.c.l.b16 %v521
      %v570 = vunpack.c.h.b16 %v521
      %v571 = vpack.c.b16 %v557, %v555
      %v572 = vpack.c.b16 %v558, %v556
      %v573 = vpack.c.b16 %v561, %v559
      %v574 = vpack.c.b16 %v562, %v560
      %v575 = vpack.c.b16 %v565, %v563
      %v576 = vpack.c.b16 %v566, %v564
      %v577 = vpack.c.b16 %v569, %v567
      %v578 = vpack.c.b16 %v570, %v568
      %v619 = vunpack.c.l.b16 %v523
      %v620 = vunpack.c.l.b16 %v524
      %v621 = vunpack.c.l.b16 %v525
      %v622 = vunpack.c.l.b16 %v526
      %v623 = vunpack.c.l.b16 %v527
      %v624 = vunpack.c.l.b16 %v528
      %v625 = vunpack.c.l.b16 %v529
      %v626 = vunpack.c.l.b16 %v530
      %v627 = vunpack.c.l.b16 %v531
      %v628 = vunpack.c.l.b16 %v532
      %v629 = vunpack.c.l.b16 %v533
      %v630 = vunpack.c.l.b16 %v534
      %v631 = vunpack.c.l.b16 %v535
      %v632 = vunpack.c.l.b16 %v536
      %v633 = vunpack.c.l.b16 %v537
      %v634 = vunpack.c.l.b16 %v538
      %v635 = vunpack.c.l.b16 %v539
      %v636 = vunpack.c.l.b16 %v540
      %v637 = vunpack.c.l.b16 %v541
      %v638 = vunpack.c.l.b16 %v542
      %v639 = vunpack.c.l.b16 %v543
      %v640 = vunpack.c.l.b16 %v544
      %v641 = vunpack.c.l.b16 %v545
      %v642 = vunpack.c.l.b16 %v546
      %v643 = vunpack.c.l.b16 %v547
      %v644 = vunpack.c.l.b16 %v548
      %v645 = vunpack.c.l.b16 %v549
      %v646 = vunpack.c.l.b16 %v550
      %v647 = vunpack.c.l.b16 %v551
      %v648 = vunpack.c.l.b16 %v552
      %v649 = vunpack.c.l.b16 %v553
      %v650 = vunpack.c.l.b16 %v554
      %v651 = vpack.c.b16 %v620, %v619
      %v652 = vpack.c.b16 %v622, %v621
      %v653 = vpack.c.b16 %v624, %v623
      %v654 = vpack.c.b16 %v626, %v625
      %v655 = vpack.c.b16 %v628, %v627
      %v656 = vpack.c.b16 %v630, %v629
      %v657 = vpack.c.b16 %v632, %v631
      %v658 = vpack.c.b16 %v634, %v633
      %v659 = vpack.c.b16 %v636, %v635
      %v660 = vpack.c.b16 %v638, %v637
      %v661 = vpack.c.b16 %v640, %v639
      %v662 = vpack.c.b16 %v642, %v641
      %v663 = vpack.c.b16 %v644, %v643
      %v664 = vpack.c.b16 %v646, %v645
      %v665 = vpack.c.b16 %v648, %v647
      %v666 = vpack.c.b16 %v650, %v649
      %683 = vmatprep.subr.bf16.mxu0 0
      %684 = vmatpush1.bf16.msra.mxu0 %v651
      %685 = vmatprep.subr.bf16.mxu0 0
      %686 = vmatpush1.bf16.msra.mxu0 %v652
      %687 = vmatprep.subr.bf16.mxu0 0
      %688 = vmatpush1.bf16.msra.mxu0 %v653
      %689 = vmatprep.subr.bf16.mxu0 0
      %690 = vmatpush1.bf16.msra.mxu0 %v654
      %691 = vmatprep.subr.bf16.mxu0 0
      %692 = vmatpush1.bf16.msra.mxu0 %v655
      %693 = vmatprep.subr.bf16.mxu0 0
      %694 = vmatpush1.bf16.msra.mxu0 %v656
      %695 = vmatprep.subr.bf16.mxu0 0
      %696 = vmatpush1.bf16.msra.mxu0 %v657
      %697 = vmatprep.subr.bf16.mxu0 0
      %698 = vmatpush1.bf16.msra.mxu0 %v658
      %699 = vmatprep.subr.bf16.mxu0 0
      %700 = vmatpush1.bf16.msra.mxu0 %v659
      %701 = vmatprep.subr.bf16.mxu0 0
      %702 = vmatpush1.bf16.msra.mxu0 %v660
      %703 = vmatprep.subr.bf16.mxu0 0
      %704 = vmatpush1.bf16.msra.mxu0 %v661
      %705 = vmatprep.subr.bf16.mxu0 0
      %706 = vmatpush1.bf16.msra.mxu0 %v662
      %707 = vmatprep.subr.bf16.mxu0 0
      %708 = vmatpush1.bf16.msra.mxu0 %v663
      %709 = vmatprep.subr.bf16.mxu0 0
      %710 = vmatpush1.bf16.msra.mxu0 %v664
      %711 = vmatprep.subr.bf16.mxu0 0
      %712 = vmatpush1.bf16.msra.mxu0 %v665
      %713 = vmatprep.subr.bf16.mxu0 0
      %714 = vmatpush1.bf16.msra.mxu0 %v666
      %715 = vmatprep.mubr.bf16.mxu0 %v572
      %716 = vmatmul.mubr.bf16.gmra.mrb[0].mxu0 %v571
      %v717 = vpop.f32.mrb[0].mxu0
      %v718 = vadd.f32 0.0, %v717
      %v719 = vpop.f32.mrb[0].mxu0
      %v720 = vpop.f32.mrb[0].mxu0
      %v721 = vadd.f32 0.0, %v720
      %v722 = vpop.f32.mrb[0].mxu0
      %723 = vmatprep.mubr.bf16.mxu0 %v574
      %724 = vmatmul.mubr.bf16.gmra.mrb[0].mxu0 %v573
      %v725 = vpop.f32.mrb[0].mxu0
      %v726 = vadd.f32 0.0, %v725
      %v727 = vpop.f32.mrb[0].mxu0
      %v728 = vpop.f32.mrb[0].mxu0
      %v729 = vadd.f32 0.0, %v728
      %v730 = vpop.f32.mrb[0].mxu0
      %731 = vmatprep.mubr.bf16.mxu0 %v576
      %732 = vmatmul.mubr.bf16.gmra.mrb[0].mxu0 %v575
      %v733 = vpop.f32.mrb[0].mxu0
      %v734 = vadd.f32 0.0, %v733
      %v735 = vpop.f32.mrb[0].mxu0
      %v736 = vpop.f32.mrb[0].mxu0
      %v737 = vadd.f32 0.0, %v736
      %v738 = vpop.f32.mrb[0].mxu0
      %739 = vmatprep.mubr.bf16.mxu0 %v578
      %740 = vmatmul.mubr.bf16.gmra.mrb[0].mxu0 %v577
      %v741 = vpop.f32.mrb[0].mxu0
      %v742 = vadd.f32 0.0, %v741
      %v743 = vpop.f32.mrb[0].mxu0
      %v744 = vpop.f32.mrb[0].mxu0
      %v745 = vadd.f32 0.0, %v744
      %v746 = vpop.f32.mrb[0].mxu0
      %747 = vdwg.mxu0
      %v756 = vunpack.c.l.b16 %v357
      %v757 = vunpack.c.h.b16 %v357
      %v758 = vunpack.c.l.b16 %v359
      %v759 = vunpack.c.h.b16 %v359
      %v760 = vunpack.c.l.b16 %v361
      %v761 = vunpack.c.h.b16 %v361
      %v762 = vunpack.c.l.b16 %v363
      %v763 = vunpack.c.h.b16 %v363
      %v764 = vunpack.c.l.b16 %v365
      %v765 = vunpack.c.h.b16 %v365
      %v766 = vunpack.c.l.b16 %v367
      %v767 = vunpack.c.h.b16 %v367
      %v768 = vunpack.c.l.b16 %v369
      %v769 = vunpack.c.h.b16 %v369
      %v770 = vunpack.c.l.b16 %v371
      %v771 = vunpack.c.h.b16 %v371
      %v772 = vpack.c.b16 %v758, %v756
      %v773 = vpack.c.b16 %v759, %v757
      %v774 = vpack.c.b16 %v762, %v760
      %v775 = vpack.c.b16 %v763, %v761
      %v776 = vpack.c.b16 %v766, %v764
      %v777 = vpack.c.b16 %v767, %v765
      %v778 = vpack.c.b16 %v770, %v768
      %v779 = vpack.c.b16 %v771, %v769
      %v820 = vunpack.c.l.b16 %v375
      %v821 = vunpack.c.l.b16 %v376
      %v822 = vunpack.c.l.b16 %v377
      %v823 = vunpack.c.l.b16 %v378
      %v824 = vunpack.c.l.b16 %v379
      %v825 = vunpack.c.l.b16 %v380
      %v826 = vunpack.c.l.b16 %v381
      %v827 = vunpack.c.l.b16 %v382
      %v828 = vunpack.c.l.b16 %v383
      %v829 = vunpack.c.l.b16 %v384
      %v830 = vunpack.c.l.b16 %v385
      %v831 = vunpack.c.l.b16 %v386
      %v832 = vunpack.c.l.b16 %v387
      %v833 = vunpack.c.l.b16 %v388
      %v834 = vunpack.c.l.b16 %v389
      %v835 = vunpack.c.l.b16 %v390
      %v836 = vunpack.c.l.b16 %v391
      %v837 = vunpack.c.l.b16 %v392
      %v838 = vunpack.c.l.b16 %v393
      %v839 = vunpack.c.l.b16 %v394
      %v840 = vunpack.c.l.b16 %v395
      %v841 = vunpack.c.l.b16 %v396
      %v842 = vunpack.c.l.b16 %v397
      %v843 = vunpack.c.l.b16 %v398
      %v844 = vunpack.c.l.b16 %v399
      %v845 = vunpack.c.l.b16 %v400
      %v846 = vunpack.c.l.b16 %v401
      %v847 = vunpack.c.l.b16 %v402
      %v848 = vunpack.c.l.b16 %v403
      %v849 = vunpack.c.l.b16 %v404
      %v850 = vunpack.c.l.b16 %v405
      %v851 = vunpack.c.l.b16 %v406
      %v852 = vpack.c.b16 %v821, %v820
      %v853 = vpack.c.b16 %v823, %v822
      %v854 = vpack.c.b16 %v825, %v824
      %v855 = vpack.c.b16 %v827, %v826
      %v856 = vpack.c.b16 %v829, %v828
      %v857 = vpack.c.b16 %v831, %v830
      %v858 = vpack.c.b16 %v833, %v832
      %v859 = vpack.c.b16 %v835, %v834
      %v860 = vpack.c.b16 %v837, %v836
      %v861 = vpack.c.b16 %v839, %v838
      %v862 = vpack.c.b16 %v841, %v840
      %v863 = vpack.c.b16 %v843, %v842
      %v864 = vpack.c.b16 %v845, %v844
      %v865 = vpack.c.b16 %v847, %v846
      %v866 = vpack.c.b16 %v849, %v848
      %v867 = vpack.c.b16 %v851, %v850
      %884 = vmatprep.subr.bf16.mxu0 0
      %885 = vmatpush1.bf16.msra.mxu0 %v852
      %886 = vmatprep.subr.bf16.mxu0 0
      %887 = vmatpush1.bf16.msra.mxu0 %v853
      %888 = vmatprep.subr.bf16.mxu0 0
      %889 = vmatpush1.bf16.msra.mxu0 %v854
      %890 = vmatprep.subr.bf16.mxu0 0
      %891 = vmatpush1.bf16.msra.mxu0 %v855
      %892 = vmatprep.subr.bf16.mxu0 0
      %893 = vmatpush1.bf16.msra.mxu0 %v856
      %894 = vmatprep.subr.bf16.mxu0 0
      %895 = vmatpush1.bf16.msra.mxu0 %v857
      %896 = vmatprep.subr.bf16.mxu0 0
      %897 = vmatpush1.bf16.msra.mxu0 %v858
      %898 = vmatprep.subr.bf16.mxu0 0
      %899 = vmatpush1.bf16.msra.mxu0 %v859
      %900 = vmatprep.subr.bf16.mxu0 0
      %901 = vmatpush1.bf16.msra.mxu0 %v860
      %902 = vmatprep.subr.bf16.mxu0 0
      %903 = vmatpush1.bf16.msra.mxu0 %v861
      %904 = vmatprep.subr.bf16.mxu0 0
      %905 = vmatpush1.bf16.msra.mxu0 %v862
      %906 = vmatprep.subr.bf16.mxu0 0
      %907 = vmatpush1.bf16.msra.mxu0 %v863
      %908 = vmatprep.subr.bf16.mxu0 0
      %909 = vmatpush1.bf16.msra.mxu0 %v864
      %910 = vmatprep.subr.bf16.mxu0 0
      %911 = vmatpush1.bf16.msra.mxu0 %v865
      %912 = vmatprep.subr.bf16.mxu0 0
      %913 = vmatpush1.bf16.msra.mxu0 %v866
      %914 = vmatprep.subr.bf16.mxu0 0
      %915 = vmatpush1.bf16.msra.mxu0 %v867
      %916 = vmatprep.mubr.bf16.mxu0 %v773
      %917 = vmatmul.mubr.bf16.gmra.mrb[0].mxu0 %v772
      %v918 = vpop.f32.mrb[0].mxu0
      %v919 = vadd.f32 %v718, %v918
      %v920 = vpop.f32.mrb[0].mxu0
      %v921 = vpop.f32.mrb[0].mxu0
      %v922 = vadd.f32 %v721, %v921
      %v923 = vpop.f32.mrb[0].mxu0
      %924 = vmatprep.mubr.bf16.mxu0 %v775
      %925 = vmatmul.mubr.bf16.gmra.mrb[0].mxu0 %v774
      %v926 = vpop.f32.mrb[0].mxu0
      %v927 = vadd.f32 %v726, %v926
      %v928 = vpop.f32.mrb[0].mxu0
      %v929 = vpop.f32.mrb[0].mxu0
      %v930 = vadd.f32 %v729, %v929
      %v931 = vpop.f32.mrb[0].mxu0
      %932 = vmatprep.mubr.bf16.mxu0 %v777
      %933 = vmatmul.mubr.bf16.gmra.mrb[0].mxu0 %v776
      %v934 = vpop.f32.mrb[0].mxu0
      %v935 = vadd.f32 %v734, %v934
      %v936 = vpop.f32.mrb[0].mxu0
      %v937 = vpop.f32.mrb[0].mxu0
      %v938 = vadd.f32 %v737, %v937
      %v939 = vpop.f32.mrb[0].mxu0
      %940 = vmatprep.mubr.bf16.mxu0 %v779
      %941 = vmatmul.mubr.bf16.gmra.mrb[0].mxu0 %v778
      %v942 = vpop.f32.mrb[0].mxu0
      %v943 = vadd.f32 %v742, %v942
      %v944 = vpop.f32.mrb[0].mxu0
      %v945 = vpop.f32.mrb[0].mxu0
      %v946 = vadd.f32 %v745, %v945
      %v947 = vpop.f32.mrb[0].mxu0
      %948 = vdwg.mxu0
      %s949 = scalar_lea.vmem %s2, 256
      %v950 = vld [vmem:[%s949] sm:$0xf]
      %v951 = vld [vmem:[%s949 + $0x4] sm:$0xf]
      %v952 = vld [vmem:[%s949 + $0x8] sm:$0xf]
      %v953 = vld [vmem:[%s949 + $0xc] sm:$0xf]
      %v954 = vld [vmem:[%s949 + $0x10] sm:$0xf]
      %v955 = vld [vmem:[%s949 + $0x14] sm:$0xf]
      %v956 = vld [vmem:[%s949 + $0x18] sm:$0xf]
      %v957 = vld [vmem:[%s949 + $0x1c] sm:$0xf]
      %v958 = vld [vmem:[%s949 + $0x20] sm:$0xf]
      %v959 = vld [vmem:[%s949 + $0x24] sm:$0xf]
      %v960 = vld [vmem:[%s949 + $0x28] sm:$0xf]
      %v961 = vld [vmem:[%s949 + $0x2c] sm:$0xf]
      %v962 = vld [vmem:[%s949 + $0x30] sm:$0xf]
      %v963 = vld [vmem:[%s949 + $0x34] sm:$0xf]
      %v964 = vld [vmem:[%s949 + $0x38] sm:$0xf]
      %v965 = vld [vmem:[%s949 + $0x3c] sm:$0xf]
      %v966 = vld [vmem:[%s949 + $0x40] sm:$0xf]
      %v967 = vld [vmem:[%s949 + $0x44] sm:$0xf]
      %v968 = vld [vmem:[%s949 + $0x48] sm:$0xf]
      %v969 = vld [vmem:[%s949 + $0x4c] sm:$0xf]
      %v970 = vld [vmem:[%s949 + $0x50] sm:$0xf]
      %v971 = vld [vmem:[%s949 + $0x54] sm:$0xf]
      %v972 = vld [vmem:[%s949 + $0x58] sm:$0xf]
      %v973 = vld [vmem:[%s949 + $0x5c] sm:$0xf]
      %v974 = vld [vmem:[%s949 + $0x60] sm:$0xf]
      %v975 = vld [vmem:[%s949 + $0x64] sm:$0xf]
      %v976 = vld [vmem:[%s949 + $0x68] sm:$0xf]
      %v977 = vld [vmem:[%s949 + $0x6c] sm:$0xf]
      %v978 = vld [vmem:[%s949 + $0x70] sm:$0xf]
      %v979 = vld [vmem:[%s949 + $0x74] sm:$0xf]
      %v980 = vld [vmem:[%s949 + $0x78] sm:$0xf]
      %v981 = vld [vmem:[%s949 + $0x7c] sm:$0xf]
      %v983 = vunpack.c.l.b16 %v373
      %v984 = vunpack.c.h.b16 %v373
      %v985 = vpack.c.b16 %v760, %v758
      %v986 = vpack.c.b16 %v761, %v759
      %v987 = vpack.c.b16 %v764, %v762
      %v988 = vpack.c.b16 %v765, %v763
      %v989 = vpack.c.b16 %v768, %v766
      %v990 = vpack.c.b16 %v769, %v767
      %v991 = vpack.c.b16 %v983, %v770
      %v992 = vpack.c.b16 %v984, %v771
      %v1033 = vunpack.c.l.b16 %v950
      %v1034 = vunpack.c.l.b16 %v951
      %v1035 = vunpack.c.l.b16 %v952
      %v1036 = vunpack.c.l.b16 %v953
      %v1037 = vunpack.c.l.b16 %v954
      %v1038 = vunpack.c.l.b16 %v955
      %v1039 = vunpack.c.l.b16 %v956
      %v1040 = vunpack.c.l.b16 %v957
      %v1041 = vunpack.c.l.b16 %v958
      %v1042 = vunpack.c.l.b16 %v959
      %v1043 = vunpack.c.l.b16 %v960
      %v1044 = vunpack.c.l.b16 %v961
      %v1045 = vunpack.c.l.b16 %v962
      %v1046 = vunpack.c.l.b16 %v963
      %v1047 = vunpack.c.l.b16 %v964
      %v1048 = vunpack.c.l.b16 %v965
      %v1049 = vunpack.c.l.b16 %v966
      %v1050 = vunpack.c.l.b16 %v967
      %v1051 = vunpack.c.l.b16 %v968
      %v1052 = vunpack.c.l.b16 %v969
      %v1053 = vunpack.c.l.b16 %v970
      %v1054 = vunpack.c.l.b16 %v971
      %v1055 = vunpack.c.l.b16 %v972
      %v1056 = vunpack.c.l.b16 %v973
      %v1057 = vunpack.c.l.b16 %v974
      %v1058 = vunpack.c.l.b16 %v975
      %v1059 = vunpack.c.l.b16 %v976
      %v1060 = vunpack.c.l.b16 %v977
      %v1061 = vunpack.c.l.b16 %v978
      %v1062 = vunpack.c.l.b16 %v979
      %v1063 = vunpack.c.l.b16 %v980
      %v1064 = vunpack.c.l.b16 %v981
      %v1065 = vpack.c.b16 %v1034, %v1033
      %v1066 = vpack.c.b16 %v1036, %v1035
      %v1067 = vpack.c.b16 %v1038, %v1037
      %v1068 = vpack.c.b16 %v1040, %v1039
      %v1069 = vpack.c.b16 %v1042, %v1041
      %v1070 = vpack.c.b16 %v1044, %v1043
      %v1071 = vpack.c.b16 %v1046, %v1045
      %v1072 = vpack.c.b16 %v1048, %v1047
      %v1073 = vpack.c.b16 %v1050, %v1049
      %v1074 = vpack.c.b16 %v1052, %v1051
      %v1075 = vpack.c.b16 %v1054, %v1053
      %v1076 = vpack.c.b16 %v1056, %v1055
      %v1077 = vpack.c.b16 %v1058, %v1057
      %v1078 = vpack.c.b16 %v1060, %v1059
      %v1079 = vpack.c.b16 %v1062, %v1061
      %v1080 = vpack.c.b16 %v1064, %v1063
      %1097 = vmatprep.subr.bf16.mxu0 0
      %1098 = vmatpush1.bf16.msra.mxu0 %v1065
      %1099 = vmatprep.subr.bf16.mxu0 0
      %1100 = vmatpush1.bf16.msra.mxu0 %v1066
      %1101 = vmatprep.subr.bf16.mxu0 0
      %1102 = vmatpush1.bf16.msra.mxu0 %v1067
      %1103 = vmatprep.subr.bf16.mxu0 0
      %1104 = vmatpush1.bf16.msra.mxu0 %v1068
      %1105 = vmatprep.subr.bf16.mxu0 0
      %1106 = vmatpush1.bf16.msra.mxu0 %v1069
      %1107 = vmatprep.subr.bf16.mxu0 0
      %1108 = vmatpush1.bf16.msra.mxu0 %v1070
      %1109 = vmatprep.subr.bf16.mxu0 0
      %1110 = vmatpush1.bf16.msra.mxu0 %v1071
      %1111 = vmatprep.subr.bf16.mxu0 0
      %1112 = vmatpush1.bf16.msra.mxu0 %v1072
      %1113 = vmatprep.subr.bf16.mxu0 0
      %1114 = vmatpush1.bf16.msra.mxu0 %v1073
      %1115 = vmatprep.subr.bf16.mxu0 0
      %1116 = vmatpush1.bf16.msra.mxu0 %v1074
      %1117 = vmatprep.subr.bf16.mxu0 0
      %1118 = vmatpush1.bf16.msra.mxu0 %v1075
      %1119 = vmatprep.subr.bf16.mxu0 0
      %1120 = vmatpush1.bf16.msra.mxu0 %v1076
      %1121 = vmatprep.subr.bf16.mxu0 0
      %1122 = vmatpush1.bf16.msra.mxu0 %v1077
      %1123 = vmatprep.subr.bf16.mxu0 0
      %1124 = vmatpush1.bf16.msra.mxu0 %v1078
      %1125 = vmatprep.subr.bf16.mxu0 0
      %1126 = vmatpush1.bf16.msra.mxu0 %v1079
      %1127 = vmatprep.subr.bf16.mxu0 0
      %1128 = vmatpush1.bf16.msra.mxu0 %v1080
      %1129 = vmatprep.mubr.bf16.mxu0 %v986
      %1130 = vmatmul.mubr.bf16.gmra.mrb[0].mxu0 %v985
      %v1131 = vpop.f32.mrb[0].mxu0
      %v1132 = vadd.f32 0.0, %v1131
      %v1133 = vpop.f32.mrb[0].mxu0
      %v1134 = vpop.f32.mrb[0].mxu0
      %v1135 = vadd.f32 0.0, %v1134
      %v1136 = vpop.f32.mrb[0].mxu0
      %1137 = vmatprep.mubr.bf16.mxu0 %v988
      %1138 = vmatmul.mubr.bf16.gmra.mrb[0].mxu0 %v987
      %v1139 = vpop.f32.mrb[0].mxu0
      %v1140 = vadd.f32 0.0, %v1139
      %v1141 = vpop.f32.mrb[0].mxu0
      %v1142 = vpop.f32.mrb[0].mxu0
      %v1143 = vadd.f32 0.0, %v1142
      %v1144 = vpop.f32.mrb[0].mxu0
      %1145 = vmatprep.mubr.bf16.mxu0 %v990
      %1146 = vmatmul.mubr.bf16.gmra.mrb[0].mxu0 %v989
      %v1147 = vpop.f32.mrb[0].mxu0
      %v1148 = vadd.f32 0.0, %v1147
      %v1149 = vpop.f32.mrb[0].mxu0
      %v1150 = vpop.f32.mrb[0].mxu0
      %v1151 = vadd.f32 0.0, %v1150
      %v1152 = vpop.f32.mrb[0].mxu0
      %1153 = vmatprep.mubr.bf16.mxu0 %v992
      %1154 = vmatmul.mubr.bf16.gmra.mrb[0].mxu0 %v991
      %v1155 = vpop.f32.mrb[0].mxu0
      %v1156 = vadd.f32 0.0, %v1155
      %v1157 = vpop.f32.mrb[0].mxu0
      %v1158 = vpop.f32.mrb[0].mxu0
      %v1159 = vadd.f32 0.0, %v1158
      %v1160 = vpop.f32.mrb[0].mxu0
      %1161 = vdwg.mxu0
      %v1162 = vadd.f32 %v919, %v1132
      %v1163 = vadd.f32 %v922, %v1135
      %v1164 = vadd.f32 %v927, %v1140
      %v1165 = vadd.f32 %v930, %v1143
      %v1166 = vadd.f32 %v935, %v1148
      %v1167 = vadd.f32 %v938, %v1151
      %v1168 = vadd.f32 %v943, %v1156
      %v1169 = vadd.f32 %v946, %v1159
      %v1171 = vshrl.u32 %v373, 16
      %v1173 = vrot.slane %v1171, 4
      %v1174 = vshll.u32 %v373, 16
      %v1176 = vrot.slane %v1174, 5
      %v1177 = vor.u32 %v1173, %v1176
      %v1178 = vrot.slane %v1177, 4
      %v1180 = vshll.u32 %v374, 16
      %v1182 = vrot.slane %v1180, 5
      %v1183 = vsel %vm409, %v1178, %v1182
      %s1184 = scalar_lea.vmem %s2, 384
      %v1185 = vld [vmem:[%s1184] sm:$0xf]
      %v1186 = vld [vmem:[%s1184 + $0x4] sm:$0xf]
      %v1187 = vld [vmem:[%s1184 + $0x8] sm:$0xf]
      %v1188 = vld [vmem:[%s1184 + $0xc] sm:$0xf]
      %v1189 = vld [vmem:[%s1184 + $0x10] sm:$0xf]
      %v1190 = vld [vmem:[%s1184 + $0x14] sm:$0xf]
      %v1191 = vld [vmem:[%s1184 + $0x18] sm:$0xf]
      %v1192 = vld [vmem:[%s1184 + $0x1c] sm:$0xf]
      %v1193 = vld [vmem:[%s1184 + $0x20] sm:$0xf]
      %v1194 = vld [vmem:[%s1184 + $0x24] sm:$0xf]
      %v1195 = vld [vmem:[%s1184 + $0x28] sm:$0xf]
      %v1196 = vld [vmem:[%s1184 + $0x2c] sm:$0xf]
      %v1197 = vld [vmem:[%s1184 + $0x30] sm:$0xf]
      %v1198 = vld [vmem:[%s1184 + $0x34] sm:$0xf]
      %v1199 = vld [vmem:[%s1184 + $0x38] sm:$0xf]
      %v1200 = vld [vmem:[%s1184 + $0x3c] sm:$0xf]
      %v1201 = vld [vmem:[%s1184 + $0x40] sm:$0xf]
      %v1202 = vld [vmem:[%s1184 + $0x44] sm:$0xf]
      %v1203 = vld [vmem:[%s1184 + $0x48] sm:$0xf]
      %v1204 = vld [vmem:[%s1184 + $0x4c] sm:$0xf]
      %v1205 = vld [vmem:[%s1184 + $0x50] sm:$0xf]
      %v1206 = vld [vmem:[%s1184 + $0x54] sm:$0xf]
      %v1207 = vld [vmem:[%s1184 + $0x58] sm:$0xf]
      %v1208 = vld [vmem:[%s1184 + $0x5c] sm:$0xf]
      %v1209 = vld [vmem:[%s1184 + $0x60] sm:$0xf]
      %v1210 = vld [vmem:[%s1184 + $0x64] sm:$0xf]
      %v1211 = vld [vmem:[%s1184 + $0x68] sm:$0xf]
      %v1212 = vld [vmem:[%s1184 + $0x6c] sm:$0xf]
      %v1213 = vld [vmem:[%s1184 + $0x70] sm:$0xf]
      %v1214 = vld [vmem:[%s1184 + $0x74] sm:$0xf]
      %v1215 = vld [vmem:[%s1184 + $0x78] sm:$0xf]
      %v1216 = vld [vmem:[%s1184 + $0x7c] sm:$0xf]
      %v1217 = vunpack.c.l.b16 %v1183
      %v1218 = vunpack.c.h.b16 %v1183
      %v1219 = vpack.c.b16 %v559, %v557
      %v1220 = vpack.c.b16 %v560, %v558
      %v1221 = vpack.c.b16 %v563, %v561
      %v1222 = vpack.c.b16 %v564, %v562
      %v1223 = vpack.c.b16 %v567, %v565
      %v1224 = vpack.c.b16 %v568, %v566
      %v1225 = vpack.c.b16 %v1217, %v569
      %v1226 = vpack.c.b16 %v1218, %v570
      %v1267 = vunpack.c.l.b16 %v1185
      %v1268 = vunpack.c.l.b16 %v1186
      %v1269 = vunpack.c.l.b16 %v1187
      %v1270 = vunpack.c.l.b16 %v1188
      %v1271 = vunpack.c.l.b16 %v1189
      %v1272 = vunpack.c.l.b16 %v1190
      %v1273 = vunpack.c.l.b16 %v1191
      %v1274 = vunpack.c.l.b16 %v1192
      %v1275 = vunpack.c.l.b16 %v1193
      %v1276 = vunpack.c.l.b16 %v1194
      %v1277 = vunpack.c.l.b16 %v1195
      %v1278 = vunpack.c.l.b16 %v1196
      %v1279 = vunpack.c.l.b16 %v1197
      %v1280 = vunpack.c.l.b16 %v1198
      %v1281 = vunpack.c.l.b16 %v1199
      %v1282 = vunpack.c.l.b16 %v1200
      %v1283 = vunpack.c.l.b16 %v1201
      %v1284 = vunpack.c.l.b16 %v1202
      %v1285 = vunpack.c.l.b16 %v1203
      %v1286 = vunpack.c.l.b16 %v1204
      %v1287 = vunpack.c.l.b16 %v1205
      %v1288 = vunpack.c.l.b16 %v1206
      %v1289 = vunpack.c.l.b16 %v1207
      %v1290 = vunpack.c.l.b16 %v1208
      %v1291 = vunpack.c.l.b16 %v1209
      %v1292 = vunpack.c.l.b16 %v1210
      %v1293 = vunpack.c.l.b16 %v1211
      %v1294 = vunpack.c.l.b16 %v1212
      %v1295 = vunpack.c.l.b16 %v1213
      %v1296 = vunpack.c.l.b16 %v1214
      %v1297 = vunpack.c.l.b16 %v1215
      %v1298 = vunpack.c.l.b16 %v1216
      %v1299 = vpack.c.b16 %v1268, %v1267
      %v1300 = vpack.c.b16 %v1270, %v1269
      %v1301 = vpack.c.b16 %v1272, %v1271
      %v1302 = vpack.c.b16 %v1274, %v1273
      %v1303 = vpack.c.b16 %v1276, %v1275
      %v1304 = vpack.c.b16 %v1278, %v1277
      %v1305 = vpack.c.b16 %v1280, %v1279
      %v1306 = vpack.c.b16 %v1282, %v1281
      %v1307 = vpack.c.b16 %v1284, %v1283
      %v1308 = vpack.c.b16 %v1286, %v1285
      %v1309 = vpack.c.b16 %v1288, %v1287
      %v1310 = vpack.c.b16 %v1290, %v1289
      %v1311 = vpack.c.b16 %v1292, %v1291
      %v1312 = vpack.c.b16 %v1294, %v1293
      %v1313 = vpack.c.b16 %v1296, %v1295
      %v1314 = vpack.c.b16 %v1298, %v1297
      %1331 = vmatprep.subr.bf16.mxu0 0
      %1332 = vmatpush1.bf16.msra.mxu0 %v1299
      %1333 = vmatprep.subr.bf16.mxu0 0
      %1334 = vmatpush1.bf16.msra.mxu0 %v1300
      %1335 = vmatprep.subr.bf16.mxu0 0
      %1336 = vmatpush1.bf16.msra.mxu0 %v1301
      %1337 = vmatprep.subr.bf16.mxu0 0
      %1338 = vmatpush1.bf16.msra.mxu0 %v1302
      %1339 = vmatprep.subr.bf16.mxu0 0
      %1340 = vmatpush1.bf16.msra.mxu0 %v1303
      %1341 = vmatprep.subr.bf16.mxu0 0
      %1342 = vmatpush1.bf16.msra.mxu0 %v1304
      %1343 = vmatprep.subr.bf16.mxu0 0
      %1344 = vmatpush1.bf16.msra.mxu0 %v1305
      %1345 = vmatprep.subr.bf16.mxu0 0
      %1346 = vmatpush1.bf16.msra.mxu0 %v1306
      %1347 = vmatprep.subr.bf16.mxu0 0
      %1348 = vmatpush1.bf16.msra.mxu0 %v1307
      %1349 = vmatprep.subr.bf16.mxu0 0
      %1350 = vmatpush1.bf16.msra.mxu0 %v1308
      %1351 = vmatprep.subr.bf16.mxu0 0
      %1352 = vmatpush1.bf16.msra.mxu0 %v1309
      %1353 = vmatprep.subr.bf16.mxu0 0
      %1354 = vmatpush1.bf16.msra.mxu0 %v1310
      %1355 = vmatprep.subr.bf16.mxu0 0
      %1356 = vmatpush1.bf16.msra.mxu0 %v1311
      %1357 = vmatprep.subr.bf16.mxu0 0
      %1358 = vmatpush1.bf16.msra.mxu0 %v1312
      %1359 = vmatprep.subr.bf16.mxu0 0
      %1360 = vmatpush1.bf16.msra.mxu0 %v1313
      %1361 = vmatprep.subr.bf16.mxu0 0
      %1362 = vmatpush1.bf16.msra.mxu0 %v1314
      %1363 = vmatprep.mubr.bf16.mxu0 %v1220
      %1364 = vmatmul.mubr.bf16.gmra.mrb[0].mxu0 %v1219
      %v1365 = vpop.f32.mrb[0].mxu0
      %v1366 = vadd.f32 0.0, %v1365
      %v1367 = vpop.f32.mrb[0].mxu0
      %v1368 = vpop.f32.mrb[0].mxu0
      %v1369 = vadd.f32 0.0, %v1368
      %v1370 = vpop.f32.mrb[0].mxu0
      %1371 = vmatprep.mubr.bf16.mxu0 %v1222
      %1372 = vmatmul.mubr.bf16.gmra.mrb[0].mxu0 %v1221
      %v1373 = vpop.f32.mrb[0].mxu0
      %v1374 = vadd.f32 0.0, %v1373
      %v1375 = vpop.f32.mrb[0].mxu0
      %v1376 = vpop.f32.mrb[0].mxu0
      %v1377 = vadd.f32 0.0, %v1376
      %v1378 = vpop.f32.mrb[0].mxu0
      %1379 = vmatprep.mubr.bf16.mxu0 %v1224
      %1380 = vmatmul.mubr.bf16.gmra.mrb[0].mxu0 %v1223
      %v1381 = vpop.f32.mrb[0].mxu0
      %v1382 = vadd.f32 0.0, %v1381
      %v1383 = vpop.f32.mrb[0].mxu0
      %v1384 = vpop.f32.mrb[0].mxu0
      %v1385 = vadd.f32 0.0, %v1384
      %v1386 = vpop.f32.mrb[0].mxu0
      %1387 = vmatprep.mubr.bf16.mxu0 %v1226
      %1388 = vmatmul.mubr.bf16.gmra.mrb[0].mxu0 %v1225
      %v1389 = vpop.f32.mrb[0].mxu0
      %v1390 = vadd.f32 0.0, %v1389
      %v1391 = vpop.f32.mrb[0].mxu0
      %v1392 = vpop.f32.mrb[0].mxu0
      %v1393 = vadd.f32 0.0, %v1392
      %v1394 = vpop.f32.mrb[0].mxu0
      %1395 = vdwg.mxu0
      %v1396 = vadd.f32 %v1162, %v1366
      %v1397 = vadd.f32 %v1163, %v1369
      %v1398 = vadd.f32 %v1164, %v1374
      %v1399 = vadd.f32 %v1165, %v1377
      %v1400 = vadd.f32 %v1166, %v1382
      %v1401 = vadd.f32 %v1167, %v1385
      %v1402 = vadd.f32 %v1168, %v1390
      %v1403 = vadd.f32 %v1169, %v1393
      %v1404 = vld [vmem:[%s3] sm:$0x1]
      %v1406 = vlaneseq
      %v1407 = vshrl.u32 %v1406, 7
      %v1408 = vsub.s32 0, %v1407
      %v1409 = vrot.slane %v1404, %v1408
      %v1411 = vadd.f32 %v1396, %v1409
      %v1412 = vadd.f32 %v1397, %v1409
      %v1413 = vadd.f32 %v1398, %v1409
      %v1414 = vadd.f32 %v1399, %v1409
      %v1415 = vadd.f32 %v1400, %v1409
      %v1416 = vadd.f32 %v1401, %v1409
      %v1417 = vadd.f32 %v1402, %v1409
      %v1418 = vadd.f32 %v1403, %v1409
      %v1419 = vpack.c.bf16 %v1412, %v1411
      %v1420 = vpack.c.bf16 %v1414, %v1413
      %v1421 = vpack.c.bf16 %v1416, %v1415
      %v1422 = vpack.c.bf16 %v1418, %v1417
      %v1427 = vunpack.c.l.b16 %v1419
      %v1428 = vunpack.c.h.b16 %v1419
      %v1429 = vunpack.c.l.b16 %v1420
      %v1430 = vunpack.c.h.b16 %v1420
      %v1431 = vunpack.c.l.b16 %v1421
      %v1432 = vunpack.c.h.b16 %v1421
      %v1433 = vunpack.c.l.b16 %v1422
      %v1434 = vunpack.c.h.b16 %v1422
      %v1435 = vpack.c.b16 %v1427, %v1427
      %v1436 = vpack.c.b16 %v1428, %v1428
      %v1437 = vpack.c.b16 %v1429, %v1429
      %v1438 = vpack.c.b16 %v1430, %v1430
      %v1439 = vpack.c.b16 %v1431, %v1431
      %v1440 = vpack.c.b16 %v1432, %v1432
      %v1441 = vpack.c.b16 %v1433, %v1433
      %v1442 = vpack.c.b16 %v1434, %v1434
      %1451 = vst [vmem:[%s347] sm:$0xf] %v1435
      %1452 = vst [vmem:[%s347 + $0x4] sm:$0xf] %v1436
      %1453 = vst [vmem:[%s347 + $0x8] sm:$0xf] %v1437
      %1454 = vst [vmem:[%s347 + $0xc] sm:$0xf] %v1438
      %1455 = vst [vmem:[%s347 + $0x10] sm:$0xf] %v1439
      %1456 = vst [vmem:[%s347 + $0x14] sm:$0xf] %v1440
      %1457 = vst [vmem:[%s347 + $0x18] sm:$0xf] %v1441
      %1458 = vst [vmem:[%s347 + $0x1c] sm:$0xf] %v1442
      %v1459 = vadd.f32 %v1411, %v1412
      %v1460 = vadd.f32 %v1459, %v1413
      %v1461 = vadd.f32 %v1460, %v1414
      %v1462 = vadd.f32 %v1461, %v1415
      %v1463 = vadd.f32 %v1462, %v1416
      %v1464 = vadd.f32 %v1463, %v1417
      %v1465 = vadd.f32 %v1464, %v1418
      %v1466 = vrot.slane %v1465, 4
      %v1467 = vadd.f32 %v1465, %v1466
      %v1468 = vrot.slane %v1467, 2
      %v1469 = vadd.f32 %v1467, %v1468
      %v1470 = vrot.slane %v1469, 1
      %v1471 = vadd.f32 %v1469, %v1470
      %v1472 = vmul.f32 %v1411, %v1411
      %v1473 = vmul.f32 %v1412, %v1412
      %v1474 = vmul.f32 %v1413, %v1413
      %v1475 = vmul.f32 %v1414, %v1414
      %v1476 = vmul.f32 %v1415, %v1415
      %v1477 = vmul.f32 %v1416, %v1416
      %v1478 = vmul.f32 %v1417, %v1417
      %v1479 = vmul.f32 %v1418, %v1418
      %v1480 = vadd.f32 %v1472, %v1473
      %v1481 = vadd.f32 %v1480, %v1474
      %v1482 = vadd.f32 %v1481, %v1475
      %v1483 = vadd.f32 %v1482, %v1476
      %v1484 = vadd.f32 %v1483, %v1477
      %v1485 = vadd.f32 %v1484, %v1478
      %v1486 = vadd.f32 %v1485, %v1479
      %v1487 = vrot.slane %v1486, 4
      %v1488 = vadd.f32 %v1486, %v1487
      %v1489 = vrot.slane %v1488, 2
      %v1490 = vadd.f32 %v1488, %v1489
      %v1491 = vrot.slane %v1490, 1
      %v1492 = vadd.f32 %v1490, %v1491
      %vm1493 = vcmask 1040384
      %v1494 = vsel %vm1493, %v1471, %v1492
      %1495 = vst [vmem:[%s354] sm:$0x3] %v1494
      %s1496 = sadd.s32 %s21, %s22
      %s1497 = smul.u32 8, %s1496
      %p1498 = scmp.lt.s32.totalorder %s1497, 15
      %s1499 = scalar_select %p1498, %s1497, 15
      %s1500 = smul.addr %s1499, 4
      %s1501 = scalar_lea.vmem %s4, %s1500
      %s1502 = sadd.s32 %s21, %s22
      %p1503 = scmp.lt.s32.totalorder %s1502, 1
      %s1504 = scalar_select %p1503, %s1502, 1
      %s1505 = smul.addr %s1504, 2
      %s1506 = scalar_lea.vmem %s5, %s1505
      // Predicated region
      $region37: #{discriminator_forward.5} parent=35 // pred_check
        %p1507 = pneg %p151
      $region38: #{discriminator_forward.5} parent=35 // pred_check_branch
        %1509 = sbr.rel (%p1507) target = $region40
      $region39: #{discriminator_forward.5} parent=35 // pred_region
        %s1510 = sadd.s32 %s21, %s22
        %s1511 = smul.u32 8, %s1510
      $region40: #{discriminator_forward.5} parent=35 // pred_fallthru
        _
      // Predicated region
      $region41: #{discriminator_forward.5} parent=35 // pred_check
        %p1512 = pneg %p179
      $region42: #{discriminator_forward.5} parent=35 // pred_check_branch
        %1514 = sbr.rel (%p1512) target = $region44
      $region43: #{discriminator_forward.5} parent=35 // pred_region
        %s1515 = sadd.s32 %s21, %s22
      $region44: #{discriminator_forward.5} parent=35 // pred_fallthru
        _
    $region36: #{discriminator_forward.5} parent=5 // pred_fallthru
      _
    %p1516 = scmp.le.s32.totalorder 2, %s12
    // Predicated region
    $region45: #{discriminator_forward.5} parent=5 // pred_check
      %p1517 = pneg %p1516
    $region46: #{discriminator_forward.5} parent=5 // pred_check_branch
      %1519 = sbr.rel (%p1517) target = $region48
    $region47: #{discriminator_forward.5} parent=5 // pred_region
      %s1520 = ssub.s32 %s12, 2
      // Predicated region
      $region49: #{discriminator_forward.5} parent=47 // pred_check
        %p1521 = pneg %p157
      $region50: #{discriminator_forward.5} parent=47 // pred_check_branch
        %1523 = sbr.rel (%p1521) target = $region52
      $region51: #{discriminator_forward.5} parent=47 // pred_region
        %s1524 = sadd.s32 %s23, %s24
        %s1525 = smul.u32 8, %s1524
        %p1526 = scmp.lt.s32.totalorder %s1525, 15
        %s1527 = scalar_select %p1526, %s1525, 15
        %s1528 = smul.addr %s1527, 4
        %s1529 = scalar_lea.vmem %s4, %s1528
      $region52: #{discriminator_forward.5} parent=47 // pred_fallthru
        _
      // Predicated region
      $region53: #{discriminator_forward.5} parent=47 // pred_check
        %p1530 = pneg %p185
      $region54: #{discriminator_forward.5} parent=47 // pred_check_branch
        %1532 = sbr.rel (%p1530) target = $region56
      $region55: #{discriminator_forward.5} parent=47 // pred_region
        %s1533 = sadd.s32 %s23, %s24
        %p1534 = scmp.lt.s32.totalorder %s1533, 1
        %s1535 = scalar_select %p1534, %s1533, 1
        %s1536 = smul.addr %s1535, 2
        %s1537 = scalar_lea.vmem %s5, %s1536
      $region56: #{discriminator_forward.5} parent=47 // pred_fallthru
        _
    $region48: #{discriminator_forward.5} parent=5 // pred_fallthru
      _
  $region6: #{discriminator_forward.5} parent=0 // loop_footer
    %s16 = sadd.s32 1, %s12
  $region7: #{discriminator_forward.5} parent=0 // loop_footer_branch
    %11 = sbr.rel target = $region3
  $region8: #{discriminator_forward.5} parent=0 // loop_exit
    _

// kernel: discriminator_forward.7
$region0: #{discriminator_forward.7}
  #allocation0 [shape = 'u32[]', space=smem, size = 0x4, offset = 0x4, fixed_abs, tag = 'smem constant byte address 0x4 - core index']
  #allocation1 [shape = 'u32[144,128]{1,0:T(1,128)}', space=vmem, size = 0x12000, scoped, tag = 'internal scratch']
  #allocation2 [shape = 'f32[1,1]{1,0:T(1,128)S(6)}', space=smem, size = 0x200, scoped, tag = 'scoped memory for discriminator_forward.7']
  %s0 = inlined_call_operand.vmem [shape: bf16[2,16,256], index: 0, kind: input, shape index: {}]
  %s1 = inlined_call_operand.vmem [shape: f32[1,256], index: 1, kind: input, shape index: {}]
  %s2 = inlined_call_operand.vmem [shape: f32[1,256], index: 2, kind: input, shape index: {}]
  %s3 = inlined_call_operand.vmem [shape: f32[1,256], index: 3, kind: input, shape index: {}]
  %s4 = inlined_call_operand.<no memory space> [shape: f32[1,1], index: 4, kind: input, shape index: {}]
  %s5 = inlined_call_operand.vmem [shape: f32[2,1], index: 5, kind: output, shape index: {}]
  %s6 = sld [smem:[#allocation0]]
  $region30: #{discriminator_forward.7} parent=0
    _
  %s8 = ssub.s32 1, %s6
  %s9 = scalar_select 0, %s8, %s6
  %10 = sst [smem:[#allocation2]] %s4
  // Predicated region
  $region2: #{discriminator_forward.7} parent=0 // pred_check
    _
  $region3: #{discriminator_forward.7} parent=0 // pred_check_branch
    %12 = sbr.rel (0) target = $region5
  $region4: #{discriminator_forward.7} parent=0 // pred_region
    _
  $region5: #{discriminator_forward.7} parent=0 // pred_fallthru
    _
  // Predicated region
  $region6: #{discriminator_forward.7} parent=0 // pred_check
    _
  $region7: #{discriminator_forward.7} parent=0 // pred_check_branch
    %14 = sbr.rel (0) target = $region9
  $region8: #{discriminator_forward.7} parent=0 // pred_region
    _
  $region9: #{discriminator_forward.7} parent=0 // pred_fallthru
    _
  // Predicated region
  $region10: #{discriminator_forward.7} parent=0 // pred_check
    _
  $region11: #{discriminator_forward.7} parent=0 // pred_check_branch
    %16 = sbr.rel (0) target = $region13
  $region12: #{discriminator_forward.7} parent=0 // pred_region
    _
  $region13: #{discriminator_forward.7} parent=0 // pred_fallthru
    _
  // Predicated region
  $region14: #{discriminator_forward.7} parent=0 // pred_check
    _
  $region15: #{discriminator_forward.7} parent=0 // pred_check_branch
    %18 = sbr.rel (0) target = $region17
  $region16: #{discriminator_forward.7} parent=0 // pred_region
    _
  $region17: #{discriminator_forward.7} parent=0 // pred_fallthru
    _
  // Predicated region
  $region18: #{discriminator_forward.7} parent=0 // pred_check
    _
  $region19: #{discriminator_forward.7} parent=0 // pred_check_branch
    %20 = sbr.rel (0) target = $region21
  $region20: #{discriminator_forward.7} parent=0 // pred_region
    _
  $region21: #{discriminator_forward.7} parent=0 // pred_fallthru
    _
  %v21 = vld [vmem:[%s1] sm:$0x3]
  %v22 = vld [vmem:[%s2] sm:$0x3]
  %v23 = vld [vmem:[%s3] sm:$0x3]
  %s24 = sld [smem:[#allocation2]]
  %v25 = vld [vmem:[%s0] sm:$0xff]
  %v26 = vld [vmem:[%s0 + $0x8] sm:$0xff]
  %v27 = vunpack.c.l.bf16 %v25
  %v28 = vunpack.c.h.bf16 %v25
  %v29 = vunpack.c.l.bf16 %v26
  %v30 = vunpack.c.h.bf16 %v26
  %v32 = vlaneseq
  %v33 = vshrl.u32 %v32, 7
  %v34 = vsub.s32 0, %v33
  %v35 = vrot.slane %v21, %v34
  %v36 = vlaneseq
  %v37 = vshrl.u32 %v36, 7
  %v38 = vsub.s32 1, %v37
  %v39 = vrot.slane %v21, %v38
  %v42 = vmul.f32 %v27, %v35
  %v43 = vmul.f32 %v28, %v39
  %v44 = vmul.f32 %v29, %v35
  %v45 = vmul.f32 %v30, %v39
  %v47 = vlaneseq
  %v48 = vshrl.u32 %v47, 7
  %v49 = vsub.s32 0, %v48
  %v50 = vrot.slane %v22, %v49
  %v51 = vlaneseq
  %v52 = vshrl.u32 %v51, 7
  %v53 = vsub.s32 1, %v52
  %v54 = vrot.slane %v22, %v53
  %v57 = vadd.f32 %v42, %v50
  %v58 = vadd.f32 %v43, %v54
  %v59 = vadd.f32 %v44, %v50
  %v60 = vadd.f32 %v45, %v54
  %vm61 = vcmp.gt.f32.partialorder %v57, 0.0
  %vm62 = vcmp.gt.f32.partialorder %v58, 0.0
  %vm63 = vcmp.gt.f32.partialorder %v59, 0.0
  %vm64 = vcmp.gt.f32.partialorder %v60, 0.0
  %v65 = vmul.f32 %v57, 0.2
  %v66 = vmul.f32 %v58, 0.2
  %v67 = vmul.f32 %v59, 0.2
  %v68 = vmul.f32 %v60, 0.2
  %v69 = vsel %vm61, %v57, %v65
  %v70 = vsel %vm62, %v58, %v66
  %v71 = vsel %vm63, %v59, %v67
  %v72 = vsel %vm64, %v60, %v68
  %v73 = vadd.f32 %v69, %v71
  %v74 = vrot.slane %v73, 4
  %v75 = vadd.f32 %v73, %v74
  %v76 = vrot.slane %v75, 2
  %v77 = vadd.f32 %v75, %v76
  %v78 = vrot.slane %v77, 1
  %v79 = vadd.f32 %v77, %v78
  %v80 = vadd.f32 %v70, %v72
  %v81 = vrot.slane %v80, 4
  %v82 = vadd.f32 %v80, %v81
  %v83 = vrot.slane %v82, 2
  %v84 = vadd.f32 %v82, %v83
  %v85 = vrot.slane %v84, 1
  %v86 = vadd.f32 %v84, %v85
  %v87 = vmul.f32 %v79, 0.0625
  %v88 = vmul.f32 %v86, 0.0625
  %v90 = vlaneseq
  %v91 = vshrl.u32 %v90, 7
  %v92 = vsub.s32 0, %v91
  %v93 = vrot.slane %v23, %v92
  %v94 = vlaneseq
  %v95 = vshrl.u32 %v94, 7
  %v96 = vsub.s32 1, %v95
  %v97 = vrot.slane %v23, %v96
  %v100 = vmul.f32 %v87, %v93
  %v101 = vmul.f32 %v88, %v97
  %vm102 = vcmask 1040384
  %v103 = vsel %vm102, %v100, 0.0
  %v104 = vsel %vm102, %v101, 0.0
  %v105 = vadd.f32 %v103, %v104
  %106 = vadd.xlane.f32.xlu0 %v105
  %v107 = vpop.xlane.xlu0 %106
  %v108 = vstv %s24
  %v109 = vadd.f32 %v107, %v108
  %v110 = vsub.f32 0.0, %v109
  %v111 = vmul.f32 %v110, 1.442695
  %v112 = vpow.pop %v111
  %v113 = vadd.f32 %v112, 1.0
  %v114 = vrcp.pop %v113
  %v115 = vmul.f32 1.0, %v114
  %s116 = scalar_lea.vmem %s0, 16
  %v117 = vld [vmem:[%s116] sm:$0xff]
  %v118 = vld [vmem:[%s116 + $0x8] sm:$0xff]
  %v119 = vunpack.c.l.bf16 %v117
  %v120 = vunpack.c.h.bf16 %v117
  %v121 = vunpack.c.l.bf16 %v118
  %v122 = vunpack.c.h.bf16 %v118
  %v123 = vmul.f32 %v119, %v35
  %v124 = vmul.f32 %v120, %v39
  %v125 = vmul.f32 %v121, %v35
  %v126 = vmul.f32 %v122, %v39
  %v127 = vadd.f32 %v123, %v50
  %v128 = vadd.f32 %v124, %v54
  %v129 = vadd.f32 %v125, %v50
  %v130 = vadd.f32 %v126, %v54
  %vm131 = vcmp.gt.f32.partialorder %v127, 0.0
  %vm132 = vcmp.gt.f32.partialorder %v128, 0.0
  %vm133 = vcmp.gt.f32.partialorder %v129, 0.0
  %vm134 = vcmp.gt.f32.partialorder %v130, 0.0
  %v135 = vmul.f32 %v127, 0.2
  %v136 = vmul.f32 %v128, 0.2
  %v137 = vmul.f32 %v129, 0.2
  %v138 = vmul.f32 %v130, 0.2
  %v139 = vsel %vm131, %v127, %v135
  %v140 = vsel %vm132, %v128, %v136
  %v141 = vsel %vm133, %v129, %v137
  %v142 = vsel %vm134, %v130, %v138
  %v143 = vadd.f32 %v139, %v141
  %v144 = vrot.slane %v143, 4
  %v145 = vadd.f32 %v143, %v144
  %v146 = vrot.slane %v145, 2
  %v147 = vadd.f32 %v145, %v146
  %v148 = vrot.slane %v147, 1
  %v149 = vadd.f32 %v147, %v148
  %v150 = vadd.f32 %v140, %v142
  %v151 = vrot.slane %v150, 4
  %v152 = vadd.f32 %v150, %v151
  %v153 = vrot.slane %v152, 2
  %v154 = vadd.f32 %v152, %v153
  %v155 = vrot.slane %v154, 1
  %v156 = vadd.f32 %v154, %v155
  %v157 = vmul.f32 %v149, 0.0625
  %v158 = vmul.f32 %v156, 0.0625
  %v159 = vmul.f32 %v157, %v93
  %v160 = vmul.f32 %v158, %v97
  %v161 = vsel %vm102, %v159, 0.0
  %v162 = vsel %vm102, %v160, 0.0
  %v163 = vadd.f32 %v161, %v162
  %164 = vadd.xlane.f32.xlu0 %v163
  %v165 = vpop.xlane.xlu0 %164
  %v166 = vadd.f32 %v165, %v108
  %v167 = vsub.f32 0.0, %v166
  %v168 = vmul.f32 %v167, 1.442695
  %v169 = vpow.pop %v168
  %v170 = vadd.f32 %v169, 1.0
  %v171 = vrcp.pop %v170
  %v172 = vmul.f32 1.0, %v171
  %v174 = vrot.slane %v172, 7
  %v176 = vsel %vm102, %v115, %v174
  %vm177 = vcmask 1024
  %178 = vst.msk [vmem:[%s5] sm:$0x3] %vm177, %v176
  // Predicated region
  $region22: #{discriminator_forward.7} parent=0 // pred_check
    _
  $region23: #{discriminator_forward.7} parent=0 // pred_check_branch
    %180 = sbr.rel (0) target = $region25
  $region24: #{discriminator_forward.7} parent=0 // pred_region
    _
  $region25: #{discriminator_forward.7} parent=0 // pred_fallthru
    _
  // Predicated region
  $region26: #{discriminator_forward.7} parent=0 // pred_check
    _
  $region27: #{discriminator_forward.7} parent=0 // pred_check_branch
    %182 = sbr.rel (0) target = $region29
  $region28: #{discriminator_forward.7} parent=0 // pred_region
    _
  $region29: #{discriminator_forward.7} parent=0 // pred_fallthru
    _

// kernel: discriminator_forward.6
$region0: #{discriminator_forward.6}
  #allocation0 [shape = 'u32[]', space=smem, size = 0x4, offset = 0x4, fixed_abs, tag = 'smem constant byte address 0x4 - core index']
  #allocation1 [shape = 'u32[144,128]{1,0:T(1,128)}', space=vmem, size = 0x12000, scoped, tag = 'internal scratch']
  %s0 = inlined_call_operand.vmem [shape: bf16[32,2048], index: 0, kind: input, shape index: {}]
  %s1 = inlined_call_operand.vmem [shape: bf16[2048,256], index: 1, kind: input, shape index: {}]
  %s2 = inlined_call_operand.vmem [shape: f32[1,256], index: 2, kind: input, shape index: {}]
  %s3 = inlined_call_operand.vmem [shape: bf16[32,256], index: 3, kind: output, shape index: {0}]
  %s4 = inlined_call_operand.vmem [shape: f32[1,2,256], index: 4, kind: output, shape index: {1}]
  %5 = xla_tuple %s3, %s4
  %s6 = sld [smem:[#allocation0]]
  $region30: #{discriminator_forward.6} parent=0
    _
  %s8 = ssub.s32 1, %s6
  %s9 = scalar_select 0, %s8, %s6
  // Predicated region
  $region2: #{discriminator_forward.6} parent=0 // pred_check
    _
  $region3: #{discriminator_forward.6} parent=0 // pred_check_branch
    %11 = sbr.rel (0) target = $region5
  $region4: #{discriminator_forward.6} parent=0 // pred_region
    _
  $region5: #{discriminator_forward.6} parent=0 // pred_fallthru
    _
  // Predicated region
  $region6: #{discriminator_forward.6} parent=0 // pred_check
    _
  $region7: #{discriminator_forward.6} parent=0 // pred_check_branch
    %13 = sbr.rel (0) target = $region9
  $region8: #{discriminator_forward.6} parent=0 // pred_region
    _
  $region9: #{discriminator_forward.6} parent=0 // pred_fallthru
    _
  // Predicated region
  $region10: #{discriminator_forward.6} parent=0 // pred_check
    _
  $region11: #{discriminator_forward.6} parent=0 // pred_check_branch
    %15 = sbr.rel (0) target = $region13
  $region12: #{discriminator_forward.6} parent=0 // pred_region
    _
  $region13: #{discriminator_forward.6} parent=0 // pred_fallthru
    _
  %v16 = vld [vmem:[%s0] sm:$0xff]
  %v17 = vld [vmem:[%s0 + $0x8] sm:$0xff]
  %v18 = vld [vmem:[%s0 + $0x10] sm:$0xff]
  %v19 = vld [vmem:[%s0 + $0x18] sm:$0xff]
  %v20 = vld [vmem:[%s0 + $0x20] sm:$0xff]
  %v21 = vld [vmem:[%s0 + $0x28] sm:$0xff]
  %v22 = vld [vmem:[%s0 + $0x30] sm:$0xff]
  %v23 = vld [vmem:[%s0 + $0x38] sm:$0xff]
  %v24 = vld [vmem:[%s0 + $0x40] sm:$0xff]
  %v25 = vld [vmem:[%s0 + $0x48] sm:$0xff]
  %v26 = vld [vmem:[%s0 + $0x50] sm:$0xff]
  %v27 = vld [vmem:[%s0 + $0x58] sm:$0xff]
  %v28 = vld [vmem:[%s0 + $0x60] sm:$0xff]
  %v29 = vld [vmem:[%s0 + $0x68] sm:$0xff]
  %v30 = vld [vmem:[%s0 + $0x70] sm:$0xff]
  %v31 = vld [vmem:[%s0 + $0x78] sm:$0xff]
  %v32 = vld [vmem:[%s0 + $0x80] sm:$0xff]
  %v33 = vld [vmem:[%s0 + $0x88] sm:$0xff]
  %v34 = vld [vmem:[%s0 + $0x90] sm:$0xff]
  %v35 = vld [vmem:[%s0 + $0x98] sm:$0xff]
  %v36 = vld [vmem:[%s0 + $0xa0] sm:$0xff]
  %v37 = vld [vmem:[%s0 + $0xa8] sm:$0xff]
  %v38 = vld [vmem:[%s0 + $0xb0] sm:$0xff]
  %v39 = vld [vmem:[%s0 + $0xb8] sm:$0xff]
  %v40 = vld [vmem:[%s0 + $0xc0] sm:$0xff]
  %v41 = vld [vmem:[%s0 + $0xc8] sm:$0xff]
  %v42 = vld [vmem:[%s0 + $0xd0] sm:$0xff]
  %v43 = vld [vmem:[%s0 + $0xd8] sm:$0xff]
  %v44 = vld [vmem:[%s0 + $0xe0] sm:$0xff]
  %v45 = vld [vmem:[%s0 + $0xe8] sm:$0xff]
  %v46 = vld [vmem:[%s0 + $0xf0] sm:$0xff]
  %v47 = vld [vmem:[%s0 + $0xf8] sm:$0xff]
  %v48 = vld [vmem:[%s1] sm:$0xff]
  %v49 = vld [vmem:[%s1 + $0x8] sm:$0xff]
  %v50 = vld [vmem:[%s1 + $0x10] sm:$0xff]
  %v51 = vld [vmem:[%s1 + $0x18] sm:$0xff]
  %v52 = vld [vmem:[%s1 + $0x20] sm:$0xff]
  %v53 = vld [vmem:[%s1 + $0x28] sm:$0xff]
  %v54 = vld [vmem:[%s1 + $0x30] sm:$0xff]
  %v55 = vld [vmem:[%s1 + $0x38] sm:$0xff]
  %v56 = vld [vmem:[%s1 + $0x40] sm:$0xff]
  %v57 = vld [vmem:[%s1 + $0x48] sm:$0xff]
  %v58 = vld [vmem:[%s1 + $0x50] sm:$0xff]
  %v59 = vld [vmem:[%s1 + $0x58] sm:$0xff]
  %v60 = vld [vmem:[%s1 + $0x60] sm:$0xff]
  %v61 = vld [vmem:[%s1 + $0x68] sm:$0xff]
  %v62 = vld [vmem:[%s1 + $0x70] sm:$0xff]
  %v63 = vld [vmem:[%s1 + $0x78] sm:$0xff]
  %v64 = vld [vmem:[%s1 + $0x80] sm:$0xff]
  %v65 = vld [vmem:[%s1 + $0x88] sm:$0xff]
  %v66 = vld [vmem:[%s1 + $0x90] sm:$0xff]
  %v67 = vld [vmem:[%s1 + $0x98] sm:$0xff]
  %v68 = vld [vmem:[%s1 + $0xa0] sm:$0xff]
  %v69 = vld [vmem:[%s1 + $0xa8] sm:$0xff]
  %v70 = vld [vmem:[%s1 + $0xb0] sm:$0xff]
  %v71 = vld [vmem:[%s1 + $0xb8] sm:$0xff]
  %v72 = vld [vmem:[%s1 + $0xc0] sm:$0xff]
  %v73 = vld [vmem:[%s1 + $0xc8] sm:$0xff]
  %v74 = vld [vmem:[%s1 + $0xd0] sm:$0xff]
  %v75 = vld [vmem:[%s1 + $0xd8] sm:$0xff]
  %v76 = vld [vmem:[%s1 + $0xe0] sm:$0xff]
  %v77 = vld [vmem:[%s1 + $0xe8] sm:$0xff]
  %v78 = vld [vmem:[%s1 + $0xf0] sm:$0xff]
  %v79 = vld [vmem:[%s1 + $0xf8] sm:$0xff]
  %v80 = vld [vmem:[%s1 + $0x100] sm:$0xff]
  %v81 = vld [vmem:[%s1 + $0x108] sm:$0xff]
  %v82 = vld [vmem:[%s1 + $0x110] sm:$0xff]
  %v83 = vld [vmem:[%s1 + $0x118] sm:$0xff]
  %v84 = vld [vmem:[%s1 + $0x120] sm:$0xff]
  %v85 = vld [vmem:[%s1 + $0x128] sm:$0xff]
  %v86 = vld [vmem:[%s1 + $0x130] sm:$0xff]
  %v87 = vld [vmem:[%s1 + $0x138] sm:$0xff]
  %v88 = vld [vmem:[%s1 + $0x140] sm:$0xff]
  %v89 = vld [vmem:[%s1 + $0x148] sm:$0xff]
  %v90 = vld [vmem:[%s1 + $0x150] sm:$0xff]
  %v91 = vld [vmem:[%s1 + $0x158] sm:$0xff]
  %v92 = vld [vmem:[%s1 + $0x160] sm:$0xff]
  %v93 = vld [vmem:[%s1 + $0x168] sm:$0xff]
  %v94 = vld [vmem:[%s1 + $0x170] sm:$0xff]
  %v95 = vld [vmem:[%s1 + $0x178] sm:$0xff]
  %v96 = vld [vmem:[%s1 + $0x180] sm:$0xff]
  %v97 = vld [vmem:[%s1 + $0x188] sm:$0xff]
  %v98 = vld [vmem:[%s1 + $0x190] sm:$0xff]
  %v99 = vld [vmem:[%s1 + $0x198] sm:$0xff]
  %v100 = vld [vmem:[%s1 + $0x1a0] sm:$0xff]
  %v101 = vld [vmem:[%s1 + $0x1a8] sm:$0xff]
  %v102 = vld [vmem:[%s1 + $0x1b0] sm:$0xff]
  %v103 = vld [vmem:[%s1 + $0x1b8] sm:$0xff]
  %v104 = vld [vmem:[%s1 + $0x1c0] sm:$0xff]
  %v105 = vld [vmem:[%s1 + $0x1c8] sm:$0xff]
  %v106 = vld [vmem:[%s1 + $0x1d0] sm:$0xff]
  %v107 = vld [vmem:[%s1 + $0x1d8] sm:$0xff]
  %v108 = vld [vmem:[%s1 + $0x1e0] sm:$0xff]
  %v109 = vld [vmem:[%s1 + $0x1e8] sm:$0xff]
  %v110 = vld [vmem:[%s1 + $0x1f0] sm:$0xff]
  %v111 = vld [vmem:[%s1 + $0x1f8] sm:$0xff]
  %v112 = vld [vmem:[%s1 + $0x200] sm:$0xff]
  %v113 = vld [vmem:[%s1 + $0x208] sm:$0xff]
  %v114 = vld [vmem:[%s1 + $0x210] sm:$0xff]
  %v115 = vld [vmem:[%s1 + $0x218] sm:$0xff]
  %v116 = vld [vmem:[%s1 + $0x220] sm:$0xff]
  %v117 = vld [vmem:[%s1 + $0x228] sm:$0xff]
  %v118 = vld [vmem:[%s1 + $0x230] sm:$0xff]
  %v119 = vld [vmem:[%s1 + $0x238] sm:$0xff]
  %v120 = vld [vmem:[%s1 + $0x240] sm:$0xff]
  %v121 = vld [vmem:[%s1 + $0x248] sm:$0xff]
  %v122 = vld [vmem:[%s1 + $0x250] sm:$0xff]
  %v123 = vld [vmem:[%s1 + $0x258] sm:$0xff]
  %v124 = vld [vmem:[%s1 + $0x260] sm:$0xff]
  %v125 = vld [vmem:[%s1 + $0x268] sm:$0xff]
  %v126 = vld [vmem:[%s1 + $0x270] sm:$0xff]
  %v127 = vld [vmem:[%s1 + $0x278] sm:$0xff]
  %v128 = vld [vmem:[%s1 + $0x280] sm:$0xff]
  %v129 = vld [vmem:[%s1 + $0x288] sm:$0xff]
  %v130 = vld [vmem:[%s1 + $0x290] sm:$0xff]
  %v131 = vld [vmem:[%s1 + $0x298] sm:$0xff]
  %v132 = vld [vmem:[%s1 + $0x2a0] sm:$0xff]
  %v133 = vld [vmem:[%s1 + $0x2a8] sm:$0xff]
  %v134 = vld [vmem:[%s1 + $0x2b0] sm:$0xff]
  %v135 = vld [vmem:[%s1 + $0x2b8] sm:$0xff]
  %v136 = vld [vmem:[%s1 + $0x2c0] sm:$0xff]
  %v137 = vld [vmem:[%s1 + $0x2c8] sm:$0xff]
  %v138 = vld [vmem:[%s1 + $0x2d0] sm:$0xff]
  %v139 = vld [vmem:[%s1 + $0x2d8] sm:$0xff]
  %v140 = vld [vmem:[%s1 + $0x2e0] sm:$0xff]
  %v141 = vld [vmem:[%s1 + $0x2e8] sm:$0xff]
  %v142 = vld [vmem:[%s1 + $0x2f0] sm:$0xff]
  %v143 = vld [vmem:[%s1 + $0x2f8] sm:$0xff]
  %v144 = vld [vmem:[%s1 + $0x300] sm:$0xff]
  %v145 = vld [vmem:[%s1 + $0x308] sm:$0xff]
  %v146 = vld [vmem:[%s1 + $0x310] sm:$0xff]
  %v147 = vld [vmem:[%s1 + $0x318] sm:$0xff]
  %v148 = vld [vmem:[%s1 + $0x320] sm:$0xff]
  %v149 = vld [vmem:[%s1 + $0x328] sm:$0xff]
  %v150 = vld [vmem:[%s1 + $0x330] sm:$0xff]
  %v151 = vld [vmem:[%s1 + $0x338] sm:$0xff]
  %v152 = vld [vmem:[%s1 + $0x340] sm:$0xff]
  %v153 = vld [vmem:[%s1 + $0x348] sm:$0xff]
  %v154 = vld [vmem:[%s1 + $0x350] sm:$0xff]
  %v155 = vld [vmem:[%s1 + $0x358] sm:$0xff]
  %v156 = vld [vmem:[%s1 + $0x360] sm:$0xff]
  %v157 = vld [vmem:[%s1 + $0x368] sm:$0xff]
  %v158 = vld [vmem:[%s1 + $0x370] sm:$0xff]
  %v159 = vld [vmem:[%s1 + $0x378] sm:$0xff]
  %v160 = vld [vmem:[%s1 + $0x380] sm:$0xff]
  %v161 = vld [vmem:[%s1 + $0x388] sm:$0xff]
  %v162 = vld [vmem:[%s1 + $0x390] sm:$0xff]
  %v163 = vld [vmem:[%s1 + $0x398] sm:$0xff]
  %v164 = vld [vmem:[%s1 + $0x3a0] sm:$0xff]
  %v165 = vld [vmem:[%s1 + $0x3a8] sm:$0xff]
  %v166 = vld [vmem:[%s1 + $0x3b0] sm:$0xff]
  %v167 = vld [vmem:[%s1 + $0x3b8] sm:$0xff]
  %v168 = vld [vmem:[%s1 + $0x3c0] sm:$0xff]
  %v169 = vld [vmem:[%s1 + $0x3c8] sm:$0xff]
  %v170 = vld [vmem:[%s1 + $0x3d0] sm:$0xff]
  %v171 = vld [vmem:[%s1 + $0x3d8] sm:$0xff]
  %v172 = vld [vmem:[%s1 + $0x3e0] sm:$0xff]
  %v173 = vld [vmem:[%s1 + $0x3e8] sm:$0xff]
  %v174 = vld [vmem:[%s1 + $0x3f0] sm:$0xff]
  %v175 = vld [vmem:[%s1 + $0x3f8] sm:$0xff]
  %v176 = vld [vmem:[%s1 + $0x400] sm:$0xff]
  %v177 = vld [vmem:[%s1 + $0x408] sm:$0xff]
  %v178 = vld [vmem:[%s1 + $0x410] sm:$0xff]
  %v179 = vld [vmem:[%s1 + $0x418] sm:$0xff]
  %v180 = vld [vmem:[%s1 + $0x420] sm:$0xff]
  %v181 = vld [vmem:[%s1 + $0x428] sm:$0xff]
  %v182 = vld [vmem:[%s1 + $0x430] sm:$0xff]
  %v183 = vld [vmem:[%s1 + $0x438] sm:$0xff]
  %v184 = vld [vmem:[%s1 + $0x440] sm:$0xff]
  %v185 = vld [vmem:[%s1 + $0x448] sm:$0xff]
  %v186 = vld [vmem:[%s1 + $0x450] sm:$0xff]
  %v187 = vld [vmem:[%s1 + $0x458] sm:$0xff]
  %v188 = vld [vmem:[%s1 + $0x460] sm:$0xff]
  %v189 = vld [vmem:[%s1 + $0x468] sm:$0xff]
  %v190 = vld [vmem:[%s1 + $0x470] sm:$0xff]
  %v191 = vld [vmem:[%s1 + $0x478] sm:$0xff]
  %v192 = vld [vmem:[%s1 + $0x480] sm:$0xff]
  %v193 = vld [vmem:[%s1 + $0x488] sm:$0xff]
  %v194 = vld [vmem:[%s1 + $0x490] sm:$0xff]
  %v195 = vld [vmem:[%s1 + $0x498] sm:$0xff]
  %v196 = vld [vmem:[%s1 + $0x4a0] sm:$0xff]
  %v197 = vld [vmem:[%s1 + $0x4a8] sm:$0xff]
  %v198 = vld [vmem:[%s1 + $0x4b0] sm:$0xff]
  %v199 = vld [vmem:[%s1 + $0x4b8] sm:$0xff]
  %v200 = vld [vmem:[%s1 + $0x4c0] sm:$0xff]
  %v201 = vld [vmem:[%s1 + $0x4c8] sm:$0xff]
  %v202 = vld [vmem:[%s1 + $0x4d0] sm:$0xff]
  %v203 = vld [vmem:[%s1 + $0x4d8] sm:$0xff]
  %v204 = vld [vmem:[%s1 + $0x4e0] sm:$0xff]
  %v205 = vld [vmem:[%s1 + $0x4e8] sm:$0xff]
  %v206 = vld [vmem:[%s1 + $0x4f0] sm:$0xff]
  %v207 = vld [vmem:[%s1 + $0x4f8] sm:$0xff]
  %v208 = vld [vmem:[%s1 + $0x500] sm:$0xff]
  %v209 = vld [vmem:[%s1 + $0x508] sm:$0xff]
  %v210 = vld [vmem:[%s1 + $0x510] sm:$0xff]
  %v211 = vld [vmem:[%s1 + $0x518] sm:$0xff]
  %v212 = vld [vmem:[%s1 + $0x520] sm:$0xff]
  %v213 = vld [vmem:[%s1 + $0x528] sm:$0xff]
  %v214 = vld [vmem:[%s1 + $0x530] sm:$0xff]
  %v215 = vld [vmem:[%s1 + $0x538] sm:$0xff]
  %v216 = vld [vmem:[%s1 + $0x540] sm:$0xff]
  %v217 = vld [vmem:[%s1 + $0x548] sm:$0xff]
  %v218 = vld [vmem:[%s1 + $0x550] sm:$0xff]
  %v219 = vld [vmem:[%s1 + $0x558] sm:$0xff]
  %v220 = vld [vmem:[%s1 + $0x560] sm:$0xff]
  %v221 = vld [vmem:[%s1 + $0x568] sm:$0xff]
  %v222 = vld [vmem:[%s1 + $0x570] sm:$0xff]
  %v223 = vld [vmem:[%s1 + $0x578] sm:$0xff]
  %v224 = vld [vmem:[%s1 + $0x580] sm:$0xff]
  %v225 = vld [vmem:[%s1 + $0x588] sm:$0xff]
  %v226 = vld [vmem:[%s1 + $0x590] sm:$0xff]
  %v227 = vld [vmem:[%s1 + $0x598] sm:$0xff]
  %v228 = vld [vmem:[%s1 + $0x5a0] sm:$0xff]
  %v229 = vld [vmem:[%s1 + $0x5a8] sm:$0xff]
  %v230 = vld [vmem:[%s1 + $0x5b0] sm:$0xff]
  %v231 = vld [vmem:[%s1 + $0x5b8] sm:$0xff]
  %v232 = vld [vmem:[%s1 + $0x5c0] sm:$0xff]
  %v233 = vld [vmem:[%s1 + $0x5c8] sm:$0xff]
  %v234 = vld [vmem:[%s1 + $0x5d0] sm:$0xff]
  %v235 = vld [vmem:[%s1 + $0x5d8] sm:$0xff]
  %v236 = vld [vmem:[%s1 + $0x5e0] sm:$0xff]
  %v237 = vld [vmem:[%s1 + $0x5e8] sm:$0xff]
  %v238 = vld [vmem:[%s1 + $0x5f0] sm:$0xff]
  %v239 = vld [vmem:[%s1 + $0x5f8] sm:$0xff]
  %v240 = vld [vmem:[%s1 + $0x600] sm:$0xff]
  %v241 = vld [vmem:[%s1 + $0x608] sm:$0xff]
  %v242 = vld [vmem:[%s1 + $0x610] sm:$0xff]
  %v243 = vld [vmem:[%s1 + $0x618] sm:$0xff]
  %v244 = vld [vmem:[%s1 + $0x620] sm:$0xff]
  %v245 = vld [vmem:[%s1 + $0x628] sm:$0xff]
  %v246 = vld [vmem:[%s1 + $0x630] sm:$0xff]
  %v247 = vld [vmem:[%s1 + $0x638] sm:$0xff]
  %v248 = vld [vmem:[%s1 + $0x640] sm:$0xff]
  %v249 = vld [vmem:[%s1 + $0x648] sm:$0xff]
  %v250 = vld [vmem:[%s1 + $0x650] sm:$0xff]
  %v251 = vld [vmem:[%s1 + $0x658] sm:$0xff]
  %v252 = vld [vmem:[%s1 + $0x660] sm:$0xff]
  %v253 = vld [vmem:[%s1 + $0x668] sm:$0xff]
  %v254 = vld [vmem:[%s1 + $0x670] sm:$0xff]
  %v255 = vld [vmem:[%s1 + $0x678] sm:$0xff]
  %v256 = vld [vmem:[%s1 + $0x680] sm:$0xff]
  %v257 = vld [vmem:[%s1 + $0x688] sm:$0xff]
  %v258 = vld [vmem:[%s1 + $0x690] sm:$0xff]
  %v259 = vld [vmem:[%s1 + $0x698] sm:$0xff]
  %v260 = vld [vmem:[%s1 + $0x6a0] sm:$0xff]
  %v261 = vld [vmem:[%s1 + $0x6a8] sm:$0xff]
  %v262 = vld [vmem:[%s1 + $0x6b0] sm:$0xff]
  %v263 = vld [vmem:[%s1 + $0x6b8] sm:$0xff]
  %v264 = vld [vmem:[%s1 + $0x6c0] sm:$0xff]
  %v265 = vld [vmem:[%s1 + $0x6c8] sm:$0xff]
  %v266 = vld [vmem:[%s1 + $0x6d0] sm:$0xff]
  %v267 = vld [vmem:[%s1 + $0x6d8] sm:$0xff]
  %v268 = vld [vmem:[%s1 + $0x6e0] sm:$0xff]
  %v269 = vld [vmem:[%s1 + $0x6e8] sm:$0xff]
  %v270 = vld [vmem:[%s1 + $0x6f0] sm:$0xff]
  %v271 = vld [vmem:[%s1 + $0x6f8] sm:$0xff]
  %v272 = vld [vmem:[%s1 + $0x700] sm:$0xff]
  %v273 = vld [vmem:[%s1 + $0x708] sm:$0xff]
  %v274 = vld [vmem:[%s1 + $0x710] sm:$0xff]
  %v275 = vld [vmem:[%s1 + $0x718] sm:$0xff]
  %v276 = vld [vmem:[%s1 + $0x720] sm:$0xff]
  %v277 = vld [vmem:[%s1 + $0x728] sm:$0xff]
  %v278 = vld [vmem:[%s1 + $0x730] sm:$0xff]
  %v279 = vld [vmem:[%s1 + $0x738] sm:$0xff]
  %v280 = vld [vmem:[%s1 + $0x740] sm:$0xff]
  %v281 = vld [vmem:[%s1 + $0x748] sm:$0xff]
  %v282 = vld [vmem:[%s1 + $0x750] sm:$0xff]
  %v283 = vld [vmem:[%s1 + $0x758] sm:$0xff]
  %v284 = vld [vmem:[%s1 + $0x760] sm:$0xff]
  %v285 = vld [vmem:[%s1 + $0x768] sm:$0xff]
  %v286 = vld [vmem:[%s1 + $0x770] sm:$0xff]
  %v287 = vld [vmem:[%s1 + $0x778] sm:$0xff]
  %v288 = vld [vmem:[%s1 + $0x780] sm:$0xff]
  %v289 = vld [vmem:[%s1 + $0x788] sm:$0xff]
  %v290 = vld [vmem:[%s1 + $0x790] sm:$0xff]
  %v291 = vld [vmem:[%s1 + $0x798] sm:$0xff]
  %v292 = vld [vmem:[%s1 + $0x7a0] sm:$0xff]
  %v293 = vld [vmem:[%s1 + $0x7a8] sm:$0xff]
  %v294 = vld [vmem:[%s1 + $0x7b0] sm:$0xff]
  %v295 = vld [vmem:[%s1 + $0x7b8] sm:$0xff]
  %v296 = vld [vmem:[%s1 + $0x7c0] sm:$0xff]
  %v297 = vld [vmem:[%s1 + $0x7c8] sm:$0xff]
  %v298 = vld [vmem:[%s1 + $0x7d0] sm:$0xff]
  %v299 = vld [vmem:[%s1 + $0x7d8] sm:$0xff]
  %v300 = vld [vmem:[%s1 + $0x7e0] sm:$0xff]
  %v301 = vld [vmem:[%s1 + $0x7e8] sm:$0xff]
  %v302 = vld [vmem:[%s1 + $0x7f0] sm:$0xff]
  %v303 = vld [vmem:[%s1 + $0x7f8] sm:$0xff]
  %v304 = vld [vmem:[%s2] sm:$0x3]
  %v306 = vlaneseq
  %v307 = vshrl.u32 %v306, 7
  %v308 = vsub.s32 0, %v307
  %v309 = vrot.slane %v304, %v308
  %v310 = vlaneseq
  %v311 = vshrl.u32 %v310, 7
  %v312 = vsub.s32 1, %v311
  %v313 = vrot.slane %v304, %v312
  %v348 = vunpack.c.l.b16 %v16
  %v349 = vunpack.c.h.b16 %v16
  %v350 = vunpack.c.l.b16 %v17
  %v351 = vunpack.c.h.b16 %v17
  %v352 = vunpack.c.l.b16 %v18
  %v353 = vunpack.c.h.b16 %v18
  %v354 = vunpack.c.l.b16 %v19
  %v355 = vunpack.c.h.b16 %v19
  %v356 = vunpack.c.l.b16 %v20
  %v357 = vunpack.c.h.b16 %v20
  %v358 = vunpack.c.l.b16 %v21
  %v359 = vunpack.c.h.b16 %v21
  %v360 = vunpack.c.l.b16 %v22
  %v361 = vunpack.c.h.b16 %v22
  %v362 = vunpack.c.l.b16 %v23
  %v363 = vunpack.c.h.b16 %v23
  %v364 = vunpack.c.l.b16 %v24
  %v365 = vunpack.c.h.b16 %v24
  %v366 = vunpack.c.l.b16 %v25
  %v367 = vunpack.c.h.b16 %v25
  %v368 = vunpack.c.l.b16 %v26
  %v369 = vunpack.c.h.b16 %v26
  %v370 = vunpack.c.l.b16 %v27
  %v371 = vunpack.c.h.b16 %v27
  %v372 = vunpack.c.l.b16 %v28
  %v373 = vunpack.c.h.b16 %v28
  %v374 = vunpack.c.l.b16 %v29
  %v375 = vunpack.c.h.b16 %v29
  %v376 = vunpack.c.l.b16 %v30
  %v377 = vunpack.c.h.b16 %v30
  %v378 = vunpack.c.l.b16 %v31
  %v379 = vunpack.c.h.b16 %v31
  %v380 = vunpack.c.l.b16 %v32
  %v381 = vunpack.c.h.b16 %v32
  %v382 = vunpack.c.l.b16 %v33
  %v383 = vunpack.c.h.b16 %v33
  %v384 = vunpack.c.l.b16 %v34
  %v385 = vunpack.c.h.b16 %v34
  %v386 = vunpack.c.l.b16 %v35
  %v387 = vunpack.c.h.b16 %v35
  %v388 = vunpack.c.l.b16 %v36
  %v389 = vunpack.c.h.b16 %v36
  %v390 = vunpack.c.l.b16 %v37
  %v391 = vunpack.c.h.b16 %v37
  %v392 = vunpack.c.l.b16 %v38
  %v393 = vunpack.c.h.b16 %v38
  %v394 = vunpack.c.l.b16 %v39
  %v395 = vunpack.c.h.b16 %v39
  %v396 = vunpack.c.l.b16 %v40
  %v397 = vunpack.c.h.b16 %v40
  %v398 = vunpack.c.l.b16 %v41
  %v399 = vunpack.c.h.b16 %v41
  %v400 = vunpack.c.l.b16 %v42
  %v401 = vunpack.c.h.b16 %v42
  %v402 = vunpack.c.l.b16 %v43
  %v403 = vunpack.c.h.b16 %v43
  %v404 = vunpack.c.l.b16 %v44
  %v405 = vunpack.c.h.b16 %v44
  %v406 = vunpack.c.l.b16 %v45
  %v407 = vunpack.c.h.b16 %v45
  %v408 = vunpack.c.l.b16 %v46
  %v409 = vunpack.c.h.b16 %v46
  %v410 = vunpack.c.l.b16 %v47
  %v411 = vunpack.c.h.b16 %v47
  %v412 = vpack.c.b16 %v364, %v348
  %v413 = vpack.c.b16 %v365, %v349
  %v414 = vpack.c.b16 %v366, %v350
  %v415 = vpack.c.b16 %v367, %v351
  %v416 = vpack.c.b16 %v368, %v352
  %v417 = vpack.c.b16 %v369, %v353
  %v418 = vpack.c.b16 %v370, %v354
  %v419 = vpack.c.b16 %v371, %v355
  %v420 = vpack.c.b16 %v372, %v356
  %v421 = vpack.c.b16 %v373, %v357
  %v422 = vpack.c.b16 %v374, %v358
  %v423 = vpack.c.b16 %v375, %v359
  %v424 = vpack.c.b16 %v376, %v360
  %v425 = vpack.c.b16 %v377, %v361
  %v426 = vpack.c.b16 %v378, %v362
  %v427 = vpack.c.b16 %v379, %v363
  %v428 = vpack.c.b16 %v396, %v380
  %v429 = vpack.c.b16 %v397, %v381
  %v430 = vpack.c.b16 %v398, %v382
  %v431 = vpack.c.b16 %v399, %v383
  %v432 = vpack.c.b16 %v400, %v384
  %v433 = vpack.c.b16 %v401, %v385
  %v434 = vpack.c.b16 %v402, %v386
  %v435 = vpack.c.b16 %v403, %v387
  %v436 = vpack.c.b16 %v404, %v388
  %v437 = vpack.c.b16 %v405, %v389
  %v438 = vpack.c.b16 %v406, %v390
  %v439 = vpack.c.b16 %v407, %v391
  %v440 = vpack.c.b16 %v408, %v392
  %v441 = vpack.c.b16 %v409, %v393
  %v442 = vpack.c.b16 %v410, %v394
  %v443 = vpack.c.b16 %v411, %v395
  %v732 = vunpack.c.l.b16 %v48
  %v733 = vunpack.c.h.b16 %v48
  %v734 = vunpack.c.l.b16 %v49
  %v735 = vunpack.c.h.b16 %v49
  %v736 = vunpack.c.l.b16 %v50
  %v737 = vunpack.c.h.b16 %v50
  %v738 = vunpack.c.l.b16 %v51
  %v739 = vunpack.c.h.b16 %v51
  %v740 = vunpack.c.l.b16 %v52
  %v741 = vunpack.c.h.b16 %v52
  %v742 = vunpack.c.l.b16 %v53
  %v743 = vunpack.c.h.b16 %v53
  %v744 = vunpack.c.l.b16 %v54
  %v745 = vunpack.c.h.b16 %v54
  %v746 = vunpack.c.l.b16 %v55
  %v747 = vunpack.c.h.b16 %v55
  %v748 = vunpack.c.l.b16 %v56
  %v749 = vunpack.c.h.b16 %v56
  %v750 = vunpack.c.l.b16 %v57
  %v751 = vunpack.c.h.b16 %v57
  %v752 = vunpack.c.l.b16 %v58
  %v753 = vunpack.c.h.b16 %v58
  %v754 = vunpack.c.l.b16 %v59
  %v755 = vunpack.c.h.b16 %v59
  %v756 = vunpack.c.l.b16 %v60
  %v757 = vunpack.c.h.b16 %v60
  %v758 = vunpack.c.l.b16 %v61
  %v759 = vunpack.c.h.b16 %v61
  %v760 = vunpack.c.l.b16 %v62
  %v761 = vunpack.c.h.b16 %v62
  %v762 = vunpack.c.l.b16 %v63
  %v763 = vunpack.c.h.b16 %v63
  %v764 = vunpack.c.l.b16 %v64
  %v765 = vunpack.c.h.b16 %v64
  %v766 = vunpack.c.l.b16 %v65
  %v767 = vunpack.c.h.b16 %v65
  %v768 = vunpack.c.l.b16 %v66
  %v769 = vunpack.c.h.b16 %v66
  %v770 = vunpack.c.l.b16 %v67
  %v771 = vunpack.c.h.b16 %v67
  %v772 = vunpack.c.l.b16 %v68
  %v773 = vunpack.c.h.b16 %v68
  %v774 = vunpack.c.l.b16 %v69
  %v775 = vunpack.c.h.b16 %v69
  %v776 = vunpack.c.l.b16 %v70
  %v777 = vunpack.c.h.b16 %v70
  %v778 = vunpack.c.l.b16 %v71
  %v779 = vunpack.c.h.b16 %v71
  %v780 = vunpack.c.l.b16 %v72
  %v781 = vunpack.c.h.b16 %v72
  %v782 = vunpack.c.l.b16 %v73
  %v783 = vunpack.c.h.b16 %v73
  %v784 = vunpack.c.l.b16 %v74
  %v785 = vunpack.c.h.b16 %v74
  %v786 = vunpack.c.l.b16 %v75
  %v787 = vunpack.c.h.b16 %v75
  %v788 = vunpack.c.l.b16 %v76
  %v789 = vunpack.c.h.b16 %v76
  %v790 = vunpack.c.l.b16 %v77
  %v791 = vunpack.c.h.b16 %v77
  %v792 = vunpack.c.l.b16 %v78
  %v793 = vunpack.c.h.b16 %v78
  %v794 = vunpack.c.l.b16 %v79
  %v795 = vunpack.c.h.b16 %v79
  %v796 = vunpack.c.l.b16 %v80
  %v797 = vunpack.c.h.b16 %v80
  %v798 = vunpack.c.l.b16 %v81
  %v799 = vunpack.c.h.b16 %v81
  %v800 = vunpack.c.l.b16 %v82
  %v801 = vunpack.c.h.b16 %v82
  %v802 = vunpack.c.l.b16 %v83
  %v803 = vunpack.c.h.b16 %v83
  %v804 = vunpack.c.l.b16 %v84
  %v805 = vunpack.c.h.b16 %v84
  %v806 = vunpack.c.l.b16 %v85
  %v807 = vunpack.c.h.b16 %v85
  %v808 = vunpack.c.l.b16 %v86
  %v809 = vunpack.c.h.b16 %v86
  %v810 = vunpack.c.l.b16 %v87
  %v811 = vunpack.c.h.b16 %v87
  %v812 = vunpack.c.l.b16 %v88
  %v813 = vunpack.c.h.b16 %v88
  %v814 = vunpack.c.l.b16 %v89
  %v815 = vunpack.c.h.b16 %v89
  %v816 = vunpack.c.l.b16 %v90
  %v817 = vunpack.c.h.b16 %v90
  %v818 = vunpack.c.l.b16 %v91
  %v819 = vunpack.c.h.b16 %v91
  %v820 = vunpack.c.l.b16 %v92
  %v821 = vunpack.c.h.b16 %v92
  %v822 = vunpack.c.l.b16 %v93
  %v823 = vunpack.c.h.b16 %v93
  %v824 = vunpack.c.l.b16 %v94
  %v825 = vunpack.c.h.b16 %v94
  %v826 = vunpack.c.l.b16 %v95
  %v827 = vunpack.c.h.b16 %v95
  %v828 = vunpack.c.l.b16 %v96
  %v829 = vunpack.c.h.b16 %v96
  %v830 = vunpack.c.l.b16 %v97
  %v831 = vunpack.c.h.b16 %v97
  %v832 = vunpack.c.l.b16 %v98
  %v833 = vunpack.c.h.b16 %v98
  %v834 = vunpack.c.l.b16 %v99
  %v835 = vunpack.c.h.b16 %v99
  %v836 = vunpack.c.l.b16 %v100
  %v837 = vunpack.c.h.b16 %v100
  %v838 = vunpack.c.l.b16 %v101
  %v839 = vunpack.c.h.b16 %v101
  %v840 = vunpack.c.l.b16 %v102
  %v841 = vunpack.c.h.b16 %v102
  %v842 = vunpack.c.l.b16 %v103
  %v843 = vunpack.c.h.b16 %v103
  %v844 = vunpack.c.l.b16 %v104
  %v845 = vunpack.c.h.b16 %v104
  %v846 = vunpack.c.l.b16 %v105
  %v847 = vunpack.c.h.b16 %v105
  %v848 = vunpack.c.l.b16 %v106
  %v849 = vunpack.c.h.b16 %v106
  %v850 = vunpack.c.l.b16 %v107
  %v851 = vunpack.c.h.b16 %v107
  %v852 = vunpack.c.l.b16 %v108
  %v853 = vunpack.c.h.b16 %v108
  %v854 = vunpack.c.l.b16 %v109
  %v855 = vunpack.c.h.b16 %v109
  %v856 = vunpack.c.l.b16 %v110
  %v857 = vunpack.c.h.b16 %v110
  %v858 = vunpack.c.l.b16 %v111
  %v859 = vunpack.c.h.b16 %v111
  %v860 = vunpack.c.l.b16 %v112
  %v861 = vunpack.c.h.b16 %v112
  %v862 = vunpack.c.l.b16 %v113
  %v863 = vunpack.c.h.b16 %v113
  %v864 = vunpack.c.l.b16 %v114
  %v865 = vunpack.c.h.b16 %v114
  %v866 = vunpack.c.l.b16 %v115
  %v867 = vunpack.c.h.b16 %v115
  %v868 = vunpack.c.l.b16 %v116
  %v869 = vunpack.c.h.b16 %v116
  %v870 = vunpack.c.l.b16 %v117
  %v871 = vunpack.c.h.b16 %v117
  %v872 = vunpack.c.l.b16 %v118
  %v873 = vunpack.c.h.b16 %v118
  %v874 = vunpack.c.l.b16 %v119
  %v875 = vunpack.c.h.b16 %v119
  %v876 = vunpack.c.l.b16 %v120
  %v877 = vunpack.c.h.b16 %v120
  %v878 = vunpack.c.l.b16 %v121
  %v879 = vunpack.c.h.b16 %v121
  %v880 = vunpack.c.l.b16 %v122
  %v881 = vunpack.c.h.b16 %v122
  %v882 = vunpack.c.l.b16 %v123
  %v883 = vunpack.c.h.b16 %v123
  %v884 = vunpack.c.l.b16 %v124
  %v885 = vunpack.c.h.b16 %v124
  %v886 = vunpack.c.l.b16 %v125
  %v887 = vunpack.c.h.b16 %v125
  %v888 = vunpack.c.l.b16 %v126
  %v889 = vunpack.c.h.b16 %v126
  %v890 = vunpack.c.l.b16 %v127
  %v891 = vunpack.c.h.b16 %v127
  %v892 = vunpack.c.l.b16 %v128
  %v893 = vunpack.c.h.b16 %v128
  %v894 = vunpack.c.l.b16 %v129
  %v895 = vunpack.c.h.b16 %v129
  %v896 = vunpack.c.l.b16 %v130
  %v897 = vunpack.c.h.b16 %v130
  %v898 = vunpack.c.l.b16 %v131
  %v899 = vunpack.c.h.b16 %v131
  %v900 = vunpack.c.l.b16 %v132
  %v901 = vunpack.c.h.b16 %v132
  %v902 = vunpack.c.l.b16 %v133
  %v903 = vunpack.c.h.b16 %v133
  %v904 = vunpack.c.l.b16 %v134
  %v905 = vunpack.c.h.b16 %v134
  %v906 = vunpack.c.l.b16 %v135
  %v907 = vunpack.c.h.b16 %v135
  %v908 = vunpack.c.l.b16 %v136
  %v909 = vunpack.c.h.b16 %v136
  %v910 = vunpack.c.l.b16 %v137
  %v911 = vunpack.c.h.b16 %v137
  %v912 = vunpack.c.l.b16 %v138
  %v913 = vunpack.c.h.b16 %v138
  %v914 = vunpack.c.l.b16 %v139
  %v915 = vunpack.c.h.b16 %v139
  %v916 = vunpack.c.l.b16 %v140
  %v917 = vunpack.c.h.b16 %v140
  %v918 = vunpack.c.l.b16 %v141
  %v919 = vunpack.c.h.b16 %v141
  %v920 = vunpack.c.l.b16 %v142
  %v921 = vunpack.c.h.b16 %v142
  %v922 = vunpack.c.l.b16 %v143
  %v923 = vunpack.c.h.b16 %v143
  %v924 = vunpack.c.l.b16 %v144
  %v925 = vunpack.c.h.b16 %v144
  %v926 = vunpack.c.l.b16 %v145
  %v927 = vunpack.c.h.b16 %v145
  %v928 = vunpack.c.l.b16 %v146
  %v929 = vunpack.c.h.b16 %v146
  %v930 = vunpack.c.l.b16 %v147
  %v931 = vunpack.c.h.b16 %v147
  %v932 = vunpack.c.l.b16 %v148
  %v933 = vunpack.c.h.b16 %v148
  %v934 = vunpack.c.l.b16 %v149
  %v935 = vunpack.c.h.b16 %v149
  %v936 = vunpack.c.l.b16 %v150
  %v937 = vunpack.c.h.b16 %v150
  %v938 = vunpack.c.l.b16 %v151
  %v939 = vunpack.c.h.b16 %v151
  %v940 = vunpack.c.l.b16 %v152
  %v941 = vunpack.c.h.b16 %v152
  %v942 = vunpack.c.l.b16 %v153
  %v943 = vunpack.c.h.b16 %v153
  %v944 = vunpack.c.l.b16 %v154
  %v945 = vunpack.c.h.b16 %v154
  %v946 = vunpack.c.l.b16 %v155
  %v947 = vunpack.c.h.b16 %v155
  %v948 = vunpack.c.l.b16 %v156
  %v949 = vunpack.c.h.b16 %v156
  %v950 = vunpack.c.l.b16 %v157
  %v951 = vunpack.c.h.b16 %v157
  %v952 = vunpack.c.l.b16 %v158
  %v953 = vunpack.c.h.b16 %v158
  %v954 = vunpack.c.l.b16 %v159
  %v955 = vunpack.c.h.b16 %v159
  %v956 = vunpack.c.l.b16 %v160
  %v957 = vunpack.c.h.b16 %v160
  %v958 = vunpack.c.l.b16 %v161
  %v959 = vunpack.c.h.b16 %v161
  %v960 = vunpack.c.l.b16 %v162
  %v961 = vunpack.c.h.b16 %v162
  %v962 = vunpack.c.l.b16 %v163
  %v963 = vunpack.c.h.b16 %v163
  %v964 = vunpack.c.l.b16 %v164
  %v965 = vunpack.c.h.b16 %v164
  %v966 = vunpack.c.l.b16 %v165
  %v967 = vunpack.c.h.b16 %v165
  %v968 = vunpack.c.l.b16 %v166
  %v969 = vunpack.c.h.b16 %v166
  %v970 = vunpack.c.l.b16 %v167
  %v971 = vunpack.c.h.b16 %v167
  %v972 = vunpack.c.l.b16 %v168
  %v973 = vunpack.c.h.b16 %v168
  %v974 = vunpack.c.l.b16 %v169
  %v975 = vunpack.c.h.b16 %v169
  %v976 = vunpack.c.l.b16 %v170
  %v977 = vunpack.c.h.b16 %v170
  %v978 = vunpack.c.l.b16 %v171
  %v979 = vunpack.c.h.b16 %v171
  %v980 = vunpack.c.l.b16 %v172
  %v981 = vunpack.c.h.b16 %v172
  %v982 = vunpack.c.l.b16 %v173
  %v983 = vunpack.c.h.b16 %v173
  %v984 = vunpack.c.l.b16 %v174
  %v985 = vunpack.c.h.b16 %v174
  %v986 = vunpack.c.l.b16 %v175
  %v987 = vunpack.c.h.b16 %v175
  %v988 = vunpack.c.l.b16 %v176
  %v989 = vunpack.c.h.b16 %v176
  %v990 = vunpack.c.l.b16 %v177
  %v991 = vunpack.c.h.b16 %v177
  %v992 = vunpack.c.l.b16 %v178
  %v993 = vunpack.c.h.b16 %v178
  %v994 = vunpack.c.l.b16 %v179
  %v995 = vunpack.c.h.b16 %v179
  %v996 = vunpack.c.l.b16 %v180
  %v997 = vunpack.c.h.b16 %v180
  %v998 = vunpack.c.l.b16 %v181
  %v999 = vunpack.c.h.b16 %v181
  %v1000 = vunpack.c.l.b16 %v182
  %v1001 = vunpack.c.h.b16 %v182
  %v1002 = vunpack.c.l.b16 %v183
  %v1003 = vunpack.c.h.b16 %v183
  %v1004 = vunpack.c.l.b16 %v184
  %v1005 = vunpack.c.h.b16 %v184
  %v1006 = vunpack.c.l.b16 %v185
  %v1007 = vunpack.c.h.b16 %v185
  %v1008 = vunpack.c.l.b16 %v186
  %v1009 = vunpack.c.h.b16 %v186
  %v1010 = vunpack.c.l.b16 %v187
  %v1011 = vunpack.c.h.b16 %v187
  %v1012 = vunpack.c.l.b16 %v188
  %v1013 = vunpack.c.h.b16 %v188
  %v1014 = vunpack.c.l.b16 %v189
  %v1015 = vunpack.c.h.b16 %v189
  %v1016 = vunpack.c.l.b16 %v190
  %v1017 = vunpack.c.h.b16 %v190
  %v1018 = vunpack.c.l.b16 %v191
  %v1019 = vunpack.c.h.b16 %v191
  %v1020 = vunpack.c.l.b16 %v192
  %v1021 = vunpack.c.h.b16 %v192
  %v1022 = vunpack.c.l.b16 %v193
  %v1023 = vunpack.c.h.b16 %v193
  %v1024 = vunpack.c.l.b16 %v194
  %v1025 = vunpack.c.h.b16 %v194
  %v1026 = vunpack.c.l.b16 %v195
  %v1027 = vunpack.c.h.b16 %v195
  %v1028 = vunpack.c.l.b16 %v196
  %v1029 = vunpack.c.h.b16 %v196
  %v1030 = vunpack.c.l.b16 %v197
  %v1031 = vunpack.c.h.b16 %v197
  %v1032 = vunpack.c.l.b16 %v198
  %v1033 = vunpack.c.h.b16 %v198
  %v1034 = vunpack.c.l.b16 %v199
  %v1035 = vunpack.c.h.b16 %v199
  %v1036 = vunpack.c.l.b16 %v200
  %v1037 = vunpack.c.h.b16 %v200
  %v1038 = vunpack.c.l.b16 %v201
  %v1039 = vunpack.c.h.b16 %v201
  %v1040 = vunpack.c.l.b16 %v202
  %v1041 = vunpack.c.h.b16 %v202
  %v1042 = vunpack.c.l.b16 %v203
  %v1043 = vunpack.c.h.b16 %v203
  %v1044 = vunpack.c.l.b16 %v204
  %v1045 = vunpack.c.h.b16 %v204
  %v1046 = vunpack.c.l.b16 %v205
  %v1047 = vunpack.c.h.b16 %v205
  %v1048 = vunpack.c.l.b16 %v206
  %v1049 = vunpack.c.h.b16 %v206
  %v1050 = vunpack.c.l.b16 %v207
  %v1051 = vunpack.c.h.b16 %v207
  %v1052 = vunpack.c.l.b16 %v208
  %v1053 = vunpack.c.h.b16 %v208
  %v1054 = vunpack.c.l.b16 %v209
  %v1055 = vunpack.c.h.b16 %v209
  %v1056 = vunpack.c.l.b16 %v210
  %v1057 = vunpack.c.h.b16 %v210
  %v1058 = vunpack.c.l.b16 %v211
  %v1059 = vunpack.c.h.b16 %v211
  %v1060 = vunpack.c.l.b16 %v212
  %v1061 = vunpack.c.h.b16 %v212
  %v1062 = vunpack.c.l.b16 %v213
  %v1063 = vunpack.c.h.b16 %v213
  %v1064 = vunpack.c.l.b16 %v214
  %v1065 = vunpack.c.h.b16 %v214
  %v1066 = vunpack.c.l.b16 %v215
  %v1067 = vunpack.c.h.b16 %v215
  %v1068 = vunpack.c.l.b16 %v216
  %v1069 = vunpack.c.h.b16 %v216
  %v1070 = vunpack.c.l.b16 %v217
  %v1071 = vunpack.c.h.b16 %v217
  %v1072 = vunpack.c.l.b16 %v218
  %v1073 = vunpack.c.h.b16 %v218
  %v1074 = vunpack.c.l.b16 %v219
  %v1075 = vunpack.c.h.b16 %v219
  %v1076 = vunpack.c.l.b16 %v220
  %v1077 = vunpack.c.h.b16 %v220
  %v1078 = vunpack.c.l.b16 %v221
  %v1079 = vunpack.c.h.b16 %v221
  %v1080 = vunpack.c.l.b16 %v222
  %v1081 = vunpack.c.h.b16 %v222
  %v1082 = vunpack.c.l.b16 %v223
  %v1083 = vunpack.c.h.b16 %v223
  %v1084 = vunpack.c.l.b16 %v224
  %v1085 = vunpack.c.h.b16 %v224
  %v1086 = vunpack.c.l.b16 %v225
  %v1087 = vunpack.c.h.b16 %v225
  %v1088 = vunpack.c.l.b16 %v226
  %v1089 = vunpack.c.h.b16 %v226
  %v1090 = vunpack.c.l.b16 %v227
  %v1091 = vunpack.c.h.b16 %v227
  %v1092 = vunpack.c.l.b16 %v228
  %v1093 = vunpack.c.h.b16 %v228
  %v1094 = vunpack.c.l.b16 %v229
  %v1095 = vunpack.c.h.b16 %v229
  %v1096 = vunpack.c.l.b16 %v230
  %v1097 = vunpack.c.h.b16 %v230
  %v1098 = vunpack.c.l.b16 %v231
  %v1099 = vunpack.c.h.b16 %v231
  %v1100 = vunpack.c.l.b16 %v232
  %v1101 = vunpack.c.h.b16 %v232
  %v1102 = vunpack.c.l.b16 %v233
  %v1103 = vunpack.c.h.b16 %v233
  %v1104 = vunpack.c.l.b16 %v234
  %v1105 = vunpack.c.h.b16 %v234
  %v1106 = vunpack.c.l.b16 %v235
  %v1107 = vunpack.c.h.b16 %v235
  %v1108 = vunpack.c.l.b16 %v236
  %v1109 = vunpack.c.h.b16 %v236
  %v1110 = vunpack.c.l.b16 %v237
  %v1111 = vunpack.c.h.b16 %v237
  %v1112 = vunpack.c.l.b16 %v238
  %v1113 = vunpack.c.h.b16 %v238
  %v1114 = vunpack.c.l.b16 %v239
  %v1115 = vunpack.c.h.b16 %v239
  %v1116 = vunpack.c.l.b16 %v240
  %v1117 = vunpack.c.h.b16 %v240
  %v1118 = vunpack.c.l.b16 %v241
  %v1119 = vunpack.c.h.b16 %v241
  %v1120 = vunpack.c.l.b16 %v242
  %v1121 = vunpack.c.h.b16 %v242
  %v1122 = vunpack.c.l.b16 %v243
  %v1123 = vunpack.c.h.b16 %v243
  %v1124 = vunpack.c.l.b16 %v244
  %v1125 = vunpack.c.h.b16 %v244
  %v1126 = vunpack.c.l.b16 %v245
  %v1127 = vunpack.c.h.b16 %v245
  %v1128 = vunpack.c.l.b16 %v246
  %v1129 = vunpack.c.h.b16 %v246
  %v1130 = vunpack.c.l.b16 %v247
  %v1131 = vunpack.c.h.b16 %v247
  %v1132 = vunpack.c.l.b16 %v248
  %v1133 = vunpack.c.h.b16 %v248
  %v1134 = vunpack.c.l.b16 %v249
  %v1135 = vunpack.c.h.b16 %v249
  %v1136 = vunpack.c.l.b16 %v250
  %v1137 = vunpack.c.h.b16 %v250
  %v1138 = vunpack.c.l.b16 %v251
  %v1139 = vunpack.c.h.b16 %v251
  %v1140 = vunpack.c.l.b16 %v252
  %v1141 = vunpack.c.h.b16 %v252
  %v1142 = vunpack.c.l.b16 %v253
  %v1143 = vunpack.c.h.b16 %v253
  %v1144 = vunpack.c.l.b16 %v254
  %v1145 = vunpack.c.h.b16 %v254
  %v1146 = vunpack.c.l.b16 %v255
  %v1147 = vunpack.c.h.b16 %v255
  %v1148 = vunpack.c.l.b16 %v256
  %v1149 = vunpack.c.h.b16 %v256
  %v1150 = vunpack.c.l.b16 %v257
  %v1151 = vunpack.c.h.b16 %v257
  %v1152 = vunpack.c.l.b16 %v258
  %v1153 = vunpack.c.h.b16 %v258
  %v1154 = vunpack.c.l.b16 %v259
  %v1155 = vunpack.c.h.b16 %v259
  %v1156 = vunpack.c.l.b16 %v260
  %v1157 = vunpack.c.h.b16 %v260
  %v1158 = vunpack.c.l.b16 %v261
  %v1159 = vunpack.c.h.b16 %v261
  %v1160 = vunpack.c.l.b16 %v262
  %v1161 = vunpack.c.h.b16 %v262
  %v1162 = vunpack.c.l.b16 %v263
  %v1163 = vunpack.c.h.b16 %v263
  %v1164 = vunpack.c.l.b16 %v264
  %v1165 = vunpack.c.h.b16 %v264
  %v1166 = vunpack.c.l.b16 %v265
  %v1167 = vunpack.c.h.b16 %v265
  %v1168 = vunpack.c.l.b16 %v266
  %v1169 = vunpack.c.h.b16 %v266
  %v1170 = vunpack.c.l.b16 %v267
  %v1171 = vunpack.c.h.b16 %v267
  %v1172 = vunpack.c.l.b16 %v268
  %v1173 = vunpack.c.h.b16 %v268
  %v1174 = vunpack.c.l.b16 %v269
  %v1175 = vunpack.c.h.b16 %v269
  %v1176 = vunpack.c.l.b16 %v270
  %v1177 = vunpack.c.h.b16 %v270
  %v1178 = vunpack.c.l.b16 %v271
  %v1179 = vunpack.c.h.b16 %v271
  %v1180 = vunpack.c.l.b16 %v272
  %v1181 = vunpack.c.h.b16 %v272
  %v1182 = vunpack.c.l.b16 %v273
  %v1183 = vunpack.c.h.b16 %v273
  %v1184 = vunpack.c.l.b16 %v274
  %v1185 = vunpack.c.h.b16 %v274
  %v1186 = vunpack.c.l.b16 %v275
  %v1187 = vunpack.c.h.b16 %v275
  %v1188 = vunpack.c.l.b16 %v276
  %v1189 = vunpack.c.h.b16 %v276
  %v1190 = vunpack.c.l.b16 %v277
  %v1191 = vunpack.c.h.b16 %v277
  %v1192 = vunpack.c.l.b16 %v278
  %v1193 = vunpack.c.h.b16 %v278
  %v1194 = vunpack.c.l.b16 %v279
  %v1195 = vunpack.c.h.b16 %v279
  %v1196 = vunpack.c.l.b16 %v280
  %v1197 = vunpack.c.h.b16 %v280
  %v1198 = vunpack.c.l.b16 %v281
  %v1199 = vunpack.c.h.b16 %v281
  %v1200 = vunpack.c.l.b16 %v282
  %v1201 = vunpack.c.h.b16 %v282
  %v1202 = vunpack.c.l.b16 %v283
  %v1203 = vunpack.c.h.b16 %v283
  %v1204 = vunpack.c.l.b16 %v284
  %v1205 = vunpack.c.h.b16 %v284
  %v1206 = vunpack.c.l.b16 %v285
  %v1207 = vunpack.c.h.b16 %v285
  %v1208 = vunpack.c.l.b16 %v286
  %v1209 = vunpack.c.h.b16 %v286
  %v1210 = vunpack.c.l.b16 %v287
  %v1211 = vunpack.c.h.b16 %v287
  %v1212 = vunpack.c.l.b16 %v288
  %v1213 = vunpack.c.h.b16 %v288
  %v1214 = vunpack.c.l.b16 %v289
  %v1215 = vunpack.c.h.b16 %v289
  %v1216 = vunpack.c.l.b16 %v290
  %v1217 = vunpack.c.h.b16 %v290
  %v1218 = vunpack.c.l.b16 %v291
  %v1219 = vunpack.c.h.b16 %v291
  %v1220 = vunpack.c.l.b16 %v292
  %v1221 = vunpack.c.h.b16 %v292
  %v1222 = vunpack.c.l.b16 %v293
  %v1223 = vunpack.c.h.b16 %v293
  %v1224 = vunpack.c.l.b16 %v294
  %v1225 = vunpack.c.h.b16 %v294
  %v1226 = vunpack.c.l.b16 %v295
  %v1227 = vunpack.c.h.b16 %v295
  %v1228 = vunpack.c.l.b16 %v296
  %v1229 = vunpack.c.h.b16 %v296
  %v1230 = vunpack.c.l.b16 %v297
  %v1231 = vunpack.c.h.b16 %v297
  %v1232 = vunpack.c.l.b16 %v298
  %v1233 = vunpack.c.h.b16 %v298
  %v1234 = vunpack.c.l.b16 %v299
  %v1235 = vunpack.c.h.b16 %v299
  %v1236 = vunpack.c.l.b16 %v300
  %v1237 = vunpack.c.h.b16 %v300
  %v1238 = vunpack.c.l.b16 %v301
  %v1239 = vunpack.c.h.b16 %v301
  %v1240 = vunpack.c.l.b16 %v302
  %v1241 = vunpack.c.h.b16 %v302
  %v1242 = vunpack.c.l.b16 %v303
  %v1243 = vunpack.c.h.b16 %v303
  %v1244 = vpack.c.b16 %v734, %v732
  %v1245 = vpack.c.b16 %v735, %v733
  %v1246 = vpack.c.b16 %v738, %v736
  %v1247 = vpack.c.b16 %v739, %v737
  %v1248 = vpack.c.b16 %v742, %v740
  %v1249 = vpack.c.b16 %v743, %v741
  %v1250 = vpack.c.b16 %v746, %v744
  %v1251 = vpack.c.b16 %v747, %v745
  %v1252 = vpack.c.b16 %v750, %v748
  %v1253 = vpack.c.b16 %v751, %v749
  %v1254 = vpack.c.b16 %v754, %v752
  %v1255 = vpack.c.b16 %v755, %v753
  %v1256 = vpack.c.b16 %v758, %v756
  %v1257 = vpack.c.b16 %v759, %v757
  %v1258 = vpack.c.b16 %v762, %v760
  %v1259 = vpack.c.b16 %v763, %v761
  %v1260 = vpack.c.b16 %v766, %v764
  %v1261 = vpack.c.b16 %v767, %v765
  %v1262 = vpack.c.b16 %v770, %v768
  %v1263 = vpack.c.b16 %v771, %v769
  %v1264 = vpack.c.b16 %v774, %v772
  %v1265 = vpack.c.b16 %v775, %v773
  %v1266 = vpack.c.b16 %v778, %v776
  %v1267 = vpack.c.b16 %v779, %v777
  %v1268 = vpack.c.b16 %v782, %v780
  %v1269 = vpack.c.b16 %v783, %v781
  %v1270 = vpack.c.b16 %v786, %v784
  %v1271 = vpack.c.b16 %v787, %v785
  %v1272 = vpack.c.b16 %v790, %v788
  %v1273 = vpack.c.b16 %v791, %v789
  %v1274 = vpack.c.b16 %v794, %v792
  %v1275 = vpack.c.b16 %v795, %v793
  %v1276 = vpack.c.b16 %v798, %v796
  %v1277 = vpack.c.b16 %v799, %v797
  %v1278 = vpack.c.b16 %v802, %v800
  %v1279 = vpack.c.b16 %v803, %v801
  %v1280 = vpack.c.b16 %v806, %v804
  %v1281 = vpack.c.b16 %v807, %v805
  %v1282 = vpack.c.b16 %v810, %v808
  %v1283 = vpack.c.b16 %v811, %v809
  %v1284 = vpack.c.b16 %v814, %v812
  %v1285 = vpack.c.b16 %v815, %v813
  %v1286 = vpack.c.b16 %v818, %v816
  %v1287 = vpack.c.b16 %v819, %v817
  %v1288 = vpack.c.b16 %v822, %v820
  %v1289 = vpack.c.b16 %v823, %v821
  %v1290 = vpack.c.b16 %v826, %v824
  %v1291 = vpack.c.b16 %v827, %v825
  %v1292 = vpack.c.b16 %v830, %v828
  %v1293 = vpack.c.b16 %v831, %v829
  %v1294 = vpack.c.b16 %v834, %v832
  %v1295 = vpack.c.b16 %v835, %v833
  %v1296 = vpack.c.b16 %v838, %v836
  %v1297 = vpack.c.b16 %v839, %v837
  %v1298 = vpack.c.b16 %v842, %v840
  %v1299 = vpack.c.b16 %v843, %v841
  %v1300 = vpack.c.b16 %v846, %v844
  %v1301 = vpack.c.b16 %v847, %v845
  %v1302 = vpack.c.b16 %v850, %v848
  %v1303 = vpack.c.b16 %v851, %v849
  %v1304 = vpack.c.b16 %v854, %v852
  %v1305 = vpack.c.b16 %v855, %v853
  %v1306 = vpack.c.b16 %v858, %v856
  %v1307 = vpack.c.b16 %v859, %v857
  %v1308 = vpack.c.b16 %v862, %v860
  %v1309 = vpack.c.b16 %v863, %v861
  %v1310 = vpack.c.b16 %v866, %v864
  %v1311 = vpack.c.b16 %v867, %v865
  %v1312 = vpack.c.b16 %v870, %v868
  %v1313 = vpack.c.b16 %v871, %v869
  %v1314 = vpack.c.b16 %v874, %v872
  %v1315 = vpack.c.b16 %v875, %v873
  %v1316 = vpack.c.b16 %v878, %v876
  %v1317 = vpack.c.b16 %v879, %v877
  %v1318 = vpack.c.b16 %v882, %v880
  %v1319 = vpack.c.b16 %v883, %v881
  %v1320 = vpack.c.b16 %v886, %v884
  %v1321 = vpack.c.b16 %v887, %v885
  %v1322 = vpack.c.b16 %v890, %v888
  %v1323 = vpack.c.b16 %v891, %v889
  %v1324 = vpack.c.b16 %v894, %v892
  %v1325 = vpack.c.b16 %v895, %v893
  %v1326 = vpack.c.b16 %v898, %v896
  %v1327 = vpack.c.b16 %v899, %v897
  %v1328 = vpack.c.b16 %v902, %v900
  %v1329 = vpack.c.b16 %v903, %v901
  %v1330 = vpack.c.b16 %v906, %v904
  %v1331 = vpack.c.b16 %v907, %v905
  %v1332 = vpack.c.b16 %v910, %v908
  %v1333 = vpack.c.b16 %v911, %v909
  %v1334 = vpack.c.b16 %v914, %v912
  %v1335 = vpack.c.b16 %v915, %v913
  %v1336 = vpack.c.b16 %v918, %v916
  %v1337 = vpack.c.b16 %v919, %v917
  %v1338 = vpack.c.b16 %v922, %v920
  %v1339 = vpack.c.b16 %v923, %v921
  %v1340 = vpack.c.b16 %v926, %v924
  %v1341 = vpack.c.b16 %v927, %v925
  %v1342 = vpack.c.b16 %v930, %v928
  %v1343 = vpack.c.b16 %v931, %v929
  %v1344 = vpack.c.b16 %v934, %v932
  %v1345 = vpack.c.b16 %v935, %v933
  %v1346 = vpack.c.b16 %v938, %v936
  %v1347 = vpack.c.b16 %v939, %v937
  %v1348 = vpack.c.b16 %v942, %v940
  %v1349 = vpack.c.b16 %v943, %v941
  %v1350 = vpack.c.b16 %v946, %v944
  %v1351 = vpack.c.b16 %v947, %v945
  %v1352 = vpack.c.b16 %v950, %v948
  %v1353 = vpack.c.b16 %v951, %v949
  %v1354 = vpack.c.b16 %v954, %v952
  %v1355 = vpack.c.b16 %v955, %v953
  %v1356 = vpack.c.b16 %v958, %v956
  %v1357 = vpack.c.b16 %v959, %v957
  %v1358 = vpack.c.b16 %v962, %v960
  %v1359 = vpack.c.b16 %v963, %v961
  %v1360 = vpack.c.b16 %v966, %v964
  %v1361 = vpack.c.b16 %v967, %v965
  %v1362 = vpack.c.b16 %v970, %v968
  %v1363 = vpack.c.b16 %v971, %v969
  %v1364 = vpack.c.b16 %v974, %v972
  %v1365 = vpack.c.b16 %v975, %v973
  %v1366 = vpack.c.b16 %v978, %v976
  %v1367 = vpack.c.b16 %v979, %v977
  %v1368 = vpack.c.b16 %v982, %v980
  %v1369 = vpack.c.b16 %v983, %v981
  %v1370 = vpack.c.b16 %v986, %v984
  %v1371 = vpack.c.b16 %v987, %v985
  %v1372 = vpack.c.b16 %v990, %v988
  %v1373 = vpack.c.b16 %v991, %v989
  %v1374 = vpack.c.b16 %v994, %v992
  %v1375 = vpack.c.b16 %v995, %v993
  %v1376 = vpack.c.b16 %v998, %v996
  %v1377 = vpack.c.b16 %v999, %v997
  %v1378 = vpack.c.b16 %v1002, %v1000
  %v1379 = vpack.c.b16 %v1003, %v1001
  %v1380 = vpack.c.b16 %v1006, %v1004
  %v1381 = vpack.c.b16 %v1007, %v1005
  %v1382 = vpack.c.b16 %v1010, %v1008
  %v1383 = vpack.c.b16 %v1011, %v1009
  %v1384 = vpack.c.b16 %v1014, %v1012
  %v1385 = vpack.c.b16 %v1015, %v1013
  %v1386 = vpack.c.b16 %v1018, %v1016
  %v1387 = vpack.c.b16 %v1019, %v1017
  %v1388 = vpack.c.b16 %v1022, %v1020
  %v1389 = vpack.c.b16 %v1023, %v1021
  %v1390 = vpack.c.b16 %v1026, %v1024
  %v1391 = vpack.c.b16 %v1027, %v1025
  %v1392 = vpack.c.b16 %v1030, %v1028
  %v1393 = vpack.c.b16 %v1031, %v1029
  %v1394 = vpack.c.b16 %v1034, %v1032
  %v1395 = vpack.c.b16 %v1035, %v1033
  %v1396 = vpack.c.b16 %v1038, %v1036
  %v1397 = vpack.c.b16 %v1039, %v1037
  %v1398 = vpack.c.b16 %v1042, %v1040
  %v1399 = vpack.c.b16 %v1043, %v1041
  %v1400 = vpack.c.b16 %v1046, %v1044
  %v1401 = vpack.c.b16 %v1047, %v1045
  %v1402 = vpack.c.b16 %v1050, %v1048
  %v1403 = vpack.c.b16 %v1051, %v1049
  %v1404 = vpack.c.b16 %v1054, %v1052
  %v1405 = vpack.c.b16 %v1055, %v1053
  %v1406 = vpack.c.b16 %v1058, %v1056
  %v1407 = vpack.c.b16 %v1059, %v1057
  %v1408 = vpack.c.b16 %v1062, %v1060
  %v1409 = vpack.c.b16 %v1063, %v1061
  %v1410 = vpack.c.b16 %v1066, %v1064
  %v1411 = vpack.c.b16 %v1067, %v1065
  %v1412 = vpack.c.b16 %v1070, %v1068
  %v1413 = vpack.c.b16 %v1071, %v1069
  %v1414 = vpack.c.b16 %v1074, %v1072
  %v1415 = vpack.c.b16 %v1075, %v1073
  %v1416 = vpack.c.b16 %v1078, %v1076
  %v1417 = vpack.c.b16 %v1079, %v1077
  %v1418 = vpack.c.b16 %v1082, %v1080
  %v1419 = vpack.c.b16 %v1083, %v1081
  %v1420 = vpack.c.b16 %v1086, %v1084
  %v1421 = vpack.c.b16 %v1087, %v1085
  %v1422 = vpack.c.b16 %v1090, %v1088
  %v1423 = vpack.c.b16 %v1091, %v1089
  %v1424 = vpack.c.b16 %v1094, %v1092
  %v1425 = vpack.c.b16 %v1095, %v1093
  %v1426 = vpack.c.b16 %v1098, %v1096
  %v1427 = vpack.c.b16 %v1099, %v1097
  %v1428 = vpack.c.b16 %v1102, %v1100
  %v1429 = vpack.c.b16 %v1103, %v1101
  %v1430 = vpack.c.b16 %v1106, %v1104
  %v1431 = vpack.c.b16 %v1107, %v1105
  %v1432 = vpack.c.b16 %v1110, %v1108
  %v1433 = vpack.c.b16 %v1111, %v1109
  %v1434 = vpack.c.b16 %v1114, %v1112
  %v1435 = vpack.c.b16 %v1115, %v1113
  %v1436 = vpack.c.b16 %v1118, %v1116
  %v1437 = vpack.c.b16 %v1119, %v1117
  %v1438 = vpack.c.b16 %v1122, %v1120
  %v1439 = vpack.c.b16 %v1123, %v1121
  %v1440 = vpack.c.b16 %v1126, %v1124
  %v1441 = vpack.c.b16 %v1127, %v1125
  %v1442 = vpack.c.b16 %v1130, %v1128
  %v1443 = vpack.c.b16 %v1131, %v1129
  %v1444 = vpack.c.b16 %v1134, %v1132
  %v1445 = vpack.c.b16 %v1135, %v1133
  %v1446 = vpack.c.b16 %v1138, %v1136
  %v1447 = vpack.c.b16 %v1139, %v1137
  %v1448 = vpack.c.b16 %v1142, %v1140
  %v1449 = vpack.c.b16 %v1143, %v1141
  %v1450 = vpack.c.b16 %v1146, %v1144
  %v1451 = vpack.c.b16 %v1147, %v1145
  %v1452 = vpack.c.b16 %v1150, %v1148
  %v1453 = vpack.c.b16 %v1151, %v1149
  %v1454 = vpack.c.b16 %v1154, %v1152
  %v1455 = vpack.c.b16 %v1155, %v1153
  %v1456 = vpack.c.b16 %v1158, %v1156
  %v1457 = vpack.c.b16 %v1159, %v1157
  %v1458 = vpack.c.b16 %v1162, %v1160
  %v1459 = vpack.c.b16 %v1163, %v1161
  %v1460 = vpack.c.b16 %v1166, %v1164
  %v1461 = vpack.c.b16 %v1167, %v1165
  %v1462 = vpack.c.b16 %v1170, %v1168
  %v1463 = vpack.c.b16 %v1171, %v1169
  %v1464 = vpack.c.b16 %v1174, %v1172
  %v1465 = vpack.c.b16 %v1175, %v1173
  %v1466 = vpack.c.b16 %v1178, %v1176
  %v1467 = vpack.c.b16 %v1179, %v1177
  %v1468 = vpack.c.b16 %v1182, %v1180
  %v1469 = vpack.c.b16 %v1183, %v1181
  %v1470 = vpack.c.b16 %v1186, %v1184
  %v1471 = vpack.c.b16 %v1187, %v1185
  %v1472 = vpack.c.b16 %v1190, %v1188
  %v1473 = vpack.c.b16 %v1191, %v1189
  %v1474 = vpack.c.b16 %v1194, %v1192
  %v1475 = vpack.c.b16 %v1195, %v1193
  %v1476 = vpack.c.b16 %v1198, %v1196
  %v1477 = vpack.c.b16 %v1199, %v1197
  %v1478 = vpack.c.b16 %v1202, %v1200
  %v1479 = vpack.c.b16 %v1203, %v1201
  %v1480 = vpack.c.b16 %v1206, %v1204
  %v1481 = vpack.c.b16 %v1207, %v1205
  %v1482 = vpack.c.b16 %v1210, %v1208
  %v1483 = vpack.c.b16 %v1211, %v1209
  %v1484 = vpack.c.b16 %v1214, %v1212
  %v1485 = vpack.c.b16 %v1215, %v1213
  %v1486 = vpack.c.b16 %v1218, %v1216
  %v1487 = vpack.c.b16 %v1219, %v1217
  %v1488 = vpack.c.b16 %v1222, %v1220
  %v1489 = vpack.c.b16 %v1223, %v1221
  %v1490 = vpack.c.b16 %v1226, %v1224
  %v1491 = vpack.c.b16 %v1227, %v1225
  %v1492 = vpack.c.b16 %v1230, %v1228
  %v1493 = vpack.c.b16 %v1231, %v1229
  %v1494 = vpack.c.b16 %v1234, %v1232
  %v1495 = vpack.c.b16 %v1235, %v1233
  %v1496 = vpack.c.b16 %v1238, %v1236
  %v1497 = vpack.c.b16 %v1239, %v1237
  %v1498 = vpack.c.b16 %v1242, %v1240
  %v1499 = vpack.c.b16 %v1243, %v1241
  %1756 = vmatprep.subr.bf16.mxu0 %v1245
  %1757 = vmatpush1.bf16.msra.mxu0 %v1244
  %1758 = vmatprep.subr.bf16.mxu0 %v1247
  %1759 = vmatpush1.bf16.msra.mxu0 %v1246
  %1760 = vmatprep.subr.bf16.mxu0 %v1249
  %1761 = vmatpush1.bf16.msra.mxu0 %v1248
  %1762 = vmatprep.subr.bf16.mxu0 %v1251
  %1763 = vmatpush1.bf16.msra.mxu0 %v1250
  %1764 = vmatprep.subr.bf16.mxu0 %v1253
  %1765 = vmatpush1.bf16.msra.mxu0 %v1252
  %1766 = vmatprep.subr.bf16.mxu0 %v1255
  %1767 = vmatpush1.bf16.msra.mxu0 %v1254
  %1768 = vmatprep.subr.bf16.mxu0 %v1257
  %1769 = vmatpush1.bf16.msra.mxu0 %v1256
  %1770 = vmatprep.subr.bf16.mxu0 %v1259
  %1771 = vmatpush1.bf16.msra.mxu0 %v1258
  %1772 = vmatprep.subr.bf16.mxu0 %v1261
  %1773 = vmatpush1.bf16.msra.mxu0 %v1260
  %1774 = vmatprep.subr.bf16.mxu0 %v1263
  %1775 = vmatpush1.bf16.msra.mxu0 %v1262
  %1776 = vmatprep.subr.bf16.mxu0 %v1265
  %1777 = vmatpush1.bf16.msra.mxu0 %v1264
  %1778 = vmatprep.subr.bf16.mxu0 %v1267
  %1779 = vmatpush1.bf16.msra.mxu0 %v1266
  %1780 = vmatprep.subr.bf16.mxu0 %v1269
  %1781 = vmatpush1.bf16.msra.mxu0 %v1268
  %1782 = vmatprep.subr.bf16.mxu0 %v1271
  %1783 = vmatpush1.bf16.msra.mxu0 %v1270
  %1784 = vmatprep.subr.bf16.mxu0 %v1273
  %1785 = vmatpush1.bf16.msra.mxu0 %v1272
  %1786 = vmatprep.subr.bf16.mxu0 %v1275
  %1787 = vmatpush1.bf16.msra.mxu0 %v1274
  %1788 = vmatprep.mubr.bf16.mxu0 %v413
  %1789 = vmatmul.mubr.bf16.gmra.mrb[0].mxu0 %v412
  %v1790 = vpop.f32.mrb[0].mxu0
  %v1791 = vadd.f32 %v309, %v1790
  %v1792 = vpop.f32.mrb[0].mxu0
  %v1793 = vadd.f32 %v313, %v1792
  %v1794 = vpop.f32.mrb[0].mxu0
  %v1795 = vadd.f32 %v309, %v1794
  %v1796 = vpop.f32.mrb[0].mxu0
  %v1797 = vadd.f32 %v313, %v1796
  %1798 = vmatprep.mubr.bf16.mxu0 %v429
  %1799 = vmatmul.mubr.bf16.gmra.mrb[0].mxu0 %v428
  %v1800 = vpop.f32.mrb[0].mxu0
  %v1801 = vadd.f32 %v309, %v1800
  %v1802 = vpop.f32.mrb[0].mxu0
  %v1803 = vadd.f32 %v313, %v1802
  %v1804 = vpop.f32.mrb[0].mxu0
  %v1805 = vadd.f32 %v309, %v1804
  %v1806 = vpop.f32.mrb[0].mxu0
  %v1807 = vadd.f32 %v313, %v1806
  %1808 = vdwg.mxu0
  %1809 = vmatprep.subr.bf16.mxu0 %v1277
  %1810 = vmatpush1.bf16.msra.mxu0 %v1276
  %1811 = vmatprep.subr.bf16.mxu0 %v1279
  %1812 = vmatpush1.bf16.msra.mxu0 %v1278
  %1813 = vmatprep.subr.bf16.mxu0 %v1281
  %1814 = vmatpush1.bf16.msra.mxu0 %v1280
  %1815 = vmatprep.subr.bf16.mxu0 %v1283
  %1816 = vmatpush1.bf16.msra.mxu0 %v1282
  %1817 = vmatprep.subr.bf16.mxu0 %v1285
  %1818 = vmatpush1.bf16.msra.mxu0 %v1284
  %1819 = vmatprep.subr.bf16.mxu0 %v1287
  %1820 = vmatpush1.bf16.msra.mxu0 %v1286
  %1821 = vmatprep.subr.bf16.mxu0 %v1289
  %1822 = vmatpush1.bf16.msra.mxu0 %v1288
  %1823 = vmatprep.subr.bf16.mxu0 %v1291
  %1824 = vmatpush1.bf16.msra.mxu0 %v1290
  %1825 = vmatprep.subr.bf16.mxu0 %v1293
  %1826 = vmatpush1.bf16.msra.mxu0 %v1292
  %1827 = vmatprep.subr.bf16.mxu0 %v1295
  %1828 = vmatpush1.bf16.msra.mxu0 %v1294
  %1829 = vmatprep.subr.bf16.mxu0 %v1297
  %1830 = vmatpush1.bf16.msra.mxu0 %v1296
  %1831 = vmatprep.subr.bf16.mxu0 %v1299
  %1832 = vmatpush1.bf16.msra.mxu0 %v1298
  %1833 = vmatprep.subr.bf16.mxu0 %v1301
  %1834 = vmatpush1.bf16.msra.mxu0 %v1300
  %1835 = vmatprep.subr.bf16.mxu0 %v1303
  %1836 = vmatpush1.bf16.msra.mxu0 %v1302
  %1837 = vmatprep.subr.bf16.mxu0 %v1305
  %1838 = vmatpush1.bf16.msra.mxu0 %v1304
  %1839 = vmatprep.subr.bf16.mxu0 %v1307
  %1840 = vmatpush1.bf16.msra.mxu0 %v1306
  %1841 = vmatprep.mubr.bf16.mxu0 %v415
  %1842 = vmatmul.mubr.bf16.gmra.mrb[0].mxu0 %v414
  %v1843 = vpop.f32.mrb[0].mxu0
  %v1844 = vadd.f32 %v1791, %v1843
  %v1845 = vpop.f32.mrb[0].mxu0
  %v1846 = vadd.f32 %v1793, %v1845
  %v1847 = vpop.f32.mrb[0].mxu0
  %v1848 = vadd.f32 %v1795, %v1847
  %v1849 = vpop.f32.mrb[0].mxu0
  %v1850 = vadd.f32 %v1797, %v1849
  %1851 = vmatprep.mubr.bf16.mxu0 %v431
  %1852 = vmatmul.mubr.bf16.gmra.mrb[0].mxu0 %v430
  %v1853 = vpop.f32.mrb[0].mxu0
  %v1854 = vadd.f32 %v1801, %v1853
  %v1855 = vpop.f32.mrb[0].mxu0
  %v1856 = vadd.f32 %v1803, %v1855
  %v1857 = vpop.f32.mrb[0].mxu0
  %v1858 = vadd.f32 %v1805, %v1857
  %v1859 = vpop.f32.mrb[0].mxu0
  %v1860 = vadd.f32 %v1807, %v1859
  %1861 = vdwg.mxu0
  %1862 = vmatprep.subr.bf16.mxu0 %v1309
  %1863 = vmatpush1.bf16.msra.mxu0 %v1308
  %1864 = vmatprep.subr.bf16.mxu0 %v1311
  %1865 = vmatpush1.bf16.msra.mxu0 %v1310
  %1866 = vmatprep.subr.bf16.mxu0 %v1313
  %1867 = vmatpush1.bf16.msra.mxu0 %v1312
  %1868 = vmatprep.subr.bf16.mxu0 %v1315
  %1869 = vmatpush1.bf16.msra.mxu0 %v1314
  %1870 = vmatprep.subr.bf16.mxu0 %v1317
  %1871 = vmatpush1.bf16.msra.mxu0 %v1316
  %1872 = vmatprep.subr.bf16.mxu0 %v1319
  %1873 = vmatpush1.bf16.msra.mxu0 %v1318
  %1874 = vmatprep.subr.bf16.mxu0 %v1321
  %1875 = vmatpush1.bf16.msra.mxu0 %v1320
  %1876 = vmatprep.subr.bf16.mxu0 %v1323
  %1877 = vmatpush1.bf16.msra.mxu0 %v1322
  %1878 = vmatprep.subr.bf16.mxu0 %v1325
  %1879 = vmatpush1.bf16.msra.mxu0 %v1324
  %1880 = vmatprep.subr.bf16.mxu0 %v1327
  %1881 = vmatpush1.bf16.msra.mxu0 %v1326
  %1882 = vmatprep.subr.bf16.mxu0 %v1329
  %1883 = vmatpush1.bf16.msra.mxu0 %v1328
  %1884 = vmatprep.subr.bf16.mxu0 %v1331
  %1885 = vmatpush1.bf16.msra.mxu0 %v1330
  %1886 = vmatprep.subr.bf16.mxu0 %v1333
  %1887 = vmatpush1.bf16.msra.mxu0 %v1332
  %1888 = vmatprep.subr.bf16.mxu0 %v1335
  %1889 = vmatpush1.bf16.msra.mxu0 %v1334
  %1890 = vmatprep.subr.bf16.mxu0 %v1337
  %1891 = vmatpush1.bf16.msra.mxu0 %v1336
  %1892 = vmatprep.subr.bf16.mxu0 %v1339
  %1893 = vmatpush1.bf16.msra.mxu0 %v1338
  %1894 = vmatprep.mubr.bf16.mxu0 %v417
  %1895 = vmatmul.mubr.bf16.gmra.mrb[0].mxu0 %v416
  %v1896 = vpop.f32.mrb[0].mxu0
  %v1897 = vadd.f32 %v1844, %v1896
  %v1898 = vpop.f32.mrb[0].mxu0
  %v1899 = vadd.f32 %v1846, %v1898
  %v1900 = vpop.f32.mrb[0].mxu0
  %v1901 = vadd.f32 %v1848, %v1900
  %v1902 = vpop.f32.mrb[0].mxu0
  %v1903 = vadd.f32 %v1850, %v1902
  %1904 = vmatprep.mubr.bf16.mxu0 %v433
  %1905 = vmatmul.mubr.bf16.gmra.mrb[0].mxu0 %v432
  %v1906 = vpop.f32.mrb[0].mxu0
  %v1907 = vadd.f32 %v1854, %v1906
  %v1908 = vpop.f32.mrb[0].mxu0
  %v1909 = vadd.f32 %v1856, %v1908
  %v1910 = vpop.f32.mrb[0].mxu0
  %v1911 = vadd.f32 %v1858, %v1910
  %v1912 = vpop.f32.mrb[0].mxu0
  %v1913 = vadd.f32 %v1860, %v1912
  %1914 = vdwg.mxu0
  %1915 = vmatprep.subr.bf16.mxu0 %v1341
  %1916 = vmatpush1.bf16.msra.mxu0 %v1340
  %1917 = vmatprep.subr.bf16.mxu0 %v1343
  %1918 = vmatpush1.bf16.msra.mxu0 %v1342
  %1919 = vmatprep.subr.bf16.mxu0 %v1345
  %1920 = vmatpush1.bf16.msra.mxu0 %v1344
  %1921 = vmatprep.subr.bf16.mxu0 %v1347
  %1922 = vmatpush1.bf16.msra.mxu0 %v1346
  %1923 = vmatprep.subr.bf16.mxu0 %v1349
  %1924 = vmatpush1.bf16.msra.mxu0 %v1348
  %1925 = vmatprep.subr.bf16.mxu0 %v1351
  %1926 = vmatpush1.bf16.msra.mxu0 %v1350
  %1927 = vmatprep.subr.bf16.mxu0 %v1353
  %1928 = vmatpush1.bf16.msra.mxu0 %v1352
  %1929 = vmatprep.subr.bf16.mxu0 %v1355
  %1930 = vmatpush1.bf16.msra.mxu0 %v1354
  %1931 = vmatprep.subr.bf16.mxu0 %v1357
  %1932 = vmatpush1.bf16.msra.mxu0 %v1356
  %1933 = vmatprep.subr.bf16.mxu0 %v1359
  %1934 = vmatpush1.bf16.msra.mxu0 %v1358
  %1935 = vmatprep.subr.bf16.mxu0 %v1361
  %1936 = vmatpush1.bf16.msra.mxu0 %v1360
  %1937 = vmatprep.subr.bf16.mxu0 %v1363
  %1938 = vmatpush1.bf16.msra.mxu0 %v1362
  %1939 = vmatprep.subr.bf16.mxu0 %v1365
  %1940 = vmatpush1.bf16.msra.mxu0 %v1364
  %1941 = vmatprep.subr.bf16.mxu0 %v1367
  %1942 = vmatpush1.bf16.msra.mxu0 %v1366
  %1943 = vmatprep.subr.bf16.mxu0 %v1369
  %1944 = vmatpush1.bf16.msra.mxu0 %v1368
  %1945 = vmatprep.subr.bf16.mxu0 %v1371
  %1946 = vmatpush1.bf16.msra.mxu0 %v1370
  %1947 = vmatprep.mubr.bf16.mxu0 %v419
  %1948 = vmatmul.mubr.bf16.gmra.mrb[0].mxu0 %v418
  %v1949 = vpop.f32.mrb[0].mxu0
  %v1950 = vadd.f32 %v1897, %v1949
  %v1951 = vpop.f32.mrb[0].mxu0
  %v1952 = vadd.f32 %v1899, %v1951
  %v1953 = vpop.f32.mrb[0].mxu0
  %v1954 = vadd.f32 %v1901, %v1953
  %v1955 = vpop.f32.mrb[0].mxu0
  %v1956 = vadd.f32 %v1903, %v1955
  %1957 = vmatprep.mubr.bf16.mxu0 %v435
  %1958 = vmatmul.mubr.bf16.gmra.mrb[0].mxu0 %v434
  %v1959 = vpop.f32.mrb[0].mxu0
  %v1960 = vadd.f32 %v1907, %v1959
  %v1961 = vpop.f32.mrb[0].mxu0
  %v1962 = vadd.f32 %v1909, %v1961
  %v1963 = vpop.f32.mrb[0].mxu0
  %v1964 = vadd.f32 %v1911, %v1963
  %v1965 = vpop.f32.mrb[0].mxu0
  %v1966 = vadd.f32 %v1913, %v1965
  %1967 = vdwg.mxu0
  %1968 = vmatprep.subr.bf16.mxu0 %v1373
  %1969 = vmatpush1.bf16.msra.mxu0 %v1372
  %1970 = vmatprep.subr.bf16.mxu0 %v1375
  %1971 = vmatpush1.bf16.msra.mxu0 %v1374
  %1972 = vmatprep.subr.bf16.mxu0 %v1377
  %1973 = vmatpush1.bf16.msra.mxu0 %v1376
  %1974 = vmatprep.subr.bf16.mxu0 %v1379
  %1975 = vmatpush1.bf16.msra.mxu0 %v1378
  %1976 = vmatprep.subr.bf16.mxu0 %v1381
  %1977 = vmatpush1.bf16.msra.mxu0 %v1380
  %1978 = vmatprep.subr.bf16.mxu0 %v1383
  %1979 = vmatpush1.bf16.msra.mxu0 %v1382
  %1980 = vmatprep.subr.bf16.mxu0 %v1385
  %1981 = vmatpush1.bf16.msra.mxu0 %v1384
  %1982 = vmatprep.subr.bf16.mxu0 %v1387
  %1983 = vmatpush1.bf16.msra.mxu0 %v1386
  %1984 = vmatprep.subr.bf16.mxu0 %v1389
  %1985 = vmatpush1.bf16.msra.mxu0 %v1388
  %1986 = vmatprep.subr.bf16.mxu0 %v1391
  %1987 = vmatpush1.bf16.msra.mxu0 %v1390
  %1988 = vmatprep.subr.bf16.mxu0 %v1393
  %1989 = vmatpush1.bf16.msra.mxu0 %v1392
  %1990 = vmatprep.subr.bf16.mxu0 %v1395
  %1991 = vmatpush1.bf16.msra.mxu0 %v1394
  %1992 = vmatprep.subr.bf16.mxu0 %v1397
  %1993 = vmatpush1.bf16.msra.mxu0 %v1396
  %1994 = vmatprep.subr.bf16.mxu0 %v1399
  %1995 = vmatpush1.bf16.msra.mxu0 %v1398
  %1996 = vmatprep.subr.bf16.mxu0 %v1401
  %1997 = vmatpush1.bf16.msra.mxu0 %v1400
  %1998 = vmatprep.subr.bf16.mxu0 %v1403
  %1999 = vmatpush1.bf16.msra.mxu0 %v1402
  %2000 = vmatprep.mubr.bf16.mxu0 %v421
  %2001 = vmatmul.mubr.bf16.gmra.mrb[0].mxu0 %v420
  %v2002 = vpop.f32.mrb[0].mxu0
  %v2003 = vadd.f32 %v1950, %v2002
  %v2004 = vpop.f32.mrb[0].mxu0
  %v2005 = vadd.f32 %v1952, %v2004
  %v2006 = vpop.f32.mrb[0].mxu0
  %v2007 = vadd.f32 %v1954, %v2006
  %v2008 = vpop.f32.mrb[0].mxu0
  %v2009 = vadd.f32 %v1956, %v2008
  %2010 = vmatprep.mubr.bf16.mxu0 %v437
  %2011 = vmatmul.mubr.bf16.gmra.mrb[0].mxu0 %v436
  %v2012 = vpop.f32.mrb[0].mxu0
  %v2013 = vadd.f32 %v1960, %v2012
  %v2014 = vpop.f32.mrb[0].mxu0
  %v2015 = vadd.f32 %v1962, %v2014
  %v2016 = vpop.f32.mrb[0].mxu0
  %v2017 = vadd.f32 %v1964, %v2016
  %v2018 = vpop.f32.mrb[0].mxu0
  %v2019 = vadd.f32 %v1966, %v2018
  %2020 = vdwg.mxu0
  %2021 = vmatprep.subr.bf16.mxu0 %v1405
  %2022 = vmatpush1.bf16.msra.mxu0 %v1404
  %2023 = vmatprep.subr.bf16.mxu0 %v1407
  %2024 = vmatpush1.bf16.msra.mxu0 %v1406
  %2025 = vmatprep.subr.bf16.mxu0 %v1409
  %2026 = vmatpush1.bf16.msra.mxu0 %v1408
  %2027 = vmatprep.subr.bf16.mxu0 %v1411
  %2028 = vmatpush1.bf16.msra.mxu0 %v1410
  %2029 = vmatprep.subr.bf16.mxu0 %v1413
  %2030 = vmatpush1.bf16.msra.mxu0 %v1412
  %2031 = vmatprep.subr.bf16.mxu0 %v1415
  %2032 = vmatpush1.bf16.msra.mxu0 %v1414
  %2033 = vmatprep.subr.bf16.mxu0 %v1417
  %2034 = vmatpush1.bf16.msra.mxu0 %v1416
  %2035 = vmatprep.subr.bf16.mxu0 %v1419
  %2036 = vmatpush1.bf16.msra.mxu0 %v1418
  %2037 = vmatprep.subr.bf16.mxu0 %v1421
  %2038 = vmatpush1.bf16.msra.mxu0 %v1420
  %2039 = vmatprep.subr.bf16.mxu0 %v1423
  %2040 = vmatpush1.bf16.msra.mxu0 %v1422
  %2041 = vmatprep.subr.bf16.mxu0 %v1425
  %2042 = vmatpush1.bf16.msra.mxu0 %v1424
  %2043 = vmatprep.subr.bf16.mxu0 %v1427
  %2044 = vmatpush1.bf16.msra.mxu0 %v1426
  %2045 = vmatprep.subr.bf16.mxu0 %v1429
  %2046 = vmatpush1.bf16.msra.mxu0 %v1428
  %2047 = vmatprep.subr.bf16.mxu0 %v1431
  %2048 = vmatpush1.bf16.msra.mxu0 %v1430
  %2049 = vmatprep.subr.bf16.mxu0 %v1433
  %2050 = vmatpush1.bf16.msra.mxu0 %v1432
  %2051 = vmatprep.subr.bf16.mxu0 %v1435
  %2052 = vmatpush1.bf16.msra.mxu0 %v1434
  %2053 = vmatprep.mubr.bf16.mxu0 %v423
  %2054 = vmatmul.mubr.bf16.gmra.mrb[0].mxu0 %v422
  %v2055 = vpop.f32.mrb[0].mxu0
  %v2056 = vadd.f32 %v2003, %v2055
  %v2057 = vpop.f32.mrb[0].mxu0
  %v2058 = vadd.f32 %v2005, %v2057
  %v2059 = vpop.f32.mrb[0].mxu0
  %v2060 = vadd.f32 %v2007, %v2059
  %v2061 = vpop.f32.mrb[0].mxu0
  %v2062 = vadd.f32 %v2009, %v2061
  %2063 = vmatprep.mubr.bf16.mxu0 %v439
  %2064 = vmatmul.mubr.bf16.gmra.mrb[0].mxu0 %v438
  %v2065 = vpop.f32.mrb[0].mxu0
  %v2066 = vadd.f32 %v2013, %v2065
  %v2067 = vpop.f32.mrb[0].mxu0
  %v2068 = vadd.f32 %v2015, %v2067
  %v2069 = vpop.f32.mrb[0].mxu0
  %v2070 = vadd.f32 %v2017, %v2069
  %v2071 = vpop.f32.mrb[0].mxu0
  %v2072 = vadd.f32 %v2019, %v2071
  %2073 = vdwg.mxu0
  %2074 = vmatprep.subr.bf16.mxu0 %v1437
  %2075 = vmatpush1.bf16.msra.mxu0 %v1436
  %2076 = vmatprep.subr.bf16.mxu0 %v1439
  %2077 = vmatpush1.bf16.msra.mxu0 %v1438
  %2078 = vmatprep.subr.bf16.mxu0 %v1441
  %2079 = vmatpush1.bf16.msra.mxu0 %v1440
  %2080 = vmatprep.subr.bf16.mxu0 %v1443
  %2081 = vmatpush1.bf16.msra.mxu0 %v1442
  %2082 = vmatprep.subr.bf16.mxu0 %v1445
  %2083 = vmatpush1.bf16.msra.mxu0 %v1444
  %2084 = vmatprep.subr.bf16.mxu0 %v1447
  %2085 = vmatpush1.bf16.msra.mxu0 %v1446
  %2086 = vmatprep.subr.bf16.mxu0 %v1449
  %2087 = vmatpush1.bf16.msra.mxu0 %v1448
  %2088 = vmatprep.subr.bf16.mxu0 %v1451
  %2089 = vmatpush1.bf16.msra.mxu0 %v1450
  %2090 = vmatprep.subr.bf16.mxu0 %v1453
  %2091 = vmatpush1.bf16.msra.mxu0 %v1452
  %2092 = vmatprep.subr.bf16.mxu0 %v1455
  %2093 = vmatpush1.bf16.msra.mxu0 %v1454
  %2094 = vmatprep.subr.bf16.mxu0 %v1457
  %2095 = vmatpush1.bf16.msra.mxu0 %v1456
  %2096 = vmatprep.subr.bf16.mxu0 %v1459
  %2097 = vmatpush1.bf16.msra.mxu0 %v1458
  %2098 = vmatprep.subr.bf16.mxu0 %v1461
  %2099 = vmatpush1.bf16.msra.mxu0 %v1460
  %2100 = vmatprep.subr.bf16.mxu0 %v1463
  %2101 = vmatpush1.bf16.msra.mxu0 %v1462
  %2102 = vmatprep.subr.bf16.mxu0 %v1465
  %2103 = vmatpush1.bf16.msra.mxu0 %v1464
  %2104 = vmatprep.subr.bf16.mxu0 %v1467
  %2105 = vmatpush1.bf16.msra.mxu0 %v1466
  %2106 = vmatprep.mubr.bf16.mxu0 %v425
  %2107 = vmatmul.mubr.bf16.gmra.mrb[0].mxu0 %v424
  %v2108 = vpop.f32.mrb[0].mxu0
  %v2109 = vadd.f32 %v2056, %v2108
  %v2110 = vpop.f32.mrb[0].mxu0
  %v2111 = vadd.f32 %v2058, %v2110
  %v2112 = vpop.f32.mrb[0].mxu0
  %v2113 = vadd.f32 %v2060, %v2112
  %v2114 = vpop.f32.mrb[0].mxu0
  %v2115 = vadd.f32 %v2062, %v2114
  %2116 = vmatprep.mubr.bf16.mxu0 %v441
  %2117 = vmatmul.mubr.bf16.gmra.mrb[0].mxu0 %v440
  %v2118 = vpop.f32.mrb[0].mxu0
  %v2119 = vadd.f32 %v2066, %v2118
  %v2120 = vpop.f32.mrb[0].mxu0
  %v2121 = vadd.f32 %v2068, %v2120
  %v2122 = vpop.f32.mrb[0].mxu0
  %v2123 = vadd.f32 %v2070, %v2122
  %v2124 = vpop.f32.mrb[0].mxu0
  %v2125 = vadd.f32 %v2072, %v2124
  %2126 = vdwg.mxu0
  %2127 = vmatprep.subr.bf16.mxu0 %v1469
  %2128 = vmatpush1.bf16.msra.mxu0 %v1468
  %2129 = vmatprep.subr.bf16.mxu0 %v1471
  %2130 = vmatpush1.bf16.msra.mxu0 %v1470
  %2131 = vmatprep.subr.bf16.mxu0 %v1473
  %2132 = vmatpush1.bf16.msra.mxu0 %v1472
  %2133 = vmatprep.subr.bf16.mxu0 %v1475
  %2134 = vmatpush1.bf16.msra.mxu0 %v1474
  %2135 = vmatprep.subr.bf16.mxu0 %v1477
  %2136 = vmatpush1.bf16.msra.mxu0 %v1476
  %2137 = vmatprep.subr.bf16.mxu0 %v1479
  %2138 = vmatpush1.bf16.msra.mxu0 %v1478
  %2139 = vmatprep.subr.bf16.mxu0 %v1481
  %2140 = vmatpush1.bf16.msra.mxu0 %v1480
  %2141 = vmatprep.subr.bf16.mxu0 %v1483
  %2142 = vmatpush1.bf16.msra.mxu0 %v1482
  %2143 = vmatprep.subr.bf16.mxu0 %v1485
  %2144 = vmatpush1.bf16.msra.mxu0 %v1484
  %2145 = vmatprep.subr.bf16.mxu0 %v1487
  %2146 = vmatpush1.bf16.msra.mxu0 %v1486
  %2147 = vmatprep.subr.bf16.mxu0 %v1489
  %2148 = vmatpush1.bf16.msra.mxu0 %v1488
  %2149 = vmatprep.subr.bf16.mxu0 %v1491
  %2150 = vmatpush1.bf16.msra.mxu0 %v1490
  %2151 = vmatprep.subr.bf16.mxu0 %v1493
  %2152 = vmatpush1.bf16.msra.mxu0 %v1492
  %2153 = vmatprep.subr.bf16.mxu0 %v1495
  %2154 = vmatpush1.bf16.msra.mxu0 %v1494
  %2155 = vmatprep.subr.bf16.mxu0 %v1497
  %2156 = vmatpush1.bf16.msra.mxu0 %v1496
  %2157 = vmatprep.subr.bf16.mxu0 %v1499
  %2158 = vmatpush1.bf16.msra.mxu0 %v1498
  %2159 = vmatprep.mubr.bf16.mxu0 %v427
  %2160 = vmatmul.mubr.bf16.gmra.mrb[0].mxu0 %v426
  %v2161 = vpop.f32.mrb[0].mxu0
  %v2162 = vadd.f32 %v2109, %v2161
  %v2163 = vpop.f32.mrb[0].mxu0
  %v2164 = vadd.f32 %v2111, %v2163
  %v2165 = vpop.f32.mrb[0].mxu0
  %v2166 = vadd.f32 %v2113, %v2165
  %v2167 = vpop.f32.mrb[0].mxu0
  %v2168 = vadd.f32 %v2115, %v2167
  %2169 = vmatprep.mubr.bf16.mxu0 %v443
  %2170 = vmatmul.mubr.bf16.gmra.mrb[0].mxu0 %v442
  %v2171 = vpop.f32.mrb[0].mxu0
  %v2172 = vadd.f32 %v2119, %v2171
  %v2173 = vpop.f32.mrb[0].mxu0
  %v2174 = vadd.f32 %v2121, %v2173
  %v2175 = vpop.f32.mrb[0].mxu0
  %v2176 = vadd.f32 %v2123, %v2175
  %v2177 = vpop.f32.mrb[0].mxu0
  %v2178 = vadd.f32 %v2125, %v2177
  %2179 = vdwg.mxu0
  %v2180 = vpack.c.bf16 %v2166, %v2162
  %v2181 = vpack.c.bf16 %v2168, %v2164
  %v2182 = vpack.c.bf16 %v2176, %v2172
  %v2183 = vpack.c.bf16 %v2178, %v2174
  %v2188 = vunpack.c.l.b16 %v2180
  %v2189 = vunpack.c.l.b16 %v2181
  %v2190 = vunpack.c.h.b16 %v2180
  %v2191 = vunpack.c.h.b16 %v2181
  %v2192 = vunpack.c.l.b16 %v2182
  %v2193 = vunpack.c.l.b16 %v2183
  %v2194 = vunpack.c.h.b16 %v2182
  %v2195 = vunpack.c.h.b16 %v2183
  %v2196 = vpack.c.b16 %v2189, %v2188
  %v2197 = vpack.c.b16 %v2191, %v2190
  %v2198 = vpack.c.b16 %v2193, %v2192
  %v2199 = vpack.c.b16 %v2195, %v2194
  %2204 = vst [vmem:[%s3] sm:$0xff] %v2196
  %2205 = vst [vmem:[%s3 + $0x8] sm:$0xff] %v2197
  %2206 = vst [vmem:[%s3 + $0x10] sm:$0xff] %v2198
  %2207 = vst [vmem:[%s3 + $0x18] sm:$0xff] %v2199
  %s2208 = smul.u32 0, 32
  %v2209 = vlaneseq
  %v2210 = vshrl.u32 %v2209, 7
  %v2211 = vadd.s32 %v2210, 8
  %v2212 = vadd.s32 %v2210, 16
  %v2213 = vadd.s32 %v2210, 24
  %v2214 = vstv %s2208
  %v2215 = vadd.s32 %v2214, %v2210
  %v2216 = vadd.s32 %v2214, %v2211
  %v2217 = vadd.s32 %v2214, %v2212
  %v2218 = vadd.s32 %v2214, %v2213
  %vm2219 = vcmp.lt.s32.totalorder %v2215, 32
  %vm2220 = vcmp.lt.s32.totalorder %v2216, 32
  %vm2221 = vcmp.lt.s32.totalorder %v2217, 32
  %vm2222 = vcmp.lt.s32.totalorder %v2218, 32
  %v2223 = vsel %vm2219, 1, 0
  %v2224 = vsel %vm2220, 1, 0
  %v2225 = vsel %vm2221, 1, 0
  %v2226 = vsel %vm2222, 1, 0
  %vm2227 = vcmp.eq.s32.totalorder %v2223, 1
  %vm2228 = vcmp.eq.s32.totalorder %v2224, 1
  %vm2229 = vcmp.eq.s32.totalorder %v2225, 1
  %vm2230 = vcmp.eq.s32.totalorder %v2226, 1
  %v2231 = vsel %vm2227, %v2162, 0.0
  %v2232 = vsel %vm2227, %v2164, 0.0
  %v2233 = vsel %vm2228, %v2166, 0.0
  %v2234 = vsel %vm2228, %v2168, 0.0
  %v2235 = vsel %vm2229, %v2172, 0.0
  %v2236 = vsel %vm2229, %v2174, 0.0
  %v2237 = vsel %vm2230, %v2176, 0.0
  %v2238 = vsel %vm2230, %v2178, 0.0
  %v2239 = vadd.f32 %v2231, %v2233
  %v2240 = vadd.f32 %v2239, %v2235
  %v2241 = vadd.f32 %v2240, %v2237
  %v2242 = vrot.slane %v2241, 4
  %v2243 = vadd.f32 %v2241, %v2242
  %v2244 = vrot.slane %v2243, 2
  %v2245 = vadd.f32 %v2243, %v2244
  %v2246 = vrot.slane %v2245, 1
  %v2247 = vadd.f32 %v2245, %v2246
  %v2248 = vadd.f32 %v2232, %v2234
  %v2249 = vadd.f32 %v2248, %v2236
  %v2250 = vadd.f32 %v2249, %v2238
  %v2251 = vrot.slane %v2250, 4
  %v2252 = vadd.f32 %v2250, %v2251
  %v2253 = vrot.slane %v2252, 2
  %v2254 = vadd.f32 %v2252, %v2253
  %v2255 = vrot.slane %v2254, 1
  %v2256 = vadd.f32 %v2254, %v2255
  %v2257 = vmul.f32 %v2231, %v2231
  %v2258 = vmul.f32 %v2232, %v2232
  %v2259 = vmul.f32 %v2233, %v2233
  %v2260 = vmul.f32 %v2234, %v2234
  %v2261 = vmul.f32 %v2235, %v2235
  %v2262 = vmul.f32 %v2236, %v2236
  %v2263 = vmul.f32 %v2237, %v2237
  %v2264 = vmul.f32 %v2238, %v2238
  %v2265 = vadd.f32 %v2257, %v2259
  %v2266 = vadd.f32 %v2265, %v2261
  %v2267 = vadd.f32 %v2266, %v2263
  %v2268 = vrot.slane %v2267, 4
  %v2269 = vadd.f32 %v2267, %v2268
  %v2270 = vrot.slane %v2269, 2
  %v2271 = vadd.f32 %v2269, %v2270
  %v2272 = vrot.slane %v2271, 1
  %v2273 = vadd.f32 %v2271, %v2272
  %v2274 = vadd.f32 %v2258, %v2260
  %v2275 = vadd.f32 %v2274, %v2262
  %v2276 = vadd.f32 %v2275, %v2264
  %v2277 = vrot.slane %v2276, 4
  %v2278 = vadd.f32 %v2276, %v2277
  %v2279 = vrot.slane %v2278, 2
  %v2280 = vadd.f32 %v2278, %v2279
  %v2281 = vrot.slane %v2280, 1
  %v2282 = vadd.f32 %v2280, %v2281
  %vm2283 = vcmask 1040384
  %v2284 = vsel %vm2283, %v2247, %v2273
  %v2285 = vsel %vm2283, %v2256, %v2282
  %v2288 = vcombine.low %v2284, %v2285
  %v2290 = vunpack.c.l.s4 1983009808
  %v2291 = vunpack.c.0.s8 %v2290
  %v2292 = vlaneseq
  %v2293 = vshrl.u32 %v2292, 7
  %v2294 = vsub.s32 %v2291, %v2293
  %v2295 = vrot.slane %v2288, %v2294
  %2297 = vst [vmem:[%s4] sm:$0xf] %v2295
  // Predicated region
  $region14: #{discriminator_forward.6} parent=0 // pred_check
    _
  $region15: #{discriminator_forward.6} parent=0 // pred_check_branch
    %2299 = sbr.rel (0) target = $region17
  $region16: #{discriminator_forward.6} parent=0 // pred_region
    _
  $region17: #{discriminator_forward.6} parent=0 // pred_fallthru
    _
  // Predicated region
  $region18: #{discriminator_forward.6} parent=0 // pred_check
    _
  $region19: #{discriminator_forward.6} parent=0 // pred_check_branch
    %2301 = sbr.rel (0) target = $region21
  $region20: #{discriminator_forward.6} parent=0 // pred_region
    _
  $region21: #{discriminator_forward.6} parent=0 // pred_fallthru
    _
  // Predicated region
  $region22: #{discriminator_forward.6} parent=0 // pred_check
    _
  $region23: #{discriminator_forward.6} parent=0 // pred_check_branch
    %2303 = sbr.rel (0) target = $region25
  $region24: #{discriminator_forward.6} parent=0 // pred_region
    _
  $region25: #{discriminator_forward.6} parent=0 // pred_fallthru
    _
  // Predicated region
  $region26: #{discriminator_forward.6} parent=0 // pred_check
    _
  $region27: #{discriminator_forward.6} parent=0 // pred_check_branch
    %2305 = sbr.rel (0) target = $region29
  $region28: #{discriminator_forward.6} parent=0 // pred_region
    _
  $region29: #{discriminator_forward.6} parent=0 // pred_fallthru
    _

</llo_original>
